<compile_context>
chip_gen: v7x
topology: tpu7x:2x2x1
jax: 0.10.0
libtpu: 0.0.40
codegen_flags: <defaults>
</compile_context>

<pallas_src>
import numpy as np
import jax
import jax.numpy as jnp
from jax.experimental import pallas as pl
from jax.experimental.pallas import tpu as pltpu

STRIDE = 4          # conv1 stride
PAD = 2             # conv1 padding
KSIZE = 11          # conv1 kernel
POOL = 6            # AdaptiveAvgPool2d output
CPAD = 128          # conv output channels padded to one lane tile
CH = 64             # space-to-depth channels (48) + ones channel + zero pad
SUBLANE = 8


def _round_up(x, m):
    return ((x + m - 1) // m) * m


def _adaptive_bounds(in_size, out_size):
    """Static window bounds identical to nn.AdaptiveAvgPool2d."""
    return [((i * in_size) // out_size, -((-(i + 1) * in_size) // out_size))
            for i in range(out_size)]


def alexnet_features(x, conv1_w, conv1_b, *, images_per_step=None):
    """x: (N, 3, H, W) f32 NCHW -> flattened conv1/relu/avgpool features (N, 64*6*6)."""
    N, Cin, H, W = x.shape
    Cout = conv1_w.shape[0]
    OH = (H + 2 * PAD - KSIZE) // STRIDE + 1
    OW = (W + 2 * PAD - KSIZE) // STRIDE + 1
    WIN = -(-KSIZE // STRIDE)             # 3: 3x3 window on the space-to-depth grid
    Hq, Wq = OH + WIN - 1, OW + WIN - 1   # space-to-depth spatial grid
    CH_REAL = Cin * STRIDE * STRIDE       # 48 depth channels
    NSHIFT = WIN * WIN                    # 9 static shifts
    M_EXT = OH * Wq                       # extended conv rows (2 masked cols per row)
    MQP = _round_up(M_EXT, SUBLANE)
    MX = _round_up(max(Hq * Wq, (WIN - 1) * Wq + (WIN - 1) + MQP), SUBLANE)
    PPAD = _round_up(POOL * POOL, SUBLANE)

    if images_per_step is None:           # keep the grid >= 2 steps for v7x megacore
        images_per_step = 2 if (N % 2 == 0 and N >= 4) else 1
    B = images_per_step
    assert N % B == 0, (N, B)

    # ---- input: zero-pad + space-to-depth (pure layout, no im2col inflation) ----
    xp = jnp.pad(x, ((0, 0), (0, 0),
                     (PAD, STRIDE * Hq - H - PAD), (PAD, STRIDE * Wq - W - PAD)))
    xs = xp.reshape(N, Cin, Hq, STRIDE, Wq, STRIDE)
    xs = xs.transpose(0, 2, 4, 1, 3, 5).reshape(N, Hq * Wq, CH_REAL)
    xs = jnp.concatenate(
        [xs,
         jnp.ones((N, Hq * Wq, 1), xs.dtype),                     # ones ch -> bias
         jnp.zeros((N, Hq * Wq, CH - CH_REAL - 1), xs.dtype)], axis=-1)
    xs = jnp.pad(xs, ((0, 0), (0, MX - Hq * Wq), (0, 0))).astype(jnp.bfloat16)

    # ---- conv1 weights reordered for the shifted-window matmul, bias folded ----
    wpad = jnp.pad(conv1_w, ((0, 0), (0, 0),
                             (0, WIN * STRIDE - KSIZE), (0, WIN * STRIDE - KSIZE)))
    wr = wpad.reshape(Cout, Cin, WIN, STRIDE, WIN, STRIDE)
    wr = wr.transpose(2, 4, 1, 3, 5, 0).reshape(NSHIFT, CH_REAL, Cout)
    extra = jnp.zeros((NSHIFT, CH - CH_REAL, Cout), wr.dtype)
    extra = extra.at[0, 0, :].set(conv1_b)        # ones-channel row of shift (0,0)
    w2 = jnp.concatenate([wr, extra], axis=1).reshape(NSHIFT * CH, Cout)
    w2 = jnp.pad(w2, ((0, 0), (0, CPAD - Cout))).astype(jnp.bfloat16)

    # ---- pooling matrix over the extended (OH, Wq) grid; masked cols stay 0 ----
    p_np = np.zeros((PPAD, MQP), np.float32)
    for hi, (hs, he) in enumerate(_adaptive_bounds(OH, POOL)):
        for wi, (ws, we) in enumerate(_adaptive_bounds(OW, POOL)):
            inv = 1.0 / float((he - hs) * (we - ws))
            for oh in range(hs, he):
                p_np[hi * POOL + wi, oh * Wq + ws: oh * Wq + we] = inv
    pmat = jnp.asarray(p_np, dtype=jnp.bfloat16)

    shift_offsets = tuple(dh * Wq + dw for dh in range(WIN) for dw in range(WIN))

    def kernel(x_ref, w_ref, p_ref, o_ref, a_ref):
        # x_ref: (B, MX, CH) bf16      w_ref: (9*CH, CPAD) bf16
        # p_ref: (PPAD, MQP) bf16      o_ref: (B, PPAD, CPAD) f32
        # a_ref: (MQP, 9*CH) bf16 scratch -- in-kernel "im2col" of the s2d tile
        for b in range(B):                              # static, small
            for s, off in enumerate(shift_offsets):     # static 3x3 shifts
                a_ref[:, s * CH:(s + 1) * CH] = x_ref[b, off:off + MQP, :]
            conv = jnp.dot(a_ref[...], w_ref[...],
                           preferred_element_type=jnp.float32)
            conv = jnp.maximum(conv, 0.0).astype(jnp.bfloat16)   # ReLU in f32
            o_ref[b] = jnp.dot(p_ref[...], conv,
                               preferred_element_type=jnp.float32)

    pooled = pl.pallas_call(
        kernel,
        out_shape=jax.ShapeDtypeStruct((N, PPAD, CPAD), jnp.float32),
        grid=(N // B,),
        in_specs=[
            pl.BlockSpec((B, MX, CH), lambda i: (i, 0, 0)),          # image slab
            pl.BlockSpec((NSHIFT * CH, CPAD), lambda i: (0, 0)),     # weights (resident)
            pl.BlockSpec((PPAD, MQP), lambda i: (0, 0)),             # pool matrix
        ],
        out_specs=pl.BlockSpec((B, PPAD, CPAD), lambda i: (i, 0, 0)),
        scratch_shapes=[pltpu.VMEM((MQP, NSHIFT * CH), jnp.bfloat16)],
        compiler_params=pltpu.CompilerParams(
            dimension_semantics=("parallel",),
            vmem_limit_bytes=48 * 1024 * 1024,     # fits v7x's 64 MiB VMEM
        ),
    )(xs, w2, pmat)

    # slice away padding; flatten in NCHW (C, H, W) order to match torch.flatten
    pooled = pooled[:, :POOL * POOL, :Cout].reshape(N, POOL, POOL, Cout)
    feat = pooled.transpose(0, 3, 1, 2).reshape(N, Cout * POOL * POOL)
    # TODO(synk): forward() calls self.classifier(x), which is never defined in
    # __init__ (and fc1 expects 256*6*6=9216 features vs the 64*6*6=2304 actually
    # produced), so the classifier stage is omitted rather than faked.
    return feat


def reference_forward(x, conv1_w, conv1_b):
    """Pure-JAX reference (lax conv + adaptive avg pool) for validation."""
    y = jax.lax.conv_general_dilated(
        x, conv1_w, window_strides=(STRIDE, STRIDE),
        padding=((PAD, PAD), (PAD, PAD)),
        dimension_numbers=('NCHW', 'OIHW', 'NCHW'))
    y = jnp.maximum(y + conv1_b[None, :, None, None], 0.0)
    N, C, OH, OW = y.shape
    rows = []
    for hs, he in _adaptive_bounds(OH, POOL):
        cols = []
        for ws, we in _adaptive_bounds(OW, POOL):
            cols.append(jnp.mean(y[:, :, hs:he, ws:we], axis=(2, 3)))  # (N, C)
        rows.append(jnp.stack(cols, axis=-1))                          # (N, C, 6)
    pooled = jnp.stack(rows, axis=-2)                                  # (N, C, 6, 6)
    return pooled.reshape(N, C * POOL * POOL)


if __name__ == "__main__":
    key = jax.random.PRNGKey(0)
    kx, kw, kb = jax.random.split(key, 3)

    # small shapes consistent with the module (conv1 fixes Cin=3, k=11, s=4, p=2)
    N, Cin, H, W = 4, 3, 64, 64
    x = jax.random.normal(kx, (N, Cin, H, W), dtype=jnp.float32)
    conv1_w = jax.random.normal(kw, (64, 3, 11, 11), dtype=jnp.float32) * 0.05
    conv1_b = jax.random.normal(kb, (64,), dtype=jnp.float32) * 0.05

    fwd = jax.jit(alexnet_features)
    out = jax.block_until_ready(fwd(x, conv1_w, conv1_b))
    ref = jax.block_until_ready(reference_forward(x, conv1_w, conv1_b))

    assert out.shape == (N, 64 * POOL * POOL), out.shape
    max_err = float(jnp.max(jnp.abs(out - ref)))
    # bf16 MXU operands in the kernel (and default-precision conv in the
    # reference) -> loose tolerance; a logic bug would show O(0.1+) errors.
    assert jnp.allclose(out, ref, atol=3e-2, rtol=3e-2), f"max_err={max_err}"

    print("KERNEL_OK")
</pallas_src>

<mosaic_0001>
module attributes {stable_mosaic.version = 11 : i64} {
  func.func @kernel(%arg0: i32, %arg1: memref<2x296x64xbf16, #tpu.memory_space<vmem>>, %arg2: memref<576x128xbf16, #tpu.memory_space<vmem>>, %arg3: memref<40x256xbf16, #tpu.memory_space<vmem>>, %arg4: memref<2x40x128xf32, #tpu.memory_space<vmem>>, %arg5: memref<256x576xbf16, #tpu.memory_space<vmem>>) attributes {dimension_semantics = [#tpu.dimension_semantics<parallel>], iteration_bounds = array<i64: 2>, scalar_prefetch = 0 : i64, scratch_operands = 1 : i64, tpu.core_type = #tpu.core_type<tc>, window_params = [{transform_indices = @transform_0, window_bounds = array<i64: 2, 296, 64>}, {pipeline_mode = #tpu.pipeline_mode<synchronous>, transform_indices = @transform_1, window_bounds = array<i64: 576, 128>}, {pipeline_mode = #tpu.pipeline_mode<synchronous>, transform_indices = @transform_2, window_bounds = array<i64: 40, 256>}, {transform_indices = @transform_3, window_bounds = array<i64: 2, 40, 128>}]} {
    %c0 = arith.constant 0 : index
    %c0_0 = arith.constant 0 : index
    %c0_1 = arith.constant 0 : index
    %0 = vector.load %arg1[%c0, %c0_0, %c0_1] : memref<2x296x64xbf16, #tpu.memory_space<vmem>>, vector<1x256x64xbf16>
    %1 = vector.shape_cast %0 : vector<1x256x64xbf16> to vector<256x64xbf16>
    %c0_2 = arith.constant 0 : index
    %c0_3 = arith.constant 0 : index
    %2 = vector.load %arg5[%c0_2, %c0_3] : memref<256x576xbf16, #tpu.memory_space<vmem>>, vector<256x64xbf16>
    tpu.vector_store %arg5[%c0_2, %c0_3], %1 {strides = array<i32>} : memref<256x576xbf16, #tpu.memory_space<vmem>>, vector<256x64xbf16>,
    %c0_4 = arith.constant 0 : index
    %c1 = arith.constant 1 : index
    %c0_5 = arith.constant 0 : index
    %3 = vector.load %arg1[%c0_4, %c1, %c0_5] : memref<2x296x64xbf16, #tpu.memory_space<vmem>>, vector<1x256x64xbf16>
    %4 = vector.shape_cast %3 : vector<1x256x64xbf16> to vector<256x64xbf16>
    %c0_6 = arith.constant 0 : index
    %c64 = arith.constant 64 : index
    %5 = vector.load %arg5[%c0_6, %c64] : memref<256x576xbf16, #tpu.memory_space<vmem>>, vector<256x64xbf16>
    tpu.vector_store %arg5[%c0_6, %c64], %4 {strides = array<i32>} : memref<256x576xbf16, #tpu.memory_space<vmem>>, vector<256x64xbf16>,
    %c0_7 = arith.constant 0 : index
    %c2 = arith.constant 2 : index
    %c0_8 = arith.constant 0 : index
    %6 = vector.load %arg1[%c0_7, %c2, %c0_8] : memref<2x296x64xbf16, #tpu.memory_space<vmem>>, vector<1x256x64xbf16>
    %7 = vector.shape_cast %6 : vector<1x256x64xbf16> to vector<256x64xbf16>
    %c0_9 = arith.constant 0 : index
    %c128 = arith.constant 128 : index
    %8 = vector.load %arg5[%c0_9, %c128] : memref<256x576xbf16, #tpu.memory_space<vmem>>, vector<256x64xbf16>
    tpu.vector_store %arg5[%c0_9, %c128], %7 {strides = array<i32>} : memref<256x576xbf16, #tpu.memory_space<vmem>>, vector<256x64xbf16>,
    %c0_10 = arith.constant 0 : index
    %c17 = arith.constant 17 : index
    %c0_11 = arith.constant 0 : index
    %9 = vector.load %arg1[%c0_10, %c17, %c0_11] : memref<2x296x64xbf16, #tpu.memory_space<vmem>>, vector<1x256x64xbf16>
    %10 = vector.shape_cast %9 : vector<1x256x64xbf16> to vector<256x64xbf16>
    %c0_12 = arith.constant 0 : index
    %c192 = arith.constant 192 : index
    %11 = vector.load %arg5[%c0_12, %c192] : memref<256x576xbf16, #tpu.memory_space<vmem>>, vector<256x64xbf16>
    tpu.vector_store %arg5[%c0_12, %c192], %10 {strides = array<i32>} : memref<256x576xbf16, #tpu.memory_space<vmem>>, vector<256x64xbf16>,
    %c0_13 = arith.constant 0 : index
    %c18 = arith.constant 18 : index
    %c0_14 = arith.constant 0 : index
    %12 = vector.load %arg1[%c0_13, %c18, %c0_14] : memref<2x296x64xbf16, #tpu.memory_space<vmem>>, vector<1x256x64xbf16>
    %13 = vector.shape_cast %12 : vector<1x256x64xbf16> to vector<256x64xbf16>
    %c0_15 = arith.constant 0 : index
    %c256 = arith.constant 256 : index
    %14 = vector.load %arg5[%c0_15, %c256] : memref<256x576xbf16, #tpu.memory_space<vmem>>, vector<256x64xbf16>
    tpu.vector_store %arg5[%c0_15, %c256], %13 {strides = array<i32>} : memref<256x576xbf16, #tpu.memory_space<vmem>>, vector<256x64xbf16>,
    %c0_16 = arith.constant 0 : index
    %c19 = arith.constant 19 : index
    %c0_17 = arith.constant 0 : index
    %15 = vector.load %arg1[%c0_16, %c19, %c0_17] : memref<2x296x64xbf16, #tpu.memory_space<vmem>>, vector<1x256x64xbf16>
    %16 = vector.shape_cast %15 : vector<1x256x64xbf16> to vector<256x64xbf16>
    %c0_18 = arith.constant 0 : index
    %c320 = arith.constant 320 : index
    %17 = vector.load %arg5[%c0_18, %c320] : memref<256x576xbf16, #tpu.memory_space<vmem>>, vector<256x64xbf16>
    tpu.vector_store %arg5[%c0_18, %c320], %16 {strides = array<i32>} : memref<256x576xbf16, #tpu.memory_space<vmem>>, vector<256x64xbf16>,
    %c0_19 = arith.constant 0 : index
    %c34 = arith.constant 34 : index
    %c0_20 = arith.constant 0 : index
    %18 = vector.load %arg1[%c0_19, %c34, %c0_20] : memref<2x296x64xbf16, #tpu.memory_space<vmem>>, vector<1x256x64xbf16>
    %19 = vector.shape_cast %18 : vector<1x256x64xbf16> to vector<256x64xbf16>
    %c0_21 = arith.constant 0 : index
    %c384 = arith.constant 384 : index
    %20 = vector.load %arg5[%c0_21, %c384] : memref<256x576xbf16, #tpu.memory_space<vmem>>, vector<256x64xbf16>
    tpu.vector_store %arg5[%c0_21, %c384], %19 {strides = array<i32>} : memref<256x576xbf16, #tpu.memory_space<vmem>>, vector<256x64xbf16>,
    %c0_22 = arith.constant 0 : index
    %c35 = arith.constant 35 : index
    %c0_23 = arith.constant 0 : index
    %21 = vector.load %arg1[%c0_22, %c35, %c0_23] : memref<2x296x64xbf16, #tpu.memory_space<vmem>>, vector<1x256x64xbf16>
    %22 = vector.shape_cast %21 : vector<1x256x64xbf16> to vector<256x64xbf16>
    %c0_24 = arith.constant 0 : index
    %c448 = arith.constant 448 : index
    %23 = vector.load %arg5[%c0_24, %c448] : memref<256x576xbf16, #tpu.memory_space<vmem>>, vector<256x64xbf16>
    tpu.vector_store %arg5[%c0_24, %c448], %22 {strides = array<i32>} : memref<256x576xbf16, #tpu.memory_space<vmem>>, vector<256x64xbf16>,
    %c0_25 = arith.constant 0 : index
    %c36 = arith.constant 36 : index
    %c0_26 = arith.constant 0 : index
    %24 = vector.load %arg1[%c0_25, %c36, %c0_26] : memref<2x296x64xbf16, #tpu.memory_space<vmem>>, vector<1x256x64xbf16>
    %25 = vector.shape_cast %24 : vector<1x256x64xbf16> to vector<256x64xbf16>
    %c0_27 = arith.constant 0 : index
    %c512 = arith.constant 512 : index
    %26 = vector.load %arg5[%c0_27, %c512] : memref<256x576xbf16, #tpu.memory_space<vmem>>, vector<256x64xbf16>
    tpu.vector_store %arg5[%c0_27, %c512], %25 {strides = array<i32>} : memref<256x576xbf16, #tpu.memory_space<vmem>>, vector<256x64xbf16>,
    %c0_28 = arith.constant 0 : index
    %c0_29 = arith.constant 0 : index
    %27 = vector.load %arg5[%c0_28, %c0_29] : memref<256x576xbf16, #tpu.memory_space<vmem>>, vector<256x576xbf16>
    %c0_30 = arith.constant 0 : index
    %c0_31 = arith.constant 0 : index
    %28 = vector.load %arg2[%c0_30, %c0_31] : memref<576x128xbf16, #tpu.memory_space<vmem>>, vector<576x128xbf16>
    %cst = arith.constant dense<0.000000e+00> : vector<256x128xf32>
    %29 = tpu.matmul %27, %28, %cst {dimension_numbers = #tpu.dot_dimension_numbers<[1], [0], [0], [1], [0, 0, 1, 1], [], []>} : vector<256x576xbf16>, vector<576x128xbf16>, vector<256x128xf32> -> vector<256x128xf32>
    %cst_32 = arith.constant 0.000000e+00 : f32
    %30 = vector.broadcast %cst_32 : f32 to vector<256x128xf32>
    %31 = arith.maximumf %29, %30 : vector<256x128xf32>
    %32 = arith.truncf %31 : vector<256x128xf32> to vector<256x128xbf16>
    %c0_33 = arith.constant 0 : index
    %c0_34 = arith.constant 0 : index
    %33 = vector.load %arg3[%c0_33, %c0_34] : memref<40x256xbf16, #tpu.memory_space<vmem>>, vector<40x256xbf16>
    %cst_35 = arith.constant dense<0.000000e+00> : vector<40x128xf32>
    %34 = tpu.matmul %33, %32, %cst_35 {dimension_numbers = #tpu.dot_dimension_numbers<[1], [0], [0], [1], [0, 0, 1, 1], [], []>} : vector<40x256xbf16>, vector<256x128xbf16>, vector<40x128xf32> -> vector<40x128xf32>
    %c0_36 = arith.constant 0 : index
    %c0_37 = arith.constant 0 : index
    %c0_38 = arith.constant 0 : index
    %35 = vector.load %arg4[%c0_36, %c0_37, %c0_38] : memref<2x40x128xf32, #tpu.memory_space<vmem>>, vector<1x40x128xf32>
    %36 = vector.shape_cast %35 : vector<1x40x128xf32> to vector<40x128xf32>
    %37 = vector.shape_cast %34 : vector<40x128xf32> to vector<1x40x128xf32>
    tpu.vector_store %arg4[%c0_36, %c0_37, %c0_38], %37 {strides = array<i32>} : memref<2x40x128xf32, #tpu.memory_space<vmem>>, vector<1x40x128xf32>,
    %c1_39 = arith.constant 1 : index
    %c0_40 = arith.constant 0 : index
    %c0_41 = arith.constant 0 : index
    %38 = vector.load %arg1[%c1_39, %c0_40, %c0_41] : memref<2x296x64xbf16, #tpu.memory_space<vmem>>, vector<1x256x64xbf16>
    %39 = vector.shape_cast %38 : vector<1x256x64xbf16> to vector<256x64xbf16>
    %c0_42 = arith.constant 0 : index
    %c0_43 = arith.constant 0 : index
    %40 = vector.load %arg5[%c0_42, %c0_43] : memref<256x576xbf16, #tpu.memory_space<vmem>>, vector<256x64xbf16>
    tpu.vector_store %arg5[%c0_42, %c0_43], %39 {strides = array<i32>} : memref<256x576xbf16, #tpu.memory_space<vmem>>, vector<256x64xbf16>,
    %c1_44 = arith.constant 1 : index
    %c1_45 = arith.constant 1 : index
    %c0_46 = arith.constant 0 : index
    %41 = vector.load %arg1[%c1_44, %c1_45, %c0_46] : memref<2x296x64xbf16, #tpu.memory_space<vmem>>, vector<1x256x64xbf16>
    %42 = vector.shape_cast %41 : vector<1x256x64xbf16> to vector<256x64xbf16>
    %c0_47 = arith.constant 0 : index
    %c64_48 = arith.constant 64 : index
    %43 = vector.load %arg5[%c0_47, %c64_48] : memref<256x576xbf16, #tpu.memory_space<vmem>>, vector<256x64xbf16>
    tpu.vector_store %arg5[%c0_47, %c64_48], %42 {strides = array<i32>} : memref<256x576xbf16, #tpu.memory_space<vmem>>, vector<256x64xbf16>,
    %c1_49 = arith.constant 1 : index
    %c2_50 = arith.constant 2 : index
    %c0_51 = arith.constant 0 : index
    %44 = vector.load %arg1[%c1_49, %c2_50, %c0_51] : memref<2x296x64xbf16, #tpu.memory_space<vmem>>, vector<1x256x64xbf16>
    %45 = vector.shape_cast %44 : vector<1x256x64xbf16> to vector<256x64xbf16>
    %c0_52 = arith.constant 0 : index
    %c128_53 = arith.constant 128 : index
    %46 = vector.load %arg5[%c0_52, %c128_53] : memref<256x576xbf16, #tpu.memory_space<vmem>>, vector<256x64xbf16>
    tpu.vector_store %arg5[%c0_52, %c128_53], %45 {strides = array<i32>} : memref<256x576xbf16, #tpu.memory_space<vmem>>, vector<256x64xbf16>,
    %c1_54 = arith.constant 1 : index
    %c17_55 = arith.constant 17 : index
    %c0_56 = arith.constant 0 : index
    %47 = vector.load %arg1[%c1_54, %c17_55, %c0_56] : memref<2x296x64xbf16, #tpu.memory_space<vmem>>, vector<1x256x64xbf16>
    %48 = vector.shape_cast %47 : vector<1x256x64xbf16> to vector<256x64xbf16>
    %c0_57 = arith.constant 0 : index
    %c192_58 = arith.constant 192 : index
    %49 = vector.load %arg5[%c0_57, %c192_58] : memref<256x576xbf16, #tpu.memory_space<vmem>>, vector<256x64xbf16>
    tpu.vector_store %arg5[%c0_57, %c192_58], %48 {strides = array<i32>} : memref<256x576xbf16, #tpu.memory_space<vmem>>, vector<256x64xbf16>,
    %c1_59 = arith.constant 1 : index
    %c18_60 = arith.constant 18 : index
    %c0_61 = arith.constant 0 : index
    %50 = vector.load %arg1[%c1_59, %c18_60, %c0_61] : memref<2x296x64xbf16, #tpu.memory_space<vmem>>, vector<1x256x64xbf16>
    %51 = vector.shape_cast %50 : vector<1x256x64xbf16> to vector<256x64xbf16>
    %c0_62 = arith.constant 0 : index
    %c256_63 = arith.constant 256 : index
    %52 = vector.load %arg5[%c0_62, %c256_63] : memref<256x576xbf16, #tpu.memory_space<vmem>>, vector<256x64xbf16>
    tpu.vector_store %arg5[%c0_62, %c256_63], %51 {strides = array<i32>} : memref<256x576xbf16, #tpu.memory_space<vmem>>, vector<256x64xbf16>,
    %c1_64 = arith.constant 1 : index
    %c19_65 = arith.constant 19 : index
    %c0_66 = arith.constant 0 : index
    %53 = vector.load %arg1[%c1_64, %c19_65, %c0_66] : memref<2x296x64xbf16, #tpu.memory_space<vmem>>, vector<1x256x64xbf16>
    %54 = vector.shape_cast %53 : vector<1x256x64xbf16> to vector<256x64xbf16>
    %c0_67 = arith.constant 0 : index
    %c320_68 = arith.constant 320 : index
    %55 = vector.load %arg5[%c0_67, %c320_68] : memref<256x576xbf16, #tpu.memory_space<vmem>>, vector<256x64xbf16>
    tpu.vector_store %arg5[%c0_67, %c320_68], %54 {strides = array<i32>} : memref<256x576xbf16, #tpu.memory_space<vmem>>, vector<256x64xbf16>,
    %c1_69 = arith.constant 1 : index
    %c34_70 = arith.constant 34 : index
    %c0_71 = arith.constant 0 : index
    %56 = vector.load %arg1[%c1_69, %c34_70, %c0_71] : memref<2x296x64xbf16, #tpu.memory_space<vmem>>, vector<1x256x64xbf16>
    %57 = vector.shape_cast %56 : vector<1x256x64xbf16> to vector<256x64xbf16>
    %c0_72 = arith.constant 0 : index
    %c384_73 = arith.constant 384 : index
    %58 = vector.load %arg5[%c0_72, %c384_73] : memref<256x576xbf16, #tpu.memory_space<vmem>>, vector<256x64xbf16>
    tpu.vector_store %arg5[%c0_72, %c384_73], %57 {strides = array<i32>} : memref<256x576xbf16, #tpu.memory_space<vmem>>, vector<256x64xbf16>,
    %c1_74 = arith.constant 1 : index
    %c35_75 = arith.constant 35 : index
    %c0_76 = arith.constant 0 : index
    %59 = vector.load %arg1[%c1_74, %c35_75, %c0_76] : memref<2x296x64xbf16, #tpu.memory_space<vmem>>, vector<1x256x64xbf16>
    %60 = vector.shape_cast %59 : vector<1x256x64xbf16> to vector<256x64xbf16>
    %c0_77 = arith.constant 0 : index
    %c448_78 = arith.constant 448 : index
    %61 = vector.load %arg5[%c0_77, %c448_78] : memref<256x576xbf16, #tpu.memory_space<vmem>>, vector<256x64xbf16>
    tpu.vector_store %arg5[%c0_77, %c448_78], %60 {strides = array<i32>} : memref<256x576xbf16, #tpu.memory_space<vmem>>, vector<256x64xbf16>,
    %c1_79 = arith.constant 1 : index
    %c36_80 = arith.constant 36 : index
    %c0_81 = arith.constant 0 : index
    %62 = vector.load %arg1[%c1_79, %c36_80, %c0_81] : memref<2x296x64xbf16, #tpu.memory_space<vmem>>, vector<1x256x64xbf16>
    %63 = vector.shape_cast %62 : vector<1x256x64xbf16> to vector<256x64xbf16>
    %c0_82 = arith.constant 0 : index
    %c512_83 = arith.constant 512 : index
    %64 = vector.load %arg5[%c0_82, %c512_83] : memref<256x576xbf16, #tpu.memory_space<vmem>>, vector<256x64xbf16>
    tpu.vector_store %arg5[%c0_82, %c512_83], %63 {strides = array<i32>} : memref<256x576xbf16, #tpu.memory_space<vmem>>, vector<256x64xbf16>,
    %c0_84 = arith.constant 0 : index
    %c0_85 = arith.constant 0 : index
    %65 = vector.load %arg5[%c0_84, %c0_85] : memref<256x576xbf16, #tpu.memory_space<vmem>>, vector<256x576xbf16>
    %c0_86 = arith.constant 0 : index
    %c0_87 = arith.constant 0 : index
    %66 = vector.load %arg2[%c0_86, %c0_87] : memref<576x128xbf16, #tpu.memory_space<vmem>>, vector<576x128xbf16>
    %cst_88 = arith.constant dense<0.000000e+00> : vector<256x128xf32>
    %67 = tpu.matmul %65, %66, %cst_88 {dimension_numbers = #tpu.dot_dimension_numbers<[1], [0], [0], [1], [0, 0, 1, 1], [], []>} : vector<256x576xbf16>, vector<576x128xbf16>, vector<256x128xf32> -> vector<256x128xf32>
    %cst_89 = arith.constant 0.000000e+00 : f32
    %68 = vector.broadcast %cst_89 : f32 to vector<256x128xf32>
    %69 = arith.maximumf %67, %68 : vector<256x128xf32>
    %70 = arith.truncf %69 : vector<256x128xf32> to vector<256x128xbf16>
    %c0_90 = arith.constant 0 : index
    %c0_91 = arith.constant 0 : index
    %71 = vector.load %arg3[%c0_90, %c0_91] : memref<40x256xbf16, #tpu.memory_space<vmem>>, vector<40x256xbf16>
    %cst_92 = arith.constant dense<0.000000e+00> : vector<40x128xf32>
    %72 = tpu.matmul %71, %70, %cst_92 {dimension_numbers = #tpu.dot_dimension_numbers<[1], [0], [0], [1], [0, 0, 1, 1], [], []>} : vector<40x256xbf16>, vector<256x128xbf16>, vector<40x128xf32> -> vector<40x128xf32>
    %c1_93 = arith.constant 1 : index
    %c0_94 = arith.constant 0 : index
    %c0_95 = arith.constant 0 : index
    %73 = vector.load %arg4[%c1_93, %c0_94, %c0_95] : memref<2x40x128xf32, #tpu.memory_space<vmem>>, vector<1x40x128xf32>
    %74 = vector.shape_cast %73 : vector<1x40x128xf32> to vector<40x128xf32>
    %75 = vector.shape_cast %72 : vector<40x128xf32> to vector<1x40x128xf32>
    tpu.vector_store %arg4[%c1_93, %c0_94, %c0_95], %75 {strides = array<i32>} : memref<2x40x128xf32, #tpu.memory_space<vmem>>, vector<1x40x128xf32>,
    return
  }
  func.func @transform_0(%arg0: i32) -> (i32, i32, i32) {
    %c0_i32 = arith.constant 0 : i32
    %c0_i32_0 = arith.constant 0 : i32
    %c0_i32_1 = arith.constant 0 : i32
    return %arg0, %c0_i32, %c0_i32_0 : i32, i32, i32
  }
  func.func @transform_1(%arg0: i32) -> (i32, i32) {
    %c0_i32 = arith.constant 0 : i32
    %c0_i32_0 = arith.constant 0 : i32
    %c0_i32_1 = arith.constant 0 : i32
    return %c0_i32, %c0_i32_0 : i32, i32
  }
  func.func @transform_2(%arg0: i32) -> (i32, i32) {
    %c0_i32 = arith.constant 0 : i32
    %c0_i32_0 = arith.constant 0 : i32
    %c0_i32_1 = arith.constant 0 : i32
    return %c0_i32, %c0_i32_0 : i32, i32
  }
  func.func @transform_3(%arg0: i32) -> (i32, i32, i32) {
    %c0_i32 = arith.constant 0 : i32
    %c0_i32_0 = arith.constant 0 : i32
    %c0_i32_1 = arith.constant 0 : i32
    return %arg0, %c0_i32, %c0_i32_0 : i32, i32, i32
  }
}

</mosaic_0001>

<llo_original>
// kernel: alexnet_features.1
$region0: #{alexnet_features.1}
  #allocation0 [shape = 'u32[]', space=smem, size = 0x4, offset = 0x4, fixed_abs, tag = 'smem constant byte address 0x4 - core index']
  #allocation1 [shape = 'u32[144,128]{1,0:T(1,128)}', space=vmem, size = 0x12000, scoped, tag = 'internal scratch']
  #allocation2 [shape = 'bf16[256,576]{1,0:T(16,128)(2,1)}', space=vmem, size = 0x50000, scoped, tag = 'scratch operand']
  %s0 = inlined_call_operand.vmem [shape: bf16[4,296,64], index: 0, kind: input, shape index: {}]
  %s1 = inlined_call_operand.vmem [shape: bf16[576,128], index: 1, kind: input, shape index: {}]
  %s2 = inlined_call_operand.vmem [shape: bf16[40,256], index: 2, kind: input, shape index: {}]
  %s3 = inlined_call_operand.vmem [shape: f32[4,40,128], index: 3, kind: output, shape index: {}]
  %s4 = sld [smem:[#allocation0]]
  $region45: #{alexnet_features.1} parent=0
    _
  %s6 = ssub.s32 1, %s4
  %s7 = scalar_select 0, %s6, %s4
  loop: start=0, step=1, limit=4
  $region2: #{alexnet_features.1} parent=0 // loop_pre_header
    _
  $region3: #{alexnet_features.1} parent=0 // loop_header
    %s9 = sphi 0, %s13
    %p10 = scmp.ge.s32.totalorder %s9, 4
    %s19 = sphi 0, %s21
    %s22 = sphi 0, %s19
    %s23 = sphi 0, %s22
    %s39 = sphi 0, %s23
    %s43 = sphi 0, %s43
    %s45 = sphi 0, %s43
    %s46 = sphi 0, %s45
    %s60 = sphi 0, %s46
    %s64 = sphi 0, %s64
    %s66 = sphi 0, %s64
    %s67 = sphi 0, %s66
    %s81 = sphi 0, %s67
    %s87 = sphi 0, %s89
    %s90 = sphi 0, %s87
    %s91 = sphi 0, %s90
    %s107 = sphi 0, %s91
  $region4: #{alexnet_features.1} parent=0 // loop_header_branch
    %12 = sbr.rel (%p10) target = $region8
  $region5: #{alexnet_features.1} parent=0 // loop_body
    %s14 = ssub.s32 %s9, 1
    %s15 = ssub.s32 %s9, 2
    %s16 = sadd.s32 %s9, 1
    %s17 = ssub.s32 %s9, %s16
    %p18 = scmp.eq.s32.totalorder %s17, 0
    %s20 = sadd.s32 %s19, 1
    %s21 = scalar_select %p18, %s19, %s20
    %p24 = pneg %p18
    %p25 = scmp.eq.s32.totalorder %s9, 1
    %p26 = por %p24, %p25
    %p27 = scmp.ne.s32.totalorder %s19, %s22
    %p28 = scmp.eq.s32.totalorder %s9, 0
    %p29 = por %p27, %p28
    %p30 = scmp.ne.s32.totalorder %s19, %s22
    %p31 = scmp.eq.s32.totalorder %s14, 1
    %p32 = por %p30, %p31
    %p33 = scmp.ne.s32.totalorder %s22, %s23
    %p34 = scmp.eq.s32.totalorder %s14, 0
    %p35 = por %p33, %p34
    %p36 = scmp.ne.s32.totalorder %s22, %s23
    %p37 = scmp.eq.s32.totalorder %s15, 1
    %p38 = por %p36, %p37
    %p40 = scmp.ne.s32.totalorder %s23, %s39
    %p41 = scmp.eq.s32.totalorder %s15, 0
    %p42 = por %p40, %p41
    %s44 = sadd.s32 %s43, 1
    %p47 = scmp.eq.s32.totalorder %s9, 1
    %p48 = scmp.ne.s32.totalorder %s43, %s45
    %p49 = scmp.eq.s32.totalorder %s9, 0
    %p50 = por %p48, %p49
    %p51 = scmp.ne.s32.totalorder %s43, %s45
    %p52 = scmp.eq.s32.totalorder %s14, 1
    %p53 = por %p51, %p52
    %p54 = scmp.ne.s32.totalorder %s45, %s46
    %p55 = scmp.eq.s32.totalorder %s14, 0
    %p56 = por %p54, %p55
    %p57 = scmp.ne.s32.totalorder %s45, %s46
    %p58 = scmp.eq.s32.totalorder %s15, 1
    %p59 = por %p57, %p58
    %p61 = scmp.ne.s32.totalorder %s46, %s60
    %p62 = scmp.eq.s32.totalorder %s15, 0
    %p63 = por %p61, %p62
    %s65 = sadd.s32 %s64, 1
    %p68 = scmp.eq.s32.totalorder %s9, 1
    %p69 = scmp.ne.s32.totalorder %s64, %s66
    %p70 = scmp.eq.s32.totalorder %s9, 0
    %p71 = por %p69, %p70
    %p72 = scmp.ne.s32.totalorder %s64, %s66
    %p73 = scmp.eq.s32.totalorder %s14, 1
    %p74 = por %p72, %p73
    %p75 = scmp.ne.s32.totalorder %s66, %s67
    %p76 = scmp.eq.s32.totalorder %s14, 0
    %p77 = por %p75, %p76
    %p78 = scmp.ne.s32.totalorder %s66, %s67
    %p79 = scmp.eq.s32.totalorder %s15, 1
    %p80 = por %p78, %p79
    %p82 = scmp.ne.s32.totalorder %s67, %s81
    %p83 = scmp.eq.s32.totalorder %s15, 0
    %p84 = por %p82, %p83
    %s85 = ssub.s32 %s9, %s16
    %p86 = scmp.eq.s32.totalorder %s85, 0
    %s88 = sadd.s32 %s87, 1
    %s89 = scalar_select %p86, %s87, %s88
    %p92 = pneg %p86
    %p93 = scmp.eq.s32.totalorder %s9, 1
    %p94 = por %p92, %p93
    %p95 = scmp.ne.s32.totalorder %s87, %s90
    %p96 = scmp.eq.s32.totalorder %s9, 0
    %p97 = por %p95, %p96
    %p98 = scmp.ne.s32.totalorder %s87, %s90
    %p99 = scmp.eq.s32.totalorder %s14, 1
    %p100 = por %p98, %p99
    %p101 = scmp.ne.s32.totalorder %s90, %s91
    %p102 = scmp.eq.s32.totalorder %s14, 0
    %p103 = por %p101, %p102
    %p104 = scmp.ne.s32.totalorder %s90, %s91
    %p105 = scmp.eq.s32.totalorder %s15, 1
    %p106 = por %p104, %p105
    %p108 = scmp.ne.s32.totalorder %s91, %s107
    %p109 = scmp.eq.s32.totalorder %s15, 0
    %p110 = por %p108, %p109
    %p111 = scmp.le.s32.totalorder 1, %s9
    %p112 = scmp.lt.s32.totalorder %s9, 3
    %p113 = pnand %p111, %p112
    %p114 = pneg %p113
    // Predicated region
    $region9: #{alexnet_features.1} parent=5 // pred_check
      _
    $region10: #{alexnet_features.1} parent=5 // pred_check_branch
      %116 = sbr.rel (%p113) target = $region12
    $region11: #{alexnet_features.1} parent=5 // pred_region
      %s117 = ssub.s32 %s9, 1
      // Predicated region
      $region13: #{alexnet_features.1} parent=11 // pred_check
        %p118 = pneg %p56
      $region14: #{alexnet_features.1} parent=11 // pred_check_branch
        %120 = sbr.rel (%p118) target = $region16
      $region15: #{alexnet_features.1} parent=11 // pred_region
        _
      $region16: #{alexnet_features.1} parent=11 // pred_fallthru
        _
      // Predicated region
      $region17: #{alexnet_features.1} parent=11 // pred_check
        %p121 = pneg %p77
      $region18: #{alexnet_features.1} parent=11 // pred_check_branch
        %123 = sbr.rel (%p121) target = $region20
      $region19: #{alexnet_features.1} parent=11 // pred_region
        _
      $region20: #{alexnet_features.1} parent=11 // pred_fallthru
        _
    $region12: #{alexnet_features.1} parent=5 // pred_fallthru
      _
    %p124 = scmp.lt.s32.totalorder %s9, 2
    // Predicated region
    $region21: #{alexnet_features.1} parent=5 // pred_check
      %p125 = pneg %p124
    $region22: #{alexnet_features.1} parent=5 // pred_check_branch
      %127 = sbr.rel (%p125) target = $region24
    $region23: #{alexnet_features.1} parent=5 // pred_region
      // Predicated region
      $region25: #{alexnet_features.1} parent=23 // pred_check
        %p128 = pneg %p29
      $region26: #{alexnet_features.1} parent=23 // pred_check_branch
        %130 = sbr.rel (%p128) target = $region28
      $region27: #{alexnet_features.1} parent=23 // pred_region
        %s131 = smul.u32 2, %s9
        %p132 = scmp.lt.s32.totalorder %s131, 3
        %s133 = scalar_select %p132, %s131, 3
        %s134 = smul.addr %s133, 37
        %s135 = smul.addr %s134, 4
        %s136 = scalar_lea.vmem %s0, %s135
        %s137 = smul.u32 2, %s9
      $region28: #{alexnet_features.1} parent=23 // pred_fallthru
        _
    $region24: #{alexnet_features.1} parent=5 // pred_fallthru
      _
    %p138 = scmp.le.s32.totalorder 1, %s9
    %p139 = scmp.lt.s32.totalorder %s9, 3
    %p140 = pnand %p138, %p139
    %p141 = pneg %p140
    // Predicated region
    $region29: #{alexnet_features.1} parent=5 // pred_check
      _
    $region30: #{alexnet_features.1} parent=5 // pred_check_branch
      %143 = sbr.rel (%p140) target = $region32
    $region31: #{alexnet_features.1} parent=5 // pred_region
      %s144 = ssub.s32 %s9, 1
      %s145 = smul.u32 2, %s14
      %p146 = scmp.lt.s32.totalorder %s145, 3
      %s147 = scalar_select %p146, %s145, 3
      %s148 = smul.addr %s147, 37
      %s149 = smul.addr %s148, 4
      %s150 = scalar_lea.vmem %s0, %s149
      %p151 = pneg %p35
      %p152 = pneg %p32
      %p153 = pneg %p56
      %p154 = pneg %p53
      %p155 = pneg %p77
      %p156 = pneg %p74
      %p157 = pneg %p103
      %p158 = pneg %p100
      %s159 = smul.u32 2, %s14
      %p160 = scmp.lt.s32.totalorder %s159, 3
      %s161 = scalar_select %p160, %s159, 3
      %s162 = smul.addr %s161, 5
      %s163 = smul.addr %s162, 8
      %s164 = scalar_lea.vmem %s3, %s163
      %s165 = smul.u32 2, %s14
      %p166 = scmp.lt.s32.totalorder %s165, 3
      %s167 = scalar_select %p166, %s165, 3
      %s168 = smul.addr %s167, 37
      %s169 = smul.addr %s168, 4
      %s170 = scalar_lea.vmem %s0, %s169
      %s171 = smul.u32 2, %s14
      %s172 = smul.u32 2, %s14
      %p173 = scmp.lt.s32.totalorder %s172, 3
      %s174 = scalar_select %p173, %s172, 3
      %s175 = smul.addr %s174, 5
      %s176 = smul.addr %s175, 8
      %s177 = scalar_lea.vmem %s3, %s176
      %s178 = smul.u32 2, %s14
      %v180 = vld [vmem:[%s170] sm:$0xf]
      %v181 = vld [vmem:[%s170 + $0x4] sm:$0xf]
      %v182 = vld [vmem:[%s170 + $0x8] sm:$0xf]
      %v183 = vld [vmem:[%s170 + $0xc] sm:$0xf]
      %v184 = vld [vmem:[%s170 + $0x10] sm:$0xf]
      %v185 = vld [vmem:[%s170 + $0x14] sm:$0xf]
      %v186 = vld [vmem:[%s170 + $0x18] sm:$0xf]
      %v187 = vld [vmem:[%s170 + $0x1c] sm:$0xf]
      %v188 = vld [vmem:[%s170 + $0x20] sm:$0xf]
      %v189 = vld [vmem:[%s170 + $0x24] sm:$0xf]
      %v190 = vld [vmem:[%s170 + $0x28] sm:$0xf]
      %v191 = vld [vmem:[%s170 + $0x2c] sm:$0xf]
      %v192 = vld [vmem:[%s170 + $0x30] sm:$0xf]
      %v193 = vld [vmem:[%s170 + $0x34] sm:$0xf]
      %v194 = vld [vmem:[%s170 + $0x38] sm:$0xf]
      %v195 = vld [vmem:[%s170 + $0x3c] sm:$0xf]
      %v196 = vld [vmem:[%s170 + $0x40] sm:$0xf]
      %v197 = vld [vmem:[%s170 + $0x44] sm:$0xf]
      %v198 = vld [vmem:[%s170 + $0x48] sm:$0xf]
      %v199 = vld [vmem:[%s170 + $0x4c] sm:$0xf]
      %v200 = vld [vmem:[%s170 + $0x50] sm:$0xf]
      %v201 = vld [vmem:[%s170 + $0x54] sm:$0xf]
      %v202 = vld [vmem:[%s170 + $0x58] sm:$0xf]
      %v203 = vld [vmem:[%s170 + $0x5c] sm:$0xf]
      %v204 = vld [vmem:[%s170 + $0x60] sm:$0xf]
      %v205 = vld [vmem:[%s170 + $0x64] sm:$0xf]
      %v206 = vld [vmem:[%s170 + $0x68] sm:$0xf]
      %v207 = vld [vmem:[%s170 + $0x6c] sm:$0xf]
      %v208 = vld [vmem:[%s170 + $0x70] sm:$0xf]
      %v209 = vld [vmem:[%s170 + $0x74] sm:$0xf]
      %v210 = vld [vmem:[%s170 + $0x78] sm:$0xf]
      %v211 = vld [vmem:[%s170 + $0x7c] sm:$0xf]
      %v244 = vunpack.c.l.b16 %v180
      %v245 = vunpack.c.l.b16 %v181
      %v246 = vunpack.c.l.b16 %v182
      %v247 = vunpack.c.l.b16 %v183
      %v248 = vunpack.c.l.b16 %v184
      %v249 = vunpack.c.l.b16 %v185
      %v250 = vunpack.c.l.b16 %v186
      %v251 = vunpack.c.l.b16 %v187
      %v252 = vunpack.c.l.b16 %v188
      %v253 = vunpack.c.l.b16 %v189
      %v254 = vunpack.c.l.b16 %v190
      %v255 = vunpack.c.l.b16 %v191
      %v256 = vunpack.c.l.b16 %v192
      %v257 = vunpack.c.l.b16 %v193
      %v258 = vunpack.c.l.b16 %v194
      %v259 = vunpack.c.l.b16 %v195
      %v260 = vunpack.c.l.b16 %v196
      %v261 = vunpack.c.l.b16 %v197
      %v262 = vunpack.c.l.b16 %v198
      %v263 = vunpack.c.l.b16 %v199
      %v264 = vunpack.c.l.b16 %v200
      %v265 = vunpack.c.l.b16 %v201
      %v266 = vunpack.c.l.b16 %v202
      %v267 = vunpack.c.l.b16 %v203
      %v268 = vunpack.c.l.b16 %v204
      %v269 = vunpack.c.l.b16 %v205
      %v270 = vunpack.c.l.b16 %v206
      %v271 = vunpack.c.l.b16 %v207
      %v272 = vunpack.c.l.b16 %v208
      %v273 = vunpack.c.l.b16 %v209
      %v274 = vunpack.c.l.b16 %v210
      %v275 = vunpack.c.l.b16 %v211
      %v276 = vpack.c.b16 %v245, %v244
      %v277 = vpack.c.b16 %v247, %v246
      %v278 = vpack.c.b16 %v249, %v248
      %v279 = vpack.c.b16 %v251, %v250
      %v280 = vpack.c.b16 %v253, %v252
      %v281 = vpack.c.b16 %v255, %v254
      %v282 = vpack.c.b16 %v257, %v256
      %v283 = vpack.c.b16 %v259, %v258
      %v284 = vpack.c.b16 %v261, %v260
      %v285 = vpack.c.b16 %v263, %v262
      %v286 = vpack.c.b16 %v265, %v264
      %v287 = vpack.c.b16 %v267, %v266
      %v288 = vpack.c.b16 %v269, %v268
      %v289 = vpack.c.b16 %v271, %v270
      %v290 = vpack.c.b16 %v273, %v272
      %v291 = vpack.c.b16 %v275, %v274
      %vm308 = vcmask 523264
      %309 = vst.msk [vmem:[#allocation2] sm:$0xff] %vm308, %v276
      %310 = vst.msk [vmem:[#allocation2 + $0x28] sm:$0xff] %vm308, %v277
      %311 = vst.msk [vmem:[#allocation2 + $0x50] sm:$0xff] %vm308, %v278
      %312 = vst.msk [vmem:[#allocation2 + $0x78] sm:$0xff] %vm308, %v279
      %313 = vst.msk [vmem:[#allocation2 + $0xa0] sm:$0xff] %vm308, %v280
      %314 = vst.msk [vmem:[#allocation2 + $0xc8] sm:$0xff] %vm308, %v281
      %315 = vst.msk [vmem:[#allocation2 + $0xf0] sm:$0xff] %vm308, %v282
      %316 = vst.msk [vmem:[#allocation2 + $0x118] sm:$0xff] %vm308, %v283
      %317 = vst.msk [vmem:[#allocation2 + $0x140] sm:$0xff] %vm308, %v284
      %318 = vst.msk [vmem:[#allocation2 + $0x168] sm:$0xff] %vm308, %v285
      %319 = vst.msk [vmem:[#allocation2 + $0x190] sm:$0xff] %vm308, %v286
      %320 = vst.msk [vmem:[#allocation2 + $0x1b8] sm:$0xff] %vm308, %v287
      %321 = vst.msk [vmem:[#allocation2 + $0x1e0] sm:$0xff] %vm308, %v288
      %322 = vst.msk [vmem:[#allocation2 + $0x208] sm:$0xff] %vm308, %v289
      %323 = vst.msk [vmem:[#allocation2 + $0x230] sm:$0xff] %vm308, %v290
      %324 = vst.msk [vmem:[#allocation2 + $0x258] sm:$0xff] %vm308, %v291
      %v325 = vld [vmem:[%s170] sm:$0xf]
      %v326 = vld [vmem:[%s170 + $0x4] sm:$0xf]
      %v327 = vld [vmem:[%s170 + $0x8] sm:$0xf]
      %v328 = vld [vmem:[%s170 + $0xc] sm:$0xf]
      %v329 = vld [vmem:[%s170 + $0x10] sm:$0xf]
      %v330 = vld [vmem:[%s170 + $0x14] sm:$0xf]
      %v331 = vld [vmem:[%s170 + $0x18] sm:$0xf]
      %v332 = vld [vmem:[%s170 + $0x1c] sm:$0xf]
      %v333 = vld [vmem:[%s170 + $0x20] sm:$0xf]
      %v334 = vld [vmem:[%s170 + $0x24] sm:$0xf]
      %v335 = vld [vmem:[%s170 + $0x28] sm:$0xf]
      %v336 = vld [vmem:[%s170 + $0x2c] sm:$0xf]
      %v337 = vld [vmem:[%s170 + $0x30] sm:$0xf]
      %v338 = vld [vmem:[%s170 + $0x34] sm:$0xf]
      %v339 = vld [vmem:[%s170 + $0x38] sm:$0xf]
      %v340 = vld [vmem:[%s170 + $0x3c] sm:$0xf]
      %v341 = vld [vmem:[%s170 + $0x40] sm:$0xf]
      %v342 = vld [vmem:[%s170 + $0x44] sm:$0xf]
      %v343 = vld [vmem:[%s170 + $0x48] sm:$0xf]
      %v344 = vld [vmem:[%s170 + $0x4c] sm:$0xf]
      %v345 = vld [vmem:[%s170 + $0x50] sm:$0xf]
      %v346 = vld [vmem:[%s170 + $0x54] sm:$0xf]
      %v347 = vld [vmem:[%s170 + $0x58] sm:$0xf]
      %v348 = vld [vmem:[%s170 + $0x5c] sm:$0xf]
      %v349 = vld [vmem:[%s170 + $0x60] sm:$0xf]
      %v350 = vld [vmem:[%s170 + $0x64] sm:$0xf]
      %v351 = vld [vmem:[%s170 + $0x68] sm:$0xf]
      %v352 = vld [vmem:[%s170 + $0x6c] sm:$0xf]
      %v353 = vld [vmem:[%s170 + $0x70] sm:$0xf]
      %v354 = vld [vmem:[%s170 + $0x74] sm:$0xf]
      %v355 = vld [vmem:[%s170 + $0x78] sm:$0xf]
      %v356 = vld [vmem:[%s170 + $0x7c] sm:$0xf]
      %v357 = vld [vmem:[%s170 + $0x80] sm:$0x1]
      %v391 = vunpack.c.l.b16 %v325
      %v392 = vunpack.c.l.b16 %v326
      %v393 = vunpack.c.l.b16 %v327
      %v394 = vunpack.c.l.b16 %v328
      %v395 = vunpack.c.l.b16 %v329
      %v396 = vunpack.c.l.b16 %v330
      %v397 = vunpack.c.l.b16 %v331
      %v398 = vunpack.c.l.b16 %v332
      %v399 = vunpack.c.l.b16 %v333
      %v400 = vunpack.c.l.b16 %v334
      %v401 = vunpack.c.l.b16 %v335
      %v402 = vunpack.c.l.b16 %v336
      %v403 = vunpack.c.l.b16 %v337
      %v404 = vunpack.c.l.b16 %v338
      %v405 = vunpack.c.l.b16 %v339
      %v406 = vunpack.c.l.b16 %v340
      %v407 = vunpack.c.l.b16 %v341
      %v408 = vunpack.c.l.b16 %v342
      %v409 = vunpack.c.l.b16 %v343
      %v410 = vunpack.c.l.b16 %v344
      %v411 = vunpack.c.l.b16 %v345
      %v412 = vunpack.c.l.b16 %v346
      %v413 = vunpack.c.l.b16 %v347
      %v414 = vunpack.c.l.b16 %v348
      %v415 = vunpack.c.l.b16 %v349
      %v416 = vunpack.c.l.b16 %v350
      %v417 = vunpack.c.l.b16 %v351
      %v418 = vunpack.c.l.b16 %v352
      %v419 = vunpack.c.l.b16 %v353
      %v420 = vunpack.c.l.b16 %v354
      %v421 = vunpack.c.l.b16 %v355
      %v422 = vunpack.c.l.b16 %v356
      %v423 = vunpack.c.l.b16 %v357
      %v424 = vpack.c.b16 %v392, %v391
      %v425 = vpack.c.b16 %v394, %v393
      %v426 = vpack.c.b16 %v396, %v395
      %v427 = vpack.c.b16 %v398, %v397
      %v428 = vpack.c.b16 %v400, %v399
      %v429 = vpack.c.b16 %v402, %v401
      %v430 = vpack.c.b16 %v404, %v403
      %v431 = vpack.c.b16 %v406, %v405
      %v432 = vpack.c.b16 %v408, %v407
      %v433 = vpack.c.b16 %v410, %v409
      %v434 = vpack.c.b16 %v412, %v411
      %v435 = vpack.c.b16 %v414, %v413
      %v436 = vpack.c.b16 %v416, %v415
      %v437 = vpack.c.b16 %v418, %v417
      %v438 = vpack.c.b16 %v420, %v419
      %v439 = vpack.c.b16 %v422, %v421
      %v440 = vpack.c.b16 %v423, %v423
      %vm441 = vsmask.f32 7424
      %v443 = vshrl.u32 %v424, 16
      %v445 = vshll.u32 %v424, 16
      %v447 = vrot.slane %v445, 1
      %v448 = vor.u32 %v443, %v447
      %v450 = vshll.u32 %v425, 16
      %v452 = vrot.slane %v450, 1
      %v453 = vsel %vm441, %v448, %v452
      %v454 = vshrl.u32 %v425, 16
      %v456 = vor.u32 %v454, %v452
      %v458 = vshll.u32 %v426, 16
      %v460 = vrot.slane %v458, 1
      %v461 = vsel %vm441, %v456, %v460
      %v462 = vshrl.u32 %v426, 16
      %v464 = vor.u32 %v462, %v460
      %v466 = vshll.u32 %v427, 16
      %v468 = vrot.slane %v466, 1
      %v469 = vsel %vm441, %v464, %v468
      %v470 = vshrl.u32 %v427, 16
      %v472 = vor.u32 %v470, %v468
      %v474 = vshll.u32 %v428, 16
      %v476 = vrot.slane %v474, 1
      %v477 = vsel %vm441, %v472, %v476
      %v478 = vshrl.u32 %v428, 16
      %v480 = vor.u32 %v478, %v476
      %v482 = vshll.u32 %v429, 16
      %v484 = vrot.slane %v482, 1
      %v485 = vsel %vm441, %v480, %v484
      %v486 = vshrl.u32 %v429, 16
      %v488 = vor.u32 %v486, %v484
      %v490 = vshll.u32 %v430, 16
      %v492 = vrot.slane %v490, 1
      %v493 = vsel %vm441, %v488, %v492
      %v494 = vshrl.u32 %v430, 16
      %v496 = vor.u32 %v494, %v492
      %v498 = vshll.u32 %v431, 16
      %v500 = vrot.slane %v498, 1
      %v501 = vsel %vm441, %v496, %v500
      %v502 = vshrl.u32 %v431, 16
      %v504 = vor.u32 %v502, %v500
      %v506 = vshll.u32 %v432, 16
      %v508 = vrot.slane %v506, 1
      %v509 = vsel %vm441, %v504, %v508
      %v510 = vshrl.u32 %v432, 16
      %v512 = vor.u32 %v510, %v508
      %v514 = vshll.u32 %v433, 16
      %v516 = vrot.slane %v514, 1
      %v517 = vsel %vm441, %v512, %v516
      %v518 = vshrl.u32 %v433, 16
      %v520 = vor.u32 %v518, %v516
      %v522 = vshll.u32 %v434, 16
      %v524 = vrot.slane %v522, 1
      %v525 = vsel %vm441, %v520, %v524
      %v526 = vshrl.u32 %v434, 16
      %v528 = vor.u32 %v526, %v524
      %v530 = vshll.u32 %v435, 16
      %v532 = vrot.slane %v530, 1
      %v533 = vsel %vm441, %v528, %v532
      %v534 = vshrl.u32 %v435, 16
      %v536 = vor.u32 %v534, %v532
      %v538 = vshll.u32 %v436, 16
      %v540 = vrot.slane %v538, 1
      %v541 = vsel %vm441, %v536, %v540
      %v542 = vshrl.u32 %v436, 16
      %v544 = vor.u32 %v542, %v540
      %v546 = vshll.u32 %v437, 16
      %v548 = vrot.slane %v546, 1
      %v549 = vsel %vm441, %v544, %v548
      %v550 = vshrl.u32 %v437, 16
      %v552 = vor.u32 %v550, %v548
      %v554 = vshll.u32 %v438, 16
      %v556 = vrot.slane %v554, 1
      %v557 = vsel %vm441, %v552, %v556
      %v558 = vshrl.u32 %v438, 16
      %v560 = vor.u32 %v558, %v556
      %v562 = vshll.u32 %v439, 16
      %v564 = vrot.slane %v562, 1
      %v565 = vsel %vm441, %v560, %v564
      %v566 = vshrl.u32 %v439, 16
      %v568 = vor.u32 %v566, %v564
      %v570 = vshll.u32 %v440, 16
      %v572 = vrot.slane %v570, 1
      %v573 = vsel %vm441, %v568, %v572
      %574 = vrot.lane.b32.xlu0 %v453, 64
      %v575 = vpop.permute.xlu0 %574
      %576 = vrot.lane.b32.xlu0 %v461, 64
      %v577 = vpop.permute.xlu0 %576
      %578 = vrot.lane.b32.xlu0 %v469, 64
      %v579 = vpop.permute.xlu0 %578
      %580 = vrot.lane.b32.xlu0 %v477, 64
      %v581 = vpop.permute.xlu0 %580
      %582 = vrot.lane.b32.xlu0 %v485, 64
      %v583 = vpop.permute.xlu0 %582
      %584 = vrot.lane.b32.xlu0 %v493, 64
      %v585 = vpop.permute.xlu0 %584
      %586 = vrot.lane.b32.xlu0 %v501, 64
      %v587 = vpop.permute.xlu0 %586
      %588 = vrot.lane.b32.xlu0 %v509, 64
      %v589 = vpop.permute.xlu0 %588
      %590 = vrot.lane.b32.xlu0 %v517, 64
      %v591 = vpop.permute.xlu0 %590
      %592 = vrot.lane.b32.xlu0 %v525, 64
      %v593 = vpop.permute.xlu0 %592
      %594 = vrot.lane.b32.xlu0 %v533, 64
      %v595 = vpop.permute.xlu0 %594
      %596 = vrot.lane.b32.xlu0 %v541, 64
      %v597 = vpop.permute.xlu0 %596
      %598 = vrot.lane.b32.xlu0 %v549, 64
      %v599 = vpop.permute.xlu0 %598
      %600 = vrot.lane.b32.xlu0 %v557, 64
      %v601 = vpop.permute.xlu0 %600
      %602 = vrot.lane.b32.xlu0 %v565, 64
      %v603 = vpop.permute.xlu0 %602
      %604 = vrot.lane.b32.xlu0 %v573, 64
      %v605 = vpop.permute.xlu0 %604
      %vm622 = vcmask 1048064
      %623 = vst.msk [vmem:[#allocation2] sm:$0xff] %vm622, %v575
      %624 = vst.msk [vmem:[#allocation2 + $0x28] sm:$0xff] %vm622, %v577
      %625 = vst.msk [vmem:[#allocation2 + $0x50] sm:$0xff] %vm622, %v579
      %626 = vst.msk [vmem:[#allocation2 + $0x78] sm:$0xff] %vm622, %v581
      %627 = vst.msk [vmem:[#allocation2 + $0xa0] sm:$0xff] %vm622, %v583
      %628 = vst.msk [vmem:[#allocation2 + $0xc8] sm:$0xff] %vm622, %v585
      %629 = vst.msk [vmem:[#allocation2 + $0xf0] sm:$0xff] %vm622, %v587
      %630 = vst.msk [vmem:[#allocation2 + $0x118] sm:$0xff] %vm622, %v589
      %631 = vst.msk [vmem:[#allocation2 + $0x140] sm:$0xff] %vm622, %v591
      %632 = vst.msk [vmem:[#allocation2 + $0x168] sm:$0xff] %vm622, %v593
      %633 = vst.msk [vmem:[#allocation2 + $0x190] sm:$0xff] %vm622, %v595
      %634 = vst.msk [vmem:[#allocation2 + $0x1b8] sm:$0xff] %vm622, %v597
      %635 = vst.msk [vmem:[#allocation2 + $0x1e0] sm:$0xff] %vm622, %v599
      %636 = vst.msk [vmem:[#allocation2 + $0x208] sm:$0xff] %vm622, %v601
      %637 = vst.msk [vmem:[#allocation2 + $0x230] sm:$0xff] %vm622, %v603
      %638 = vst.msk [vmem:[#allocation2 + $0x258] sm:$0xff] %vm622, %v605
      %v639 = vld [vmem:[%s170] sm:$0xe]
      %v640 = vld [vmem:[%s170 + $0x4] sm:$0xf]
      %v641 = vld [vmem:[%s170 + $0x8] sm:$0xf]
      %v642 = vld [vmem:[%s170 + $0xc] sm:$0xf]
      %v643 = vld [vmem:[%s170 + $0x10] sm:$0xf]
      %v644 = vld [vmem:[%s170 + $0x14] sm:$0xf]
      %v645 = vld [vmem:[%s170 + $0x18] sm:$0xf]
      %v646 = vld [vmem:[%s170 + $0x1c] sm:$0xf]
      %v647 = vld [vmem:[%s170 + $0x20] sm:$0xf]
      %v648 = vld [vmem:[%s170 + $0x24] sm:$0xf]
      %v649 = vld [vmem:[%s170 + $0x28] sm:$0xf]
      %v650 = vld [vmem:[%s170 + $0x2c] sm:$0xf]
      %v651 = vld [vmem:[%s170 + $0x30] sm:$0xf]
      %v652 = vld [vmem:[%s170 + $0x34] sm:$0xf]
      %v653 = vld [vmem:[%s170 + $0x38] sm:$0xf]
      %v654 = vld [vmem:[%s170 + $0x3c] sm:$0xf]
      %v655 = vld [vmem:[%s170 + $0x40] sm:$0xf]
      %v656 = vld [vmem:[%s170 + $0x44] sm:$0xf]
      %v657 = vld [vmem:[%s170 + $0x48] sm:$0xf]
      %v658 = vld [vmem:[%s170 + $0x4c] sm:$0xf]
      %v659 = vld [vmem:[%s170 + $0x50] sm:$0xf]
      %v660 = vld [vmem:[%s170 + $0x54] sm:$0xf]
      %v661 = vld [vmem:[%s170 + $0x58] sm:$0xf]
      %v662 = vld [vmem:[%s170 + $0x5c] sm:$0xf]
      %v663 = vld [vmem:[%s170 + $0x60] sm:$0xf]
      %v664 = vld [vmem:[%s170 + $0x64] sm:$0xf]
      %v665 = vld [vmem:[%s170 + $0x68] sm:$0xf]
      %v666 = vld [vmem:[%s170 + $0x6c] sm:$0xf]
      %v667 = vld [vmem:[%s170 + $0x70] sm:$0xf]
      %v668 = vld [vmem:[%s170 + $0x74] sm:$0xf]
      %v669 = vld [vmem:[%s170 + $0x78] sm:$0xf]
      %v670 = vld [vmem:[%s170 + $0x7c] sm:$0xf]
      %v671 = vld [vmem:[%s170 + $0x80] sm:$0x1]
      %v705 = vunpack.c.l.b16 %v639
      %v706 = vunpack.c.l.b16 %v640
      %v707 = vunpack.c.l.b16 %v641
      %v708 = vunpack.c.l.b16 %v642
      %v709 = vunpack.c.l.b16 %v643
      %v710 = vunpack.c.l.b16 %v644
      %v711 = vunpack.c.l.b16 %v645
      %v712 = vunpack.c.l.b16 %v646
      %v713 = vunpack.c.l.b16 %v647
      %v714 = vunpack.c.l.b16 %v648
      %v715 = vunpack.c.l.b16 %v649
      %v716 = vunpack.c.l.b16 %v650
      %v717 = vunpack.c.l.b16 %v651
      %v718 = vunpack.c.l.b16 %v652
      %v719 = vunpack.c.l.b16 %v653
      %v720 = vunpack.c.l.b16 %v654
      %v721 = vunpack.c.l.b16 %v655
      %v722 = vunpack.c.l.b16 %v656
      %v723 = vunpack.c.l.b16 %v657
      %v724 = vunpack.c.l.b16 %v658
      %v725 = vunpack.c.l.b16 %v659
      %v726 = vunpack.c.l.b16 %v660
      %v727 = vunpack.c.l.b16 %v661
      %v728 = vunpack.c.l.b16 %v662
      %v729 = vunpack.c.l.b16 %v663
      %v730 = vunpack.c.l.b16 %v664
      %v731 = vunpack.c.l.b16 %v665
      %v732 = vunpack.c.l.b16 %v666
      %v733 = vunpack.c.l.b16 %v667
      %v734 = vunpack.c.l.b16 %v668
      %v735 = vunpack.c.l.b16 %v669
      %v736 = vunpack.c.l.b16 %v670
      %v737 = vunpack.c.l.b16 %v671
      %v738 = vpack.c.b16 %v706, %v705
      %v739 = vpack.c.b16 %v708, %v707
      %v740 = vpack.c.b16 %v710, %v709
      %v741 = vpack.c.b16 %v712, %v711
      %v742 = vpack.c.b16 %v714, %v713
      %v743 = vpack.c.b16 %v716, %v715
      %v744 = vpack.c.b16 %v718, %v717
      %v745 = vpack.c.b16 %v720, %v719
      %v746 = vpack.c.b16 %v722, %v721
      %v747 = vpack.c.b16 %v724, %v723
      %v748 = vpack.c.b16 %v726, %v725
      %v749 = vpack.c.b16 %v728, %v727
      %v750 = vpack.c.b16 %v730, %v729
      %v751 = vpack.c.b16 %v732, %v731
      %v752 = vpack.c.b16 %v734, %v733
      %v753 = vpack.c.b16 %v736, %v735
      %v754 = vpack.c.b16 %v737, %v737
      %vm755 = vcmask 1046528
      %v756 = vrot.slane %v738, 1
      %v757 = vrot.slane %v739, 1
      %v758 = vsel %vm755, %v756, %v757
      %v759 = vrot.slane %v740, 1
      %v760 = vsel %vm755, %v757, %v759
      %v761 = vrot.slane %v741, 1
      %v762 = vsel %vm755, %v759, %v761
      %v763 = vrot.slane %v742, 1
      %v764 = vsel %vm755, %v761, %v763
      %v765 = vrot.slane %v743, 1
      %v766 = vsel %vm755, %v763, %v765
      %v767 = vrot.slane %v744, 1
      %v768 = vsel %vm755, %v765, %v767
      %v769 = vrot.slane %v745, 1
      %v770 = vsel %vm755, %v767, %v769
      %v771 = vrot.slane %v746, 1
      %v772 = vsel %vm755, %v769, %v771
      %v773 = vrot.slane %v747, 1
      %v774 = vsel %vm755, %v771, %v773
      %v775 = vrot.slane %v748, 1
      %v776 = vsel %vm755, %v773, %v775
      %v777 = vrot.slane %v749, 1
      %v778 = vsel %vm755, %v775, %v777
      %v779 = vrot.slane %v750, 1
      %v780 = vsel %vm755, %v777, %v779
      %v781 = vrot.slane %v751, 1
      %v782 = vsel %vm755, %v779, %v781
      %v783 = vrot.slane %v752, 1
      %v784 = vsel %vm755, %v781, %v783
      %v785 = vrot.slane %v753, 1
      %v786 = vsel %vm755, %v783, %v785
      %v787 = vrot.slane %v754, 1
      %v788 = vsel %vm755, %v785, %v787
      %805 = vst.msk [vmem:[#allocation2 + $0x8] sm:$0xff] %vm308, %v758
      %806 = vst.msk [vmem:[#allocation2 + $0x30] sm:$0xff] %vm308, %v760
      %807 = vst.msk [vmem:[#allocation2 + $0x58] sm:$0xff] %vm308, %v762
      %808 = vst.msk [vmem:[#allocation2 + $0x80] sm:$0xff] %vm308, %v764
      %809 = vst.msk [vmem:[#allocation2 + $0xa8] sm:$0xff] %vm308, %v766
      %810 = vst.msk [vmem:[#allocation2 + $0xd0] sm:$0xff] %vm308, %v768
      %811 = vst.msk [vmem:[#allocation2 + $0xf8] sm:$0xff] %vm308, %v770
      %812 = vst.msk [vmem:[#allocation2 + $0x120] sm:$0xff] %vm308, %v772
      %813 = vst.msk [vmem:[#allocation2 + $0x148] sm:$0xff] %vm308, %v774
      %814 = vst.msk [vmem:[#allocation2 + $0x170] sm:$0xff] %vm308, %v776
      %815 = vst.msk [vmem:[#allocation2 + $0x198] sm:$0xff] %vm308, %v778
      %816 = vst.msk [vmem:[#allocation2 + $0x1c0] sm:$0xff] %vm308, %v780
      %817 = vst.msk [vmem:[#allocation2 + $0x1e8] sm:$0xff] %vm308, %v782
      %818 = vst.msk [vmem:[#allocation2 + $0x210] sm:$0xff] %vm308, %v784
      %819 = vst.msk [vmem:[#allocation2 + $0x238] sm:$0xff] %vm308, %v786
      %820 = vst.msk [vmem:[#allocation2 + $0x260] sm:$0xff] %vm308, %v788
      %v821 = vld [vmem:[%s170 + $0x8] sm:$0xf]
      %v822 = vld [vmem:[%s170 + $0xc] sm:$0xf]
      %v823 = vld [vmem:[%s170 + $0x10] sm:$0xf]
      %v824 = vld [vmem:[%s170 + $0x14] sm:$0xf]
      %v825 = vld [vmem:[%s170 + $0x18] sm:$0xf]
      %v826 = vld [vmem:[%s170 + $0x1c] sm:$0xf]
      %v827 = vld [vmem:[%s170 + $0x20] sm:$0xf]
      %v828 = vld [vmem:[%s170 + $0x24] sm:$0xf]
      %v829 = vld [vmem:[%s170 + $0x28] sm:$0xf]
      %v830 = vld [vmem:[%s170 + $0x2c] sm:$0xf]
      %v831 = vld [vmem:[%s170 + $0x30] sm:$0xf]
      %v832 = vld [vmem:[%s170 + $0x34] sm:$0xf]
      %v833 = vld [vmem:[%s170 + $0x38] sm:$0xf]
      %v834 = vld [vmem:[%s170 + $0x3c] sm:$0xf]
      %v835 = vld [vmem:[%s170 + $0x40] sm:$0xf]
      %v836 = vld [vmem:[%s170 + $0x44] sm:$0xf]
      %v837 = vld [vmem:[%s170 + $0x48] sm:$0xf]
      %v838 = vld [vmem:[%s170 + $0x4c] sm:$0xf]
      %v839 = vld [vmem:[%s170 + $0x50] sm:$0xf]
      %v840 = vld [vmem:[%s170 + $0x54] sm:$0xf]
      %v841 = vld [vmem:[%s170 + $0x58] sm:$0xf]
      %v842 = vld [vmem:[%s170 + $0x5c] sm:$0xf]
      %v843 = vld [vmem:[%s170 + $0x60] sm:$0xf]
      %v844 = vld [vmem:[%s170 + $0x64] sm:$0xf]
      %v845 = vld [vmem:[%s170 + $0x68] sm:$0xf]
      %v846 = vld [vmem:[%s170 + $0x6c] sm:$0xf]
      %v847 = vld [vmem:[%s170 + $0x70] sm:$0xf]
      %v848 = vld [vmem:[%s170 + $0x74] sm:$0xf]
      %v849 = vld [vmem:[%s170 + $0x78] sm:$0xf]
      %v850 = vld [vmem:[%s170 + $0x7c] sm:$0xf]
      %v851 = vld [vmem:[%s170 + $0x80] sm:$0xf]
      %v852 = vld [vmem:[%s170 + $0x84] sm:$0xf]
      %v853 = vld [vmem:[%s170 + $0x88] sm:$0x1]
      %v887 = vunpack.c.l.b16 %v821
      %v888 = vunpack.c.l.b16 %v822
      %v889 = vunpack.c.l.b16 %v823
      %v890 = vunpack.c.l.b16 %v824
      %v891 = vunpack.c.l.b16 %v825
      %v892 = vunpack.c.l.b16 %v826
      %v893 = vunpack.c.l.b16 %v827
      %v894 = vunpack.c.l.b16 %v828
      %v895 = vunpack.c.l.b16 %v829
      %v896 = vunpack.c.l.b16 %v830
      %v897 = vunpack.c.l.b16 %v831
      %v898 = vunpack.c.l.b16 %v832
      %v899 = vunpack.c.l.b16 %v833
      %v900 = vunpack.c.l.b16 %v834
      %v901 = vunpack.c.l.b16 %v835
      %v902 = vunpack.c.l.b16 %v836
      %v903 = vunpack.c.l.b16 %v837
      %v904 = vunpack.c.l.b16 %v838
      %v905 = vunpack.c.l.b16 %v839
      %v906 = vunpack.c.l.b16 %v840
      %v907 = vunpack.c.l.b16 %v841
      %v908 = vunpack.c.l.b16 %v842
      %v909 = vunpack.c.l.b16 %v843
      %v910 = vunpack.c.l.b16 %v844
      %v911 = vunpack.c.l.b16 %v845
      %v912 = vunpack.c.l.b16 %v846
      %v913 = vunpack.c.l.b16 %v847
      %v914 = vunpack.c.l.b16 %v848
      %v915 = vunpack.c.l.b16 %v849
      %v916 = vunpack.c.l.b16 %v850
      %v917 = vunpack.c.l.b16 %v851
      %v918 = vunpack.c.l.b16 %v852
      %v919 = vunpack.c.l.b16 %v853
      %v920 = vpack.c.b16 %v888, %v887
      %v921 = vpack.c.b16 %v890, %v889
      %v922 = vpack.c.b16 %v892, %v891
      %v923 = vpack.c.b16 %v894, %v893
      %v924 = vpack.c.b16 %v896, %v895
      %v925 = vpack.c.b16 %v898, %v897
      %v926 = vpack.c.b16 %v900, %v899
      %v927 = vpack.c.b16 %v902, %v901
      %v928 = vpack.c.b16 %v904, %v903
      %v929 = vpack.c.b16 %v906, %v905
      %v930 = vpack.c.b16 %v908, %v907
      %v931 = vpack.c.b16 %v910, %v909
      %v932 = vpack.c.b16 %v912, %v911
      %v933 = vpack.c.b16 %v914, %v913
      %v934 = vpack.c.b16 %v916, %v915
      %v935 = vpack.c.b16 %v918, %v917
      %v936 = vpack.c.b16 %v919, %v919
      %v938 = vshrl.u32 %v920, 16
      %v940 = vshll.u32 %v920, 16
      %v942 = vrot.slane %v940, 1
      %v943 = vor.u32 %v938, %v942
      %v945 = vshll.u32 %v921, 16
      %v947 = vrot.slane %v945, 1
      %v948 = vsel %vm441, %v943, %v947
      %v949 = vshrl.u32 %v921, 16
      %v951 = vor.u32 %v949, %v947
      %v953 = vshll.u32 %v922, 16
      %v955 = vrot.slane %v953, 1
      %v956 = vsel %vm441, %v951, %v955
      %v957 = vshrl.u32 %v922, 16
      %v959 = vor.u32 %v957, %v955
      %v961 = vshll.u32 %v923, 16
      %v963 = vrot.slane %v961, 1
      %v964 = vsel %vm441, %v959, %v963
      %v965 = vshrl.u32 %v923, 16
      %v967 = vor.u32 %v965, %v963
      %v969 = vshll.u32 %v924, 16
      %v971 = vrot.slane %v969, 1
      %v972 = vsel %vm441, %v967, %v971
      %v973 = vshrl.u32 %v924, 16
      %v975 = vor.u32 %v973, %v971
      %v977 = vshll.u32 %v925, 16
      %v979 = vrot.slane %v977, 1
      %v980 = vsel %vm441, %v975, %v979
      %v981 = vshrl.u32 %v925, 16
      %v983 = vor.u32 %v981, %v979
      %v985 = vshll.u32 %v926, 16
      %v987 = vrot.slane %v985, 1
      %v988 = vsel %vm441, %v983, %v987
      %v989 = vshrl.u32 %v926, 16
      %v991 = vor.u32 %v989, %v987
      %v993 = vshll.u32 %v927, 16
      %v995 = vrot.slane %v993, 1
      %v996 = vsel %vm441, %v991, %v995
      %v997 = vshrl.u32 %v927, 16
      %v999 = vor.u32 %v997, %v995
      %v1001 = vshll.u32 %v928, 16
      %v1003 = vrot.slane %v1001, 1
      %v1004 = vsel %vm441, %v999, %v1003
      %v1005 = vshrl.u32 %v928, 16
      %v1007 = vor.u32 %v1005, %v1003
      %v1009 = vshll.u32 %v929, 16
      %v1011 = vrot.slane %v1009, 1
      %v1012 = vsel %vm441, %v1007, %v1011
      %v1013 = vshrl.u32 %v929, 16
      %v1015 = vor.u32 %v1013, %v1011
      %v1017 = vshll.u32 %v930, 16
      %v1019 = vrot.slane %v1017, 1
      %v1020 = vsel %vm441, %v1015, %v1019
      %v1021 = vshrl.u32 %v930, 16
      %v1023 = vor.u32 %v1021, %v1019
      %v1025 = vshll.u32 %v931, 16
      %v1027 = vrot.slane %v1025, 1
      %v1028 = vsel %vm441, %v1023, %v1027
      %v1029 = vshrl.u32 %v931, 16
      %v1031 = vor.u32 %v1029, %v1027
      %v1033 = vshll.u32 %v932, 16
      %v1035 = vrot.slane %v1033, 1
      %v1036 = vsel %vm441, %v1031, %v1035
      %v1037 = vshrl.u32 %v932, 16
      %v1039 = vor.u32 %v1037, %v1035
      %v1041 = vshll.u32 %v933, 16
      %v1043 = vrot.slane %v1041, 1
      %v1044 = vsel %vm441, %v1039, %v1043
      %v1045 = vshrl.u32 %v933, 16
      %v1047 = vor.u32 %v1045, %v1043
      %v1049 = vshll.u32 %v934, 16
      %v1051 = vrot.slane %v1049, 1
      %v1052 = vsel %vm441, %v1047, %v1051
      %v1053 = vshrl.u32 %v934, 16
      %v1055 = vor.u32 %v1053, %v1051
      %v1057 = vshll.u32 %v935, 16
      %v1059 = vrot.slane %v1057, 1
      %v1060 = vsel %vm441, %v1055, %v1059
      %v1061 = vshrl.u32 %v935, 16
      %v1063 = vor.u32 %v1061, %v1059
      %v1065 = vshll.u32 %v936, 16
      %v1067 = vrot.slane %v1065, 1
      %v1068 = vsel %vm441, %v1063, %v1067
      %1069 = vrot.lane.b32.xlu0 %v948, 64
      %v1070 = vpop.permute.xlu0 %1069
      %1071 = vrot.lane.b32.xlu0 %v956, 64
      %v1072 = vpop.permute.xlu0 %1071
      %1073 = vrot.lane.b32.xlu0 %v964, 64
      %v1074 = vpop.permute.xlu0 %1073
      %1075 = vrot.lane.b32.xlu0 %v972, 64
      %v1076 = vpop.permute.xlu0 %1075
      %1077 = vrot.lane.b32.xlu0 %v980, 64
      %v1078 = vpop.permute.xlu0 %1077
      %1079 = vrot.lane.b32.xlu0 %v988, 64
      %v1080 = vpop.permute.xlu0 %1079
      %1081 = vrot.lane.b32.xlu0 %v996, 64
      %v1082 = vpop.permute.xlu0 %1081
      %1083 = vrot.lane.b32.xlu0 %v1004, 64
      %v1084 = vpop.permute.xlu0 %1083
      %1085 = vrot.lane.b32.xlu0 %v1012, 64
      %v1086 = vpop.permute.xlu0 %1085
      %1087 = vrot.lane.b32.xlu0 %v1020, 64
      %v1088 = vpop.permute.xlu0 %1087
      %1089 = vrot.lane.b32.xlu0 %v1028, 64
      %v1090 = vpop.permute.xlu0 %1089
      %1091 = vrot.lane.b32.xlu0 %v1036, 64
      %v1092 = vpop.permute.xlu0 %1091
      %1093 = vrot.lane.b32.xlu0 %v1044, 64
      %v1094 = vpop.permute.xlu0 %1093
      %1095 = vrot.lane.b32.xlu0 %v1052, 64
      %v1096 = vpop.permute.xlu0 %1095
      %1097 = vrot.lane.b32.xlu0 %v1060, 64
      %v1098 = vpop.permute.xlu0 %1097
      %1099 = vrot.lane.b32.xlu0 %v1068, 64
      %v1100 = vpop.permute.xlu0 %1099
      %1117 = vst.msk [vmem:[#allocation2 + $0x8] sm:$0xff] %vm622, %v1070
      %1118 = vst.msk [vmem:[#allocation2 + $0x30] sm:$0xff] %vm622, %v1072
      %1119 = vst.msk [vmem:[#allocation2 + $0x58] sm:$0xff] %vm622, %v1074
      %1120 = vst.msk [vmem:[#allocation2 + $0x80] sm:$0xff] %vm622, %v1076
      %1121 = vst.msk [vmem:[#allocation2 + $0xa8] sm:$0xff] %vm622, %v1078
      %1122 = vst.msk [vmem:[#allocation2 + $0xd0] sm:$0xff] %vm622, %v1080
      %1123 = vst.msk [vmem:[#allocation2 + $0xf8] sm:$0xff] %vm622, %v1082
      %1124 = vst.msk [vmem:[#allocation2 + $0x120] sm:$0xff] %vm622, %v1084
      %1125 = vst.msk [vmem:[#allocation2 + $0x148] sm:$0xff] %vm622, %v1086
      %1126 = vst.msk [vmem:[#allocation2 + $0x170] sm:$0xff] %vm622, %v1088
      %1127 = vst.msk [vmem:[#allocation2 + $0x198] sm:$0xff] %vm622, %v1090
      %1128 = vst.msk [vmem:[#allocation2 + $0x1c0] sm:$0xff] %vm622, %v1092
      %1129 = vst.msk [vmem:[#allocation2 + $0x1e8] sm:$0xff] %vm622, %v1094
      %1130 = vst.msk [vmem:[#allocation2 + $0x210] sm:$0xff] %vm622, %v1096
      %1131 = vst.msk [vmem:[#allocation2 + $0x238] sm:$0xff] %vm622, %v1098
      %1132 = vst.msk [vmem:[#allocation2 + $0x260] sm:$0xff] %vm622, %v1100
      %v1133 = vld [vmem:[%s170 + $0x8] sm:$0xe]
      %v1134 = vld [vmem:[%s170 + $0xc] sm:$0xf]
      %v1135 = vld [vmem:[%s170 + $0x10] sm:$0xf]
      %v1136 = vld [vmem:[%s170 + $0x14] sm:$0xf]
      %v1137 = vld [vmem:[%s170 + $0x18] sm:$0xf]
      %v1138 = vld [vmem:[%s170 + $0x1c] sm:$0xf]
      %v1139 = vld [vmem:[%s170 + $0x20] sm:$0xf]
      %v1140 = vld [vmem:[%s170 + $0x24] sm:$0xf]
      %v1141 = vld [vmem:[%s170 + $0x28] sm:$0xf]
      %v1142 = vld [vmem:[%s170 + $0x2c] sm:$0xf]
      %v1143 = vld [vmem:[%s170 + $0x30] sm:$0xf]
      %v1144 = vld [vmem:[%s170 + $0x34] sm:$0xf]
      %v1145 = vld [vmem:[%s170 + $0x38] sm:$0xf]
      %v1146 = vld [vmem:[%s170 + $0x3c] sm:$0xf]
      %v1147 = vld [vmem:[%s170 + $0x40] sm:$0xf]
      %v1148 = vld [vmem:[%s170 + $0x44] sm:$0xf]
      %v1149 = vld [vmem:[%s170 + $0x48] sm:$0xf]
      %v1150 = vld [vmem:[%s170 + $0x4c] sm:$0xf]
      %v1151 = vld [vmem:[%s170 + $0x50] sm:$0xf]
      %v1152 = vld [vmem:[%s170 + $0x54] sm:$0xf]
      %v1153 = vld [vmem:[%s170 + $0x58] sm:$0xf]
      %v1154 = vld [vmem:[%s170 + $0x5c] sm:$0xf]
      %v1155 = vld [vmem:[%s170 + $0x60] sm:$0xf]
      %v1156 = vld [vmem:[%s170 + $0x64] sm:$0xf]
      %v1157 = vld [vmem:[%s170 + $0x68] sm:$0xf]
      %v1158 = vld [vmem:[%s170 + $0x6c] sm:$0xf]
      %v1159 = vld [vmem:[%s170 + $0x70] sm:$0xf]
      %v1160 = vld [vmem:[%s170 + $0x74] sm:$0xf]
      %v1161 = vld [vmem:[%s170 + $0x78] sm:$0xf]
      %v1162 = vld [vmem:[%s170 + $0x7c] sm:$0xf]
      %v1163 = vld [vmem:[%s170 + $0x80] sm:$0xf]
      %v1164 = vld [vmem:[%s170 + $0x84] sm:$0xf]
      %v1165 = vld [vmem:[%s170 + $0x88] sm:$0x1]
      %v1199 = vunpack.c.l.b16 %v1133
      %v1200 = vunpack.c.l.b16 %v1134
      %v1201 = vunpack.c.l.b16 %v1135
      %v1202 = vunpack.c.l.b16 %v1136
      %v1203 = vunpack.c.l.b16 %v1137
      %v1204 = vunpack.c.l.b16 %v1138
      %v1205 = vunpack.c.l.b16 %v1139
      %v1206 = vunpack.c.l.b16 %v1140
      %v1207 = vunpack.c.l.b16 %v1141
      %v1208 = vunpack.c.l.b16 %v1142
      %v1209 = vunpack.c.l.b16 %v1143
      %v1210 = vunpack.c.l.b16 %v1144
      %v1211 = vunpack.c.l.b16 %v1145
      %v1212 = vunpack.c.l.b16 %v1146
      %v1213 = vunpack.c.l.b16 %v1147
      %v1214 = vunpack.c.l.b16 %v1148
      %v1215 = vunpack.c.l.b16 %v1149
      %v1216 = vunpack.c.l.b16 %v1150
      %v1217 = vunpack.c.l.b16 %v1151
      %v1218 = vunpack.c.l.b16 %v1152
      %v1219 = vunpack.c.l.b16 %v1153
      %v1220 = vunpack.c.l.b16 %v1154
      %v1221 = vunpack.c.l.b16 %v1155
      %v1222 = vunpack.c.l.b16 %v1156
      %v1223 = vunpack.c.l.b16 %v1157
      %v1224 = vunpack.c.l.b16 %v1158
      %v1225 = vunpack.c.l.b16 %v1159
      %v1226 = vunpack.c.l.b16 %v1160
      %v1227 = vunpack.c.l.b16 %v1161
      %v1228 = vunpack.c.l.b16 %v1162
      %v1229 = vunpack.c.l.b16 %v1163
      %v1230 = vunpack.c.l.b16 %v1164
      %v1231 = vunpack.c.l.b16 %v1165
      %v1232 = vpack.c.b16 %v1200, %v1199
      %v1233 = vpack.c.b16 %v1202, %v1201
      %v1234 = vpack.c.b16 %v1204, %v1203
      %v1235 = vpack.c.b16 %v1206, %v1205
      %v1236 = vpack.c.b16 %v1208, %v1207
      %v1237 = vpack.c.b16 %v1210, %v1209
      %v1238 = vpack.c.b16 %v1212, %v1211
      %v1239 = vpack.c.b16 %v1214, %v1213
      %v1240 = vpack.c.b16 %v1216, %v1215
      %v1241 = vpack.c.b16 %v1218, %v1217
      %v1242 = vpack.c.b16 %v1220, %v1219
      %v1243 = vpack.c.b16 %v1222, %v1221
      %v1244 = vpack.c.b16 %v1224, %v1223
      %v1245 = vpack.c.b16 %v1226, %v1225
      %v1246 = vpack.c.b16 %v1228, %v1227
      %v1247 = vpack.c.b16 %v1230, %v1229
      %v1248 = vpack.c.b16 %v1231, %v1231
      %v1249 = vrot.slane %v1232, 1
      %v1250 = vrot.slane %v1233, 1
      %v1251 = vsel %vm755, %v1249, %v1250
      %v1252 = vrot.slane %v1234, 1
      %v1253 = vsel %vm755, %v1250, %v1252
      %v1254 = vrot.slane %v1235, 1
      %v1255 = vsel %vm755, %v1252, %v1254
      %v1256 = vrot.slane %v1236, 1
      %v1257 = vsel %vm755, %v1254, %v1256
      %v1258 = vrot.slane %v1237, 1
      %v1259 = vsel %vm755, %v1256, %v1258
      %v1260 = vrot.slane %v1238, 1
      %v1261 = vsel %vm755, %v1258, %v1260
      %v1262 = vrot.slane %v1239, 1
      %v1263 = vsel %vm755, %v1260, %v1262
      %v1264 = vrot.slane %v1240, 1
      %v1265 = vsel %vm755, %v1262, %v1264
      %v1266 = vrot.slane %v1241, 1
      %v1267 = vsel %vm755, %v1264, %v1266
      %v1268 = vrot.slane %v1242, 1
      %v1269 = vsel %vm755, %v1266, %v1268
      %v1270 = vrot.slane %v1243, 1
      %v1271 = vsel %vm755, %v1268, %v1270
      %v1272 = vrot.slane %v1244, 1
      %v1273 = vsel %vm755, %v1270, %v1272
      %v1274 = vrot.slane %v1245, 1
      %v1275 = vsel %vm755, %v1272, %v1274
      %v1276 = vrot.slane %v1246, 1
      %v1277 = vsel %vm755, %v1274, %v1276
      %v1278 = vrot.slane %v1247, 1
      %v1279 = vsel %vm755, %v1276, %v1278
      %v1280 = vrot.slane %v1248, 1
      %v1281 = vsel %vm755, %v1278, %v1280
      %1298 = vst.msk [vmem:[#allocation2 + $0x10] sm:$0xff] %vm308, %v1251
      %1299 = vst.msk [vmem:[#allocation2 + $0x38] sm:$0xff] %vm308, %v1253
      %1300 = vst.msk [vmem:[#allocation2 + $0x60] sm:$0xff] %vm308, %v1255
      %1301 = vst.msk [vmem:[#allocation2 + $0x88] sm:$0xff] %vm308, %v1257
      %1302 = vst.msk [vmem:[#allocation2 + $0xb0] sm:$0xff] %vm308, %v1259
      %1303 = vst.msk [vmem:[#allocation2 + $0xd8] sm:$0xff] %vm308, %v1261
      %1304 = vst.msk [vmem:[#allocation2 + $0x100] sm:$0xff] %vm308, %v1263
      %1305 = vst.msk [vmem:[#allocation2 + $0x128] sm:$0xff] %vm308, %v1265
      %1306 = vst.msk [vmem:[#allocation2 + $0x150] sm:$0xff] %vm308, %v1267
      %1307 = vst.msk [vmem:[#allocation2 + $0x178] sm:$0xff] %vm308, %v1269
      %1308 = vst.msk [vmem:[#allocation2 + $0x1a0] sm:$0xff] %vm308, %v1271
      %1309 = vst.msk [vmem:[#allocation2 + $0x1c8] sm:$0xff] %vm308, %v1273
      %1310 = vst.msk [vmem:[#allocation2 + $0x1f0] sm:$0xff] %vm308, %v1275
      %1311 = vst.msk [vmem:[#allocation2 + $0x218] sm:$0xff] %vm308, %v1277
      %1312 = vst.msk [vmem:[#allocation2 + $0x240] sm:$0xff] %vm308, %v1279
      %1313 = vst.msk [vmem:[#allocation2 + $0x268] sm:$0xff] %vm308, %v1281
      %v1314 = vld [vmem:[%s170 + $0x8] sm:$0xe]
      %v1315 = vld [vmem:[%s170 + $0xc] sm:$0xf]
      %v1316 = vld [vmem:[%s170 + $0x10] sm:$0xf]
      %v1317 = vld [vmem:[%s170 + $0x14] sm:$0xf]
      %v1318 = vld [vmem:[%s170 + $0x18] sm:$0xf]
      %v1319 = vld [vmem:[%s170 + $0x1c] sm:$0xf]
      %v1320 = vld [vmem:[%s170 + $0x20] sm:$0xf]
      %v1321 = vld [vmem:[%s170 + $0x24] sm:$0xf]
      %v1322 = vld [vmem:[%s170 + $0x28] sm:$0xf]
      %v1323 = vld [vmem:[%s170 + $0x2c] sm:$0xf]
      %v1324 = vld [vmem:[%s170 + $0x30] sm:$0xf]
      %v1325 = vld [vmem:[%s170 + $0x34] sm:$0xf]
      %v1326 = vld [vmem:[%s170 + $0x38] sm:$0xf]
      %v1327 = vld [vmem:[%s170 + $0x3c] sm:$0xf]
      %v1328 = vld [vmem:[%s170 + $0x40] sm:$0xf]
      %v1329 = vld [vmem:[%s170 + $0x44] sm:$0xf]
      %v1330 = vld [vmem:[%s170 + $0x48] sm:$0xf]
      %v1331 = vld [vmem:[%s170 + $0x4c] sm:$0xf]
      %v1332 = vld [vmem:[%s170 + $0x50] sm:$0xf]
      %v1333 = vld [vmem:[%s170 + $0x54] sm:$0xf]
      %v1334 = vld [vmem:[%s170 + $0x58] sm:$0xf]
      %v1335 = vld [vmem:[%s170 + $0x5c] sm:$0xf]
      %v1336 = vld [vmem:[%s170 + $0x60] sm:$0xf]
      %v1337 = vld [vmem:[%s170 + $0x64] sm:$0xf]
      %v1338 = vld [vmem:[%s170 + $0x68] sm:$0xf]
      %v1339 = vld [vmem:[%s170 + $0x6c] sm:$0xf]
      %v1340 = vld [vmem:[%s170 + $0x70] sm:$0xf]
      %v1341 = vld [vmem:[%s170 + $0x74] sm:$0xf]
      %v1342 = vld [vmem:[%s170 + $0x78] sm:$0xf]
      %v1343 = vld [vmem:[%s170 + $0x7c] sm:$0xf]
      %v1344 = vld [vmem:[%s170 + $0x80] sm:$0xf]
      %v1345 = vld [vmem:[%s170 + $0x84] sm:$0xf]
      %v1346 = vld [vmem:[%s170 + $0x88] sm:$0x3]
      %v1380 = vunpack.c.l.b16 %v1314
      %v1381 = vunpack.c.l.b16 %v1315
      %v1382 = vunpack.c.l.b16 %v1316
      %v1383 = vunpack.c.l.b16 %v1317
      %v1384 = vunpack.c.l.b16 %v1318
      %v1385 = vunpack.c.l.b16 %v1319
      %v1386 = vunpack.c.l.b16 %v1320
      %v1387 = vunpack.c.l.b16 %v1321
      %v1388 = vunpack.c.l.b16 %v1322
      %v1389 = vunpack.c.l.b16 %v1323
      %v1390 = vunpack.c.l.b16 %v1324
      %v1391 = vunpack.c.l.b16 %v1325
      %v1392 = vunpack.c.l.b16 %v1326
      %v1393 = vunpack.c.l.b16 %v1327
      %v1394 = vunpack.c.l.b16 %v1328
      %v1395 = vunpack.c.l.b16 %v1329
      %v1396 = vunpack.c.l.b16 %v1330
      %v1397 = vunpack.c.l.b16 %v1331
      %v1398 = vunpack.c.l.b16 %v1332
      %v1399 = vunpack.c.l.b16 %v1333
      %v1400 = vunpack.c.l.b16 %v1334
      %v1401 = vunpack.c.l.b16 %v1335
      %v1402 = vunpack.c.l.b16 %v1336
      %v1403 = vunpack.c.l.b16 %v1337
      %v1404 = vunpack.c.l.b16 %v1338
      %v1405 = vunpack.c.l.b16 %v1339
      %v1406 = vunpack.c.l.b16 %v1340
      %v1407 = vunpack.c.l.b16 %v1341
      %v1408 = vunpack.c.l.b16 %v1342
      %v1409 = vunpack.c.l.b16 %v1343
      %v1410 = vunpack.c.l.b16 %v1344
      %v1411 = vunpack.c.l.b16 %v1345
      %v1412 = vunpack.c.l.b16 %v1346
      %v1413 = vpack.c.b16 %v1381, %v1380
      %v1414 = vpack.c.b16 %v1383, %v1382
      %v1415 = vpack.c.b16 %v1385, %v1384
      %v1416 = vpack.c.b16 %v1387, %v1386
      %v1417 = vpack.c.b16 %v1389, %v1388
      %v1418 = vpack.c.b16 %v1391, %v1390
      %v1419 = vpack.c.b16 %v1393, %v1392
      %v1420 = vpack.c.b16 %v1395, %v1394
      %v1421 = vpack.c.b16 %v1397, %v1396
      %v1422 = vpack.c.b16 %v1399, %v1398
      %v1423 = vpack.c.b16 %v1401, %v1400
      %v1424 = vpack.c.b16 %v1403, %v1402
      %v1425 = vpack.c.b16 %v1405, %v1404
      %v1426 = vpack.c.b16 %v1407, %v1406
      %v1427 = vpack.c.b16 %v1409, %v1408
      %v1428 = vpack.c.b16 %v1411, %v1410
      %v1429 = vpack.c.b16 %v1412, %v1412
      %vm1430 = vsmask.f32 6400
      %v1432 = vshrl.u32 %v1413, 16
      %v1434 = vrot.slane %v1432, 1
      %v1435 = vshll.u32 %v1413, 16
      %v1437 = vrot.slane %v1435, 2
      %v1438 = vor.u32 %v1434, %v1437
      %v1440 = vshrl.u32 %v1414, 16
      %v1442 = vrot.slane %v1440, 1
      %v1443 = vshll.u32 %v1414, 16
      %v1445 = vrot.slane %v1443, 2
      %v1446 = vor.u32 %v1442, %v1445
      %v1447 = vsel %vm1430, %v1438, %v1446
      %v1449 = vshrl.u32 %v1415, 16
      %v1451 = vrot.slane %v1449, 1
      %v1452 = vshll.u32 %v1415, 16
      %v1454 = vrot.slane %v1452, 2
      %v1455 = vor.u32 %v1451, %v1454
      %v1456 = vsel %vm1430, %v1446, %v1455
      %v1458 = vshrl.u32 %v1416, 16
      %v1460 = vrot.slane %v1458, 1
      %v1461 = vshll.u32 %v1416, 16
      %v1463 = vrot.slane %v1461, 2
      %v1464 = vor.u32 %v1460, %v1463
      %v1465 = vsel %vm1430, %v1455, %v1464
      %v1467 = vshrl.u32 %v1417, 16
      %v1469 = vrot.slane %v1467, 1
      %v1470 = vshll.u32 %v1417, 16
      %v1472 = vrot.slane %v1470, 2
      %v1473 = vor.u32 %v1469, %v1472
      %v1474 = vsel %vm1430, %v1464, %v1473
      %v1476 = vshrl.u32 %v1418, 16
      %v1478 = vrot.slane %v1476, 1
      %v1479 = vshll.u32 %v1418, 16
      %v1481 = vrot.slane %v1479, 2
      %v1482 = vor.u32 %v1478, %v1481
      %v1483 = vsel %vm1430, %v1473, %v1482
      %v1485 = vshrl.u32 %v1419, 16
      %v1487 = vrot.slane %v1485, 1
      %v1488 = vshll.u32 %v1419, 16
      %v1490 = vrot.slane %v1488, 2
      %v1491 = vor.u32 %v1487, %v1490
      %v1492 = vsel %vm1430, %v1482, %v1491
      %v1494 = vshrl.u32 %v1420, 16
      %v1496 = vrot.slane %v1494, 1
      %v1497 = vshll.u32 %v1420, 16
      %v1499 = vrot.slane %v1497, 2
      %v1500 = vor.u32 %v1496, %v1499
      %v1501 = vsel %vm1430, %v1491, %v1500
      %v1503 = vshrl.u32 %v1421, 16
      %v1505 = vrot.slane %v1503, 1
      %v1506 = vshll.u32 %v1421, 16
      %v1508 = vrot.slane %v1506, 2
      %v1509 = vor.u32 %v1505, %v1508
      %v1510 = vsel %vm1430, %v1500, %v1509
      %v1512 = vshrl.u32 %v1422, 16
      %v1514 = vrot.slane %v1512, 1
      %v1515 = vshll.u32 %v1422, 16
      %v1517 = vrot.slane %v1515, 2
      %v1518 = vor.u32 %v1514, %v1517
      %v1519 = vsel %vm1430, %v1509, %v1518
      %v1521 = vshrl.u32 %v1423, 16
      %v1523 = vrot.slane %v1521, 1
      %v1524 = vshll.u32 %v1423, 16
      %v1526 = vrot.slane %v1524, 2
      %v1527 = vor.u32 %v1523, %v1526
      %v1528 = vsel %vm1430, %v1518, %v1527
      %v1530 = vshrl.u32 %v1424, 16
      %v1532 = vrot.slane %v1530, 1
      %v1533 = vshll.u32 %v1424, 16
      %v1535 = vrot.slane %v1533, 2
      %v1536 = vor.u32 %v1532, %v1535
      %v1537 = vsel %vm1430, %v1527, %v1536
      %v1539 = vshrl.u32 %v1425, 16
      %v1541 = vrot.slane %v1539, 1
      %v1542 = vshll.u32 %v1425, 16
      %v1544 = vrot.slane %v1542, 2
      %v1545 = vor.u32 %v1541, %v1544
      %v1546 = vsel %vm1430, %v1536, %v1545
      %v1548 = vshrl.u32 %v1426, 16
      %v1550 = vrot.slane %v1548, 1
      %v1551 = vshll.u32 %v1426, 16
      %v1553 = vrot.slane %v1551, 2
      %v1554 = vor.u32 %v1550, %v1553
      %v1555 = vsel %vm1430, %v1545, %v1554
      %v1557 = vshrl.u32 %v1427, 16
      %v1559 = vrot.slane %v1557, 1
      %v1560 = vshll.u32 %v1427, 16
      %v1562 = vrot.slane %v1560, 2
      %v1563 = vor.u32 %v1559, %v1562
      %v1564 = vsel %vm1430, %v1554, %v1563
      %v1566 = vshrl.u32 %v1428, 16
      %v1568 = vrot.slane %v1566, 1
      %v1569 = vshll.u32 %v1428, 16
      %v1571 = vrot.slane %v1569, 2
      %v1572 = vor.u32 %v1568, %v1571
      %v1573 = vsel %vm1430, %v1563, %v1572
      %v1575 = vshrl.u32 %v1429, 16
      %v1577 = vrot.slane %v1575, 1
      %v1578 = vshll.u32 %v1429, 16
      %v1580 = vrot.slane %v1578, 2
      %v1581 = vor.u32 %v1577, %v1580
      %v1582 = vsel %vm1430, %v1572, %v1581
      %1583 = vrot.lane.b32.xlu0 %v1447, 64
      %v1584 = vpop.permute.xlu0 %1583
      %1585 = vrot.lane.b32.xlu0 %v1456, 64
      %v1586 = vpop.permute.xlu0 %1585
      %1587 = vrot.lane.b32.xlu0 %v1465, 64
      %v1588 = vpop.permute.xlu0 %1587
      %1589 = vrot.lane.b32.xlu0 %v1474, 64
      %v1590 = vpop.permute.xlu0 %1589
      %1591 = vrot.lane.b32.xlu0 %v1483, 64
      %v1592 = vpop.permute.xlu0 %1591
      %1593 = vrot.lane.b32.xlu0 %v1492, 64
      %v1594 = vpop.permute.xlu0 %1593
      %1595 = vrot.lane.b32.xlu0 %v1501, 64
      %v1596 = vpop.permute.xlu0 %1595
      %1597 = vrot.lane.b32.xlu0 %v1510, 64
      %v1598 = vpop.permute.xlu0 %1597
      %1599 = vrot.lane.b32.xlu0 %v1519, 64
      %v1600 = vpop.permute.xlu0 %1599
      %1601 = vrot.lane.b32.xlu0 %v1528, 64
      %v1602 = vpop.permute.xlu0 %1601
      %1603 = vrot.lane.b32.xlu0 %v1537, 64
      %v1604 = vpop.permute.xlu0 %1603
      %1605 = vrot.lane.b32.xlu0 %v1546, 64
      %v1606 = vpop.permute.xlu0 %1605
      %1607 = vrot.lane.b32.xlu0 %v1555, 64
      %v1608 = vpop.permute.xlu0 %1607
      %1609 = vrot.lane.b32.xlu0 %v1564, 64
      %v1610 = vpop.permute.xlu0 %1609
      %1611 = vrot.lane.b32.xlu0 %v1573, 64
      %v1612 = vpop.permute.xlu0 %1611
      %1613 = vrot.lane.b32.xlu0 %v1582, 64
      %v1614 = vpop.permute.xlu0 %1613
      %1631 = vst.msk [vmem:[#allocation2 + $0x10] sm:$0xff] %vm622, %v1584
      %1632 = vst.msk [vmem:[#allocation2 + $0x38] sm:$0xff] %vm622, %v1586
      %1633 = vst.msk [vmem:[#allocation2 + $0x60] sm:$0xff] %vm622, %v1588
      %1634 = vst.msk [vmem:[#allocation2 + $0x88] sm:$0xff] %vm622, %v1590
      %1635 = vst.msk [vmem:[#allocation2 + $0xb0] sm:$0xff] %vm622, %v1592
      %1636 = vst.msk [vmem:[#allocation2 + $0xd8] sm:$0xff] %vm622, %v1594
      %1637 = vst.msk [vmem:[#allocation2 + $0x100] sm:$0xff] %vm622, %v1596
      %1638 = vst.msk [vmem:[#allocation2 + $0x128] sm:$0xff] %vm622, %v1598
      %1639 = vst.msk [vmem:[#allocation2 + $0x150] sm:$0xff] %vm622, %v1600
      %1640 = vst.msk [vmem:[#allocation2 + $0x178] sm:$0xff] %vm622, %v1602
      %1641 = vst.msk [vmem:[#allocation2 + $0x1a0] sm:$0xff] %vm622, %v1604
      %1642 = vst.msk [vmem:[#allocation2 + $0x1c8] sm:$0xff] %vm622, %v1606
      %1643 = vst.msk [vmem:[#allocation2 + $0x1f0] sm:$0xff] %vm622, %v1608
      %1644 = vst.msk [vmem:[#allocation2 + $0x218] sm:$0xff] %vm622, %v1610
      %1645 = vst.msk [vmem:[#allocation2 + $0x240] sm:$0xff] %vm622, %v1612
      %1646 = vst.msk [vmem:[#allocation2 + $0x268] sm:$0xff] %vm622, %v1614
      %v1647 = vld [vmem:[%s170 + $0x10] sm:$0xe]
      %v1648 = vld [vmem:[%s170 + $0x14] sm:$0xf]
      %v1649 = vld [vmem:[%s170 + $0x18] sm:$0xf]
      %v1650 = vld [vmem:[%s170 + $0x1c] sm:$0xf]
      %v1651 = vld [vmem:[%s170 + $0x20] sm:$0xf]
      %v1652 = vld [vmem:[%s170 + $0x24] sm:$0xf]
      %v1653 = vld [vmem:[%s170 + $0x28] sm:$0xf]
      %v1654 = vld [vmem:[%s170 + $0x2c] sm:$0xf]
      %v1655 = vld [vmem:[%s170 + $0x30] sm:$0xf]
      %v1656 = vld [vmem:[%s170 + $0x34] sm:$0xf]
      %v1657 = vld [vmem:[%s170 + $0x38] sm:$0xf]
      %v1658 = vld [vmem:[%s170 + $0x3c] sm:$0xf]
      %v1659 = vld [vmem:[%s170 + $0x40] sm:$0xf]
      %v1660 = vld [vmem:[%s170 + $0x44] sm:$0xf]
      %v1661 = vld [vmem:[%s170 + $0x48] sm:$0xf]
      %v1662 = vld [vmem:[%s170 + $0x4c] sm:$0xf]
      %v1663 = vld [vmem:[%s170 + $0x50] sm:$0xf]
      %v1664 = vld [vmem:[%s170 + $0x54] sm:$0xf]
      %v1665 = vld [vmem:[%s170 + $0x58] sm:$0xf]
      %v1666 = vld [vmem:[%s170 + $0x5c] sm:$0xf]
      %v1667 = vld [vmem:[%s170 + $0x60] sm:$0xf]
      %v1668 = vld [vmem:[%s170 + $0x64] sm:$0xf]
      %v1669 = vld [vmem:[%s170 + $0x68] sm:$0xf]
      %v1670 = vld [vmem:[%s170 + $0x6c] sm:$0xf]
      %v1671 = vld [vmem:[%s170 + $0x70] sm:$0xf]
      %v1672 = vld [vmem:[%s170 + $0x74] sm:$0xf]
      %v1673 = vld [vmem:[%s170 + $0x78] sm:$0xf]
      %v1674 = vld [vmem:[%s170 + $0x7c] sm:$0xf]
      %v1675 = vld [vmem:[%s170 + $0x80] sm:$0xf]
      %v1676 = vld [vmem:[%s170 + $0x84] sm:$0xf]
      %v1677 = vld [vmem:[%s170 + $0x88] sm:$0xf]
      %v1678 = vld [vmem:[%s170 + $0x8c] sm:$0xf]
      %v1679 = vld [vmem:[%s170 + $0x90] sm:$0x1]
      %v1713 = vunpack.c.l.b16 %v1647
      %v1714 = vunpack.c.l.b16 %v1648
      %v1715 = vunpack.c.l.b16 %v1649
      %v1716 = vunpack.c.l.b16 %v1650
      %v1717 = vunpack.c.l.b16 %v1651
      %v1718 = vunpack.c.l.b16 %v1652
      %v1719 = vunpack.c.l.b16 %v1653
      %v1720 = vunpack.c.l.b16 %v1654
      %v1721 = vunpack.c.l.b16 %v1655
      %v1722 = vunpack.c.l.b16 %v1656
      %v1723 = vunpack.c.l.b16 %v1657
      %v1724 = vunpack.c.l.b16 %v1658
      %v1725 = vunpack.c.l.b16 %v1659
      %v1726 = vunpack.c.l.b16 %v1660
      %v1727 = vunpack.c.l.b16 %v1661
      %v1728 = vunpack.c.l.b16 %v1662
      %v1729 = vunpack.c.l.b16 %v1663
      %v1730 = vunpack.c.l.b16 %v1664
      %v1731 = vunpack.c.l.b16 %v1665
      %v1732 = vunpack.c.l.b16 %v1666
      %v1733 = vunpack.c.l.b16 %v1667
      %v1734 = vunpack.c.l.b16 %v1668
      %v1735 = vunpack.c.l.b16 %v1669
      %v1736 = vunpack.c.l.b16 %v1670
      %v1737 = vunpack.c.l.b16 %v1671
      %v1738 = vunpack.c.l.b16 %v1672
      %v1739 = vunpack.c.l.b16 %v1673
      %v1740 = vunpack.c.l.b16 %v1674
      %v1741 = vunpack.c.l.b16 %v1675
      %v1742 = vunpack.c.l.b16 %v1676
      %v1743 = vunpack.c.l.b16 %v1677
      %v1744 = vunpack.c.l.b16 %v1678
      %v1745 = vunpack.c.l.b16 %v1679
      %v1746 = vpack.c.b16 %v1714, %v1713
      %v1747 = vpack.c.b16 %v1716, %v1715
      %v1748 = vpack.c.b16 %v1718, %v1717
      %v1749 = vpack.c.b16 %v1720, %v1719
      %v1750 = vpack.c.b16 %v1722, %v1721
      %v1751 = vpack.c.b16 %v1724, %v1723
      %v1752 = vpack.c.b16 %v1726, %v1725
      %v1753 = vpack.c.b16 %v1728, %v1727
      %v1754 = vpack.c.b16 %v1730, %v1729
      %v1755 = vpack.c.b16 %v1732, %v1731
      %v1756 = vpack.c.b16 %v1734, %v1733
      %v1757 = vpack.c.b16 %v1736, %v1735
      %v1758 = vpack.c.b16 %v1738, %v1737
      %v1759 = vpack.c.b16 %v1740, %v1739
      %v1760 = vpack.c.b16 %v1742, %v1741
      %v1761 = vpack.c.b16 %v1744, %v1743
      %v1762 = vpack.c.b16 %v1745, %v1745
      %v1763 = vrot.slane %v1746, 1
      %v1764 = vrot.slane %v1747, 1
      %v1765 = vsel %vm755, %v1763, %v1764
      %v1766 = vrot.slane %v1748, 1
      %v1767 = vsel %vm755, %v1764, %v1766
      %v1768 = vrot.slane %v1749, 1
      %v1769 = vsel %vm755, %v1766, %v1768
      %v1770 = vrot.slane %v1750, 1
      %v1771 = vsel %vm755, %v1768, %v1770
      %v1772 = vrot.slane %v1751, 1
      %v1773 = vsel %vm755, %v1770, %v1772
      %v1774 = vrot.slane %v1752, 1
      %v1775 = vsel %vm755, %v1772, %v1774
      %v1776 = vrot.slane %v1753, 1
      %v1777 = vsel %vm755, %v1774, %v1776
      %v1778 = vrot.slane %v1754, 1
      %v1779 = vsel %vm755, %v1776, %v1778
      %v1780 = vrot.slane %v1755, 1
      %v1781 = vsel %vm755, %v1778, %v1780
      %v1782 = vrot.slane %v1756, 1
      %v1783 = vsel %vm755, %v1780, %v1782
      %v1784 = vrot.slane %v1757, 1
      %v1785 = vsel %vm755, %v1782, %v1784
      %v1786 = vrot.slane %v1758, 1
      %v1787 = vsel %vm755, %v1784, %v1786
      %v1788 = vrot.slane %v1759, 1
      %v1789 = vsel %vm755, %v1786, %v1788
      %v1790 = vrot.slane %v1760, 1
      %v1791 = vsel %vm755, %v1788, %v1790
      %v1792 = vrot.slane %v1761, 1
      %v1793 = vsel %vm755, %v1790, %v1792
      %v1794 = vrot.slane %v1762, 1
      %v1795 = vsel %vm755, %v1792, %v1794
      %1812 = vst.msk [vmem:[#allocation2 + $0x18] sm:$0xff] %vm308, %v1765
      %1813 = vst.msk [vmem:[#allocation2 + $0x40] sm:$0xff] %vm308, %v1767
      %1814 = vst.msk [vmem:[#allocation2 + $0x68] sm:$0xff] %vm308, %v1769
      %1815 = vst.msk [vmem:[#allocation2 + $0x90] sm:$0xff] %vm308, %v1771
      %1816 = vst.msk [vmem:[#allocation2 + $0xb8] sm:$0xff] %vm308, %v1773
      %1817 = vst.msk [vmem:[#allocation2 + $0xe0] sm:$0xff] %vm308, %v1775
      %1818 = vst.msk [vmem:[#allocation2 + $0x108] sm:$0xff] %vm308, %v1777
      %1819 = vst.msk [vmem:[#allocation2 + $0x130] sm:$0xff] %vm308, %v1779
      %1820 = vst.msk [vmem:[#allocation2 + $0x158] sm:$0xff] %vm308, %v1781
      %1821 = vst.msk [vmem:[#allocation2 + $0x180] sm:$0xff] %vm308, %v1783
      %1822 = vst.msk [vmem:[#allocation2 + $0x1a8] sm:$0xff] %vm308, %v1785
      %1823 = vst.msk [vmem:[#allocation2 + $0x1d0] sm:$0xff] %vm308, %v1787
      %1824 = vst.msk [vmem:[#allocation2 + $0x1f8] sm:$0xff] %vm308, %v1789
      %1825 = vst.msk [vmem:[#allocation2 + $0x220] sm:$0xff] %vm308, %v1791
      %1826 = vst.msk [vmem:[#allocation2 + $0x248] sm:$0xff] %vm308, %v1793
      %1827 = vst.msk [vmem:[#allocation2 + $0x270] sm:$0xff] %vm308, %v1795
      %v1828 = vld [vmem:[%s170 + $0x10] sm:$0xe]
      %v1829 = vld [vmem:[%s170 + $0x14] sm:$0xf]
      %v1830 = vld [vmem:[%s170 + $0x18] sm:$0xf]
      %v1831 = vld [vmem:[%s170 + $0x1c] sm:$0xf]
      %v1832 = vld [vmem:[%s170 + $0x20] sm:$0xf]
      %v1833 = vld [vmem:[%s170 + $0x24] sm:$0xf]
      %v1834 = vld [vmem:[%s170 + $0x28] sm:$0xf]
      %v1835 = vld [vmem:[%s170 + $0x2c] sm:$0xf]
      %v1836 = vld [vmem:[%s170 + $0x30] sm:$0xf]
      %v1837 = vld [vmem:[%s170 + $0x34] sm:$0xf]
      %v1838 = vld [vmem:[%s170 + $0x38] sm:$0xf]
      %v1839 = vld [vmem:[%s170 + $0x3c] sm:$0xf]
      %v1840 = vld [vmem:[%s170 + $0x40] sm:$0xf]
      %v1841 = vld [vmem:[%s170 + $0x44] sm:$0xf]
      %v1842 = vld [vmem:[%s170 + $0x48] sm:$0xf]
      %v1843 = vld [vmem:[%s170 + $0x4c] sm:$0xf]
      %v1844 = vld [vmem:[%s170 + $0x50] sm:$0xf]
      %v1845 = vld [vmem:[%s170 + $0x54] sm:$0xf]
      %v1846 = vld [vmem:[%s170 + $0x58] sm:$0xf]
      %v1847 = vld [vmem:[%s170 + $0x5c] sm:$0xf]
      %v1848 = vld [vmem:[%s170 + $0x60] sm:$0xf]
      %v1849 = vld [vmem:[%s170 + $0x64] sm:$0xf]
      %v1850 = vld [vmem:[%s170 + $0x68] sm:$0xf]
      %v1851 = vld [vmem:[%s170 + $0x6c] sm:$0xf]
      %v1852 = vld [vmem:[%s170 + $0x70] sm:$0xf]
      %v1853 = vld [vmem:[%s170 + $0x74] sm:$0xf]
      %v1854 = vld [vmem:[%s170 + $0x78] sm:$0xf]
      %v1855 = vld [vmem:[%s170 + $0x7c] sm:$0xf]
      %v1856 = vld [vmem:[%s170 + $0x80] sm:$0xf]
      %v1857 = vld [vmem:[%s170 + $0x84] sm:$0xf]
      %v1858 = vld [vmem:[%s170 + $0x88] sm:$0xf]
      %v1859 = vld [vmem:[%s170 + $0x8c] sm:$0xf]
      %v1860 = vld [vmem:[%s170 + $0x90] sm:$0x3]
      %v1894 = vunpack.c.l.b16 %v1828
      %v1895 = vunpack.c.l.b16 %v1829
      %v1896 = vunpack.c.l.b16 %v1830
      %v1897 = vunpack.c.l.b16 %v1831
      %v1898 = vunpack.c.l.b16 %v1832
      %v1899 = vunpack.c.l.b16 %v1833
      %v1900 = vunpack.c.l.b16 %v1834
      %v1901 = vunpack.c.l.b16 %v1835
      %v1902 = vunpack.c.l.b16 %v1836
      %v1903 = vunpack.c.l.b16 %v1837
      %v1904 = vunpack.c.l.b16 %v1838
      %v1905 = vunpack.c.l.b16 %v1839
      %v1906 = vunpack.c.l.b16 %v1840
      %v1907 = vunpack.c.l.b16 %v1841
      %v1908 = vunpack.c.l.b16 %v1842
      %v1909 = vunpack.c.l.b16 %v1843
      %v1910 = vunpack.c.l.b16 %v1844
      %v1911 = vunpack.c.l.b16 %v1845
      %v1912 = vunpack.c.l.b16 %v1846
      %v1913 = vunpack.c.l.b16 %v1847
      %v1914 = vunpack.c.l.b16 %v1848
      %v1915 = vunpack.c.l.b16 %v1849
      %v1916 = vunpack.c.l.b16 %v1850
      %v1917 = vunpack.c.l.b16 %v1851
      %v1918 = vunpack.c.l.b16 %v1852
      %v1919 = vunpack.c.l.b16 %v1853
      %v1920 = vunpack.c.l.b16 %v1854
      %v1921 = vunpack.c.l.b16 %v1855
      %v1922 = vunpack.c.l.b16 %v1856
      %v1923 = vunpack.c.l.b16 %v1857
      %v1924 = vunpack.c.l.b16 %v1858
      %v1925 = vunpack.c.l.b16 %v1859
      %v1926 = vunpack.c.l.b16 %v1860
      %v1927 = vpack.c.b16 %v1895, %v1894
      %v1928 = vpack.c.b16 %v1897, %v1896
      %v1929 = vpack.c.b16 %v1899, %v1898
      %v1930 = vpack.c.b16 %v1901, %v1900
      %v1931 = vpack.c.b16 %v1903, %v1902
      %v1932 = vpack.c.b16 %v1905, %v1904
      %v1933 = vpack.c.b16 %v1907, %v1906
      %v1934 = vpack.c.b16 %v1909, %v1908
      %v1935 = vpack.c.b16 %v1911, %v1910
      %v1936 = vpack.c.b16 %v1913, %v1912
      %v1937 = vpack.c.b16 %v1915, %v1914
      %v1938 = vpack.c.b16 %v1917, %v1916
      %v1939 = vpack.c.b16 %v1919, %v1918
      %v1940 = vpack.c.b16 %v1921, %v1920
      %v1941 = vpack.c.b16 %v1923, %v1922
      %v1942 = vpack.c.b16 %v1925, %v1924
      %v1943 = vpack.c.b16 %v1926, %v1926
      %v1945 = vshrl.u32 %v1927, 16
      %v1947 = vrot.slane %v1945, 1
      %v1948 = vshll.u32 %v1927, 16
      %v1950 = vrot.slane %v1948, 2
      %v1951 = vor.u32 %v1947, %v1950
      %v1953 = vshrl.u32 %v1928, 16
      %v1955 = vrot.slane %v1953, 1
      %v1956 = vshll.u32 %v1928, 16
      %v1958 = vrot.slane %v1956, 2
      %v1959 = vor.u32 %v1955, %v1958
      %v1960 = vsel %vm1430, %v1951, %v1959
      %v1962 = vshrl.u32 %v1929, 16
      %v1964 = vrot.slane %v1962, 1
      %v1965 = vshll.u32 %v1929, 16
      %v1967 = vrot.slane %v1965, 2
      %v1968 = vor.u32 %v1964, %v1967
      %v1969 = vsel %vm1430, %v1959, %v1968
      %v1971 = vshrl.u32 %v1930, 16
      %v1973 = vrot.slane %v1971, 1
      %v1974 = vshll.u32 %v1930, 16
      %v1976 = vrot.slane %v1974, 2
      %v1977 = vor.u32 %v1973, %v1976
      %v1978 = vsel %vm1430, %v1968, %v1977
      %v1980 = vshrl.u32 %v1931, 16
      %v1982 = vrot.slane %v1980, 1
      %v1983 = vshll.u32 %v1931, 16
      %v1985 = vrot.slane %v1983, 2
      %v1986 = vor.u32 %v1982, %v1985
      %v1987 = vsel %vm1430, %v1977, %v1986
      %v1989 = vshrl.u32 %v1932, 16
      %v1991 = vrot.slane %v1989, 1
      %v1992 = vshll.u32 %v1932, 16
      %v1994 = vrot.slane %v1992, 2
      %v1995 = vor.u32 %v1991, %v1994
      %v1996 = vsel %vm1430, %v1986, %v1995
      %v1998 = vshrl.u32 %v1933, 16
      %v2000 = vrot.slane %v1998, 1
      %v2001 = vshll.u32 %v1933, 16
      %v2003 = vrot.slane %v2001, 2
      %v2004 = vor.u32 %v2000, %v2003
      %v2005 = vsel %vm1430, %v1995, %v2004
      %v2007 = vshrl.u32 %v1934, 16
      %v2009 = vrot.slane %v2007, 1
      %v2010 = vshll.u32 %v1934, 16
      %v2012 = vrot.slane %v2010, 2
      %v2013 = vor.u32 %v2009, %v2012
      %v2014 = vsel %vm1430, %v2004, %v2013
      %v2016 = vshrl.u32 %v1935, 16
      %v2018 = vrot.slane %v2016, 1
      %v2019 = vshll.u32 %v1935, 16
      %v2021 = vrot.slane %v2019, 2
      %v2022 = vor.u32 %v2018, %v2021
      %v2023 = vsel %vm1430, %v2013, %v2022
      %v2025 = vshrl.u32 %v1936, 16
      %v2027 = vrot.slane %v2025, 1
      %v2028 = vshll.u32 %v1936, 16
      %v2030 = vrot.slane %v2028, 2
      %v2031 = vor.u32 %v2027, %v2030
      %v2032 = vsel %vm1430, %v2022, %v2031
      %v2034 = vshrl.u32 %v1937, 16
      %v2036 = vrot.slane %v2034, 1
      %v2037 = vshll.u32 %v1937, 16
      %v2039 = vrot.slane %v2037, 2
      %v2040 = vor.u32 %v2036, %v2039
      %v2041 = vsel %vm1430, %v2031, %v2040
      %v2043 = vshrl.u32 %v1938, 16
      %v2045 = vrot.slane %v2043, 1
      %v2046 = vshll.u32 %v1938, 16
      %v2048 = vrot.slane %v2046, 2
      %v2049 = vor.u32 %v2045, %v2048
      %v2050 = vsel %vm1430, %v2040, %v2049
      %v2052 = vshrl.u32 %v1939, 16
      %v2054 = vrot.slane %v2052, 1
      %v2055 = vshll.u32 %v1939, 16
      %v2057 = vrot.slane %v2055, 2
      %v2058 = vor.u32 %v2054, %v2057
      %v2059 = vsel %vm1430, %v2049, %v2058
      %v2061 = vshrl.u32 %v1940, 16
      %v2063 = vrot.slane %v2061, 1
      %v2064 = vshll.u32 %v1940, 16
      %v2066 = vrot.slane %v2064, 2
      %v2067 = vor.u32 %v2063, %v2066
      %v2068 = vsel %vm1430, %v2058, %v2067
      %v2070 = vshrl.u32 %v1941, 16
      %v2072 = vrot.slane %v2070, 1
      %v2073 = vshll.u32 %v1941, 16
      %v2075 = vrot.slane %v2073, 2
      %v2076 = vor.u32 %v2072, %v2075
      %v2077 = vsel %vm1430, %v2067, %v2076
      %v2079 = vshrl.u32 %v1942, 16
      %v2081 = vrot.slane %v2079, 1
      %v2082 = vshll.u32 %v1942, 16
      %v2084 = vrot.slane %v2082, 2
      %v2085 = vor.u32 %v2081, %v2084
      %v2086 = vsel %vm1430, %v2076, %v2085
      %v2088 = vshrl.u32 %v1943, 16
      %v2090 = vrot.slane %v2088, 1
      %v2091 = vshll.u32 %v1943, 16
      %v2093 = vrot.slane %v2091, 2
      %v2094 = vor.u32 %v2090, %v2093
      %v2095 = vsel %vm1430, %v2085, %v2094
      %2096 = vrot.lane.b32.xlu0 %v1960, 64
      %v2097 = vpop.permute.xlu0 %2096
      %2098 = vrot.lane.b32.xlu0 %v1969, 64
      %v2099 = vpop.permute.xlu0 %2098
      %2100 = vrot.lane.b32.xlu0 %v1978, 64
      %v2101 = vpop.permute.xlu0 %2100
      %2102 = vrot.lane.b32.xlu0 %v1987, 64
      %v2103 = vpop.permute.xlu0 %2102
      %2104 = vrot.lane.b32.xlu0 %v1996, 64
      %v2105 = vpop.permute.xlu0 %2104
      %2106 = vrot.lane.b32.xlu0 %v2005, 64
      %v2107 = vpop.permute.xlu0 %2106
      %2108 = vrot.lane.b32.xlu0 %v2014, 64
      %v2109 = vpop.permute.xlu0 %2108
      %2110 = vrot.lane.b32.xlu0 %v2023, 64
      %v2111 = vpop.permute.xlu0 %2110
      %2112 = vrot.lane.b32.xlu0 %v2032, 64
      %v2113 = vpop.permute.xlu0 %2112
      %2114 = vrot.lane.b32.xlu0 %v2041, 64
      %v2115 = vpop.permute.xlu0 %2114
      %2116 = vrot.lane.b32.xlu0 %v2050, 64
      %v2117 = vpop.permute.xlu0 %2116
      %2118 = vrot.lane.b32.xlu0 %v2059, 64
      %v2119 = vpop.permute.xlu0 %2118
      %2120 = vrot.lane.b32.xlu0 %v2068, 64
      %v2121 = vpop.permute.xlu0 %2120
      %2122 = vrot.lane.b32.xlu0 %v2077, 64
      %v2123 = vpop.permute.xlu0 %2122
      %2124 = vrot.lane.b32.xlu0 %v2086, 64
      %v2125 = vpop.permute.xlu0 %2124
      %2126 = vrot.lane.b32.xlu0 %v2095, 64
      %v2127 = vpop.permute.xlu0 %2126
      %2144 = vst.msk [vmem:[#allocation2 + $0x18] sm:$0xff] %vm622, %v2097
      %2145 = vst.msk [vmem:[#allocation2 + $0x40] sm:$0xff] %vm622, %v2099
      %2146 = vst.msk [vmem:[#allocation2 + $0x68] sm:$0xff] %vm622, %v2101
      %2147 = vst.msk [vmem:[#allocation2 + $0x90] sm:$0xff] %vm622, %v2103
      %2148 = vst.msk [vmem:[#allocation2 + $0xb8] sm:$0xff] %vm622, %v2105
      %2149 = vst.msk [vmem:[#allocation2 + $0xe0] sm:$0xff] %vm622, %v2107
      %2150 = vst.msk [vmem:[#allocation2 + $0x108] sm:$0xff] %vm622, %v2109
      %2151 = vst.msk [vmem:[#allocation2 + $0x130] sm:$0xff] %vm622, %v2111
      %2152 = vst.msk [vmem:[#allocation2 + $0x158] sm:$0xff] %vm622, %v2113
      %2153 = vst.msk [vmem:[#allocation2 + $0x180] sm:$0xff] %vm622, %v2115
      %2154 = vst.msk [vmem:[#allocation2 + $0x1a8] sm:$0xff] %vm622, %v2117
      %2155 = vst.msk [vmem:[#allocation2 + $0x1d0] sm:$0xff] %vm622, %v2119
      %2156 = vst.msk [vmem:[#allocation2 + $0x1f8] sm:$0xff] %vm622, %v2121
      %2157 = vst.msk [vmem:[#allocation2 + $0x220] sm:$0xff] %vm622, %v2123
      %2158 = vst.msk [vmem:[#allocation2 + $0x248] sm:$0xff] %vm622, %v2125
      %2159 = vst.msk [vmem:[#allocation2 + $0x270] sm:$0xff] %vm622, %v2127
      %v2160 = vld [vmem:[%s170 + $0x10] sm:$0xc]
      %v2161 = vld [vmem:[%s170 + $0x14] sm:$0xf]
      %v2162 = vld [vmem:[%s170 + $0x18] sm:$0xf]
      %v2163 = vld [vmem:[%s170 + $0x1c] sm:$0xf]
      %v2164 = vld [vmem:[%s170 + $0x20] sm:$0xf]
      %v2165 = vld [vmem:[%s170 + $0x24] sm:$0xf]
      %v2166 = vld [vmem:[%s170 + $0x28] sm:$0xf]
      %v2167 = vld [vmem:[%s170 + $0x2c] sm:$0xf]
      %v2168 = vld [vmem:[%s170 + $0x30] sm:$0xf]
      %v2169 = vld [vmem:[%s170 + $0x34] sm:$0xf]
      %v2170 = vld [vmem:[%s170 + $0x38] sm:$0xf]
      %v2171 = vld [vmem:[%s170 + $0x3c] sm:$0xf]
      %v2172 = vld [vmem:[%s170 + $0x40] sm:$0xf]
      %v2173 = vld [vmem:[%s170 + $0x44] sm:$0xf]
      %v2174 = vld [vmem:[%s170 + $0x48] sm:$0xf]
      %v2175 = vld [vmem:[%s170 + $0x4c] sm:$0xf]
      %v2176 = vld [vmem:[%s170 + $0x50] sm:$0xf]
      %v2177 = vld [vmem:[%s170 + $0x54] sm:$0xf]
      %v2178 = vld [vmem:[%s170 + $0x58] sm:$0xf]
      %v2179 = vld [vmem:[%s170 + $0x5c] sm:$0xf]
      %v2180 = vld [vmem:[%s170 + $0x60] sm:$0xf]
      %v2181 = vld [vmem:[%s170 + $0x64] sm:$0xf]
      %v2182 = vld [vmem:[%s170 + $0x68] sm:$0xf]
      %v2183 = vld [vmem:[%s170 + $0x6c] sm:$0xf]
      %v2184 = vld [vmem:[%s170 + $0x70] sm:$0xf]
      %v2185 = vld [vmem:[%s170 + $0x74] sm:$0xf]
      %v2186 = vld [vmem:[%s170 + $0x78] sm:$0xf]
      %v2187 = vld [vmem:[%s170 + $0x7c] sm:$0xf]
      %v2188 = vld [vmem:[%s170 + $0x80] sm:$0xf]
      %v2189 = vld [vmem:[%s170 + $0x84] sm:$0xf]
      %v2190 = vld [vmem:[%s170 + $0x88] sm:$0xf]
      %v2191 = vld [vmem:[%s170 + $0x8c] sm:$0xf]
      %v2192 = vld [vmem:[%s170 + $0x90] sm:$0x3]
      %v2226 = vunpack.c.l.b16 %v2160
      %v2227 = vunpack.c.l.b16 %v2161
      %v2228 = vunpack.c.l.b16 %v2162
      %v2229 = vunpack.c.l.b16 %v2163
      %v2230 = vunpack.c.l.b16 %v2164
      %v2231 = vunpack.c.l.b16 %v2165
      %v2232 = vunpack.c.l.b16 %v2166
      %v2233 = vunpack.c.l.b16 %v2167
      %v2234 = vunpack.c.l.b16 %v2168
      %v2235 = vunpack.c.l.b16 %v2169
      %v2236 = vunpack.c.l.b16 %v2170
      %v2237 = vunpack.c.l.b16 %v2171
      %v2238 = vunpack.c.l.b16 %v2172
      %v2239 = vunpack.c.l.b16 %v2173
      %v2240 = vunpack.c.l.b16 %v2174
      %v2241 = vunpack.c.l.b16 %v2175
      %v2242 = vunpack.c.l.b16 %v2176
      %v2243 = vunpack.c.l.b16 %v2177
      %v2244 = vunpack.c.l.b16 %v2178
      %v2245 = vunpack.c.l.b16 %v2179
      %v2246 = vunpack.c.l.b16 %v2180
      %v2247 = vunpack.c.l.b16 %v2181
      %v2248 = vunpack.c.l.b16 %v2182
      %v2249 = vunpack.c.l.b16 %v2183
      %v2250 = vunpack.c.l.b16 %v2184
      %v2251 = vunpack.c.l.b16 %v2185
      %v2252 = vunpack.c.l.b16 %v2186
      %v2253 = vunpack.c.l.b16 %v2187
      %v2254 = vunpack.c.l.b16 %v2188
      %v2255 = vunpack.c.l.b16 %v2189
      %v2256 = vunpack.c.l.b16 %v2190
      %v2257 = vunpack.c.l.b16 %v2191
      %v2258 = vunpack.c.l.b16 %v2192
      %v2259 = vpack.c.b16 %v2227, %v2226
      %v2260 = vpack.c.b16 %v2229, %v2228
      %v2261 = vpack.c.b16 %v2231, %v2230
      %v2262 = vpack.c.b16 %v2233, %v2232
      %v2263 = vpack.c.b16 %v2235, %v2234
      %v2264 = vpack.c.b16 %v2237, %v2236
      %v2265 = vpack.c.b16 %v2239, %v2238
      %v2266 = vpack.c.b16 %v2241, %v2240
      %v2267 = vpack.c.b16 %v2243, %v2242
      %v2268 = vpack.c.b16 %v2245, %v2244
      %v2269 = vpack.c.b16 %v2247, %v2246
      %v2270 = vpack.c.b16 %v2249, %v2248
      %v2271 = vpack.c.b16 %v2251, %v2250
      %v2272 = vpack.c.b16 %v2253, %v2252
      %v2273 = vpack.c.b16 %v2255, %v2254
      %v2274 = vpack.c.b16 %v2257, %v2256
      %v2275 = vpack.c.b16 %v2258, %v2258
      %vm2276 = vcmask 1045504
      %v2277 = vrot.slane %v2259, 2
      %v2278 = vrot.slane %v2260, 2
      %v2279 = vsel %vm2276, %v2277, %v2278
      %v2280 = vrot.slane %v2261, 2
      %v2281 = vsel %vm2276, %v2278, %v2280
      %v2282 = vrot.slane %v2262, 2
      %v2283 = vsel %vm2276, %v2280, %v2282
      %v2284 = vrot.slane %v2263, 2
      %v2285 = vsel %vm2276, %v2282, %v2284
      %v2286 = vrot.slane %v2264, 2
      %v2287 = vsel %vm2276, %v2284, %v2286
      %v2288 = vrot.slane %v2265, 2
      %v2289 = vsel %vm2276, %v2286, %v2288
      %v2290 = vrot.slane %v2266, 2
      %v2291 = vsel %vm2276, %v2288, %v2290
      %v2292 = vrot.slane %v2267, 2
      %v2293 = vsel %vm2276, %v2290, %v2292
      %v2294 = vrot.slane %v2268, 2
      %v2295 = vsel %vm2276, %v2292, %v2294
      %v2296 = vrot.slane %v2269, 2
      %v2297 = vsel %vm2276, %v2294, %v2296
      %v2298 = vrot.slane %v2270, 2
      %v2299 = vsel %vm2276, %v2296, %v2298
      %v2300 = vrot.slane %v2271, 2
      %v2301 = vsel %vm2276, %v2298, %v2300
      %v2302 = vrot.slane %v2272, 2
      %v2303 = vsel %vm2276, %v2300, %v2302
      %v2304 = vrot.slane %v2273, 2
      %v2305 = vsel %vm2276, %v2302, %v2304
      %v2306 = vrot.slane %v2274, 2
      %v2307 = vsel %vm2276, %v2304, %v2306
      %v2308 = vrot.slane %v2275, 2
      %v2309 = vsel %vm2276, %v2306, %v2308
      %2326 = vst.msk [vmem:[#allocation2 + $0x20] sm:$0xff] %vm308, %v2279
      %2327 = vst.msk [vmem:[#allocation2 + $0x48] sm:$0xff] %vm308, %v2281
      %2328 = vst.msk [vmem:[#allocation2 + $0x70] sm:$0xff] %vm308, %v2283
      %2329 = vst.msk [vmem:[#allocation2 + $0x98] sm:$0xff] %vm308, %v2285
      %2330 = vst.msk [vmem:[#allocation2 + $0xc0] sm:$0xff] %vm308, %v2287
      %2331 = vst.msk [vmem:[#allocation2 + $0xe8] sm:$0xff] %vm308, %v2289
      %2332 = vst.msk [vmem:[#allocation2 + $0x110] sm:$0xff] %vm308, %v2291
      %2333 = vst.msk [vmem:[#allocation2 + $0x138] sm:$0xff] %vm308, %v2293
      %2334 = vst.msk [vmem:[#allocation2 + $0x160] sm:$0xff] %vm308, %v2295
      %2335 = vst.msk [vmem:[#allocation2 + $0x188] sm:$0xff] %vm308, %v2297
      %2336 = vst.msk [vmem:[#allocation2 + $0x1b0] sm:$0xff] %vm308, %v2299
      %2337 = vst.msk [vmem:[#allocation2 + $0x1d8] sm:$0xff] %vm308, %v2301
      %2338 = vst.msk [vmem:[#allocation2 + $0x200] sm:$0xff] %vm308, %v2303
      %2339 = vst.msk [vmem:[#allocation2 + $0x228] sm:$0xff] %vm308, %v2305
      %2340 = vst.msk [vmem:[#allocation2 + $0x250] sm:$0xff] %vm308, %v2307
      %2341 = vst.msk [vmem:[#allocation2 + $0x278] sm:$0xff] %vm308, %v2309
      %v2342 = vld [vmem:[#allocation2] sm:$0xff]
      %v2343 = vld [vmem:[#allocation2 + $0x8] sm:$0xff]
      %v2344 = vld [vmem:[#allocation2 + $0x10] sm:$0xff]
      %v2345 = vld [vmem:[#allocation2 + $0x18] sm:$0xff]
      %v2346 = vld [vmem:[#allocation2 + $0x20] sm:$0xff]
      %v2347 = vld [vmem:[#allocation2 + $0x28] sm:$0xff]
      %v2348 = vld [vmem:[#allocation2 + $0x30] sm:$0xff]
      %v2349 = vld [vmem:[#allocation2 + $0x38] sm:$0xff]
      %v2350 = vld [vmem:[#allocation2 + $0x40] sm:$0xff]
      %v2351 = vld [vmem:[#allocation2 + $0x48] sm:$0xff]
      %v2352 = vld [vmem:[#allocation2 + $0x50] sm:$0xff]
      %v2353 = vld [vmem:[#allocation2 + $0x58] sm:$0xff]
      %v2354 = vld [vmem:[#allocation2 + $0x60] sm:$0xff]
      %v2355 = vld [vmem:[#allocation2 + $0x68] sm:$0xff]
      %v2356 = vld [vmem:[#allocation2 + $0x70] sm:$0xff]
      %v2357 = vld [vmem:[#allocation2 + $0x78] sm:$0xff]
      %v2358 = vld [vmem:[#allocation2 + $0x80] sm:$0xff]
      %v2359 = vld [vmem:[#allocation2 + $0x88] sm:$0xff]
      %v2360 = vld [vmem:[#allocation2 + $0x90] sm:$0xff]
      %v2361 = vld [vmem:[#allocation2 + $0x98] sm:$0xff]
      %v2362 = vld [vmem:[#allocation2 + $0xa0] sm:$0xff]
      %v2363 = vld [vmem:[#allocation2 + $0xa8] sm:$0xff]
      %v2364 = vld [vmem:[#allocation2 + $0xb0] sm:$0xff]
      %v2365 = vld [vmem:[#allocation2 + $0xb8] sm:$0xff]
      %v2366 = vld [vmem:[#allocation2 + $0xc0] sm:$0xff]
      %v2367 = vld [vmem:[#allocation2 + $0xc8] sm:$0xff]
      %v2368 = vld [vmem:[#allocation2 + $0xd0] sm:$0xff]
      %v2369 = vld [vmem:[#allocation2 + $0xd8] sm:$0xff]
      %v2370 = vld [vmem:[#allocation2 + $0xe0] sm:$0xff]
      %v2371 = vld [vmem:[#allocation2 + $0xe8] sm:$0xff]
      %v2372 = vld [vmem:[#allocation2 + $0xf0] sm:$0xff]
      %v2373 = vld [vmem:[#allocation2 + $0xf8] sm:$0xff]
      %v2374 = vld [vmem:[#allocation2 + $0x100] sm:$0xff]
      %v2375 = vld [vmem:[#allocation2 + $0x108] sm:$0xff]
      %v2376 = vld [vmem:[#allocation2 + $0x110] sm:$0xff]
      %v2377 = vld [vmem:[#allocation2 + $0x118] sm:$0xff]
      %v2378 = vld [vmem:[#allocation2 + $0x120] sm:$0xff]
      %v2379 = vld [vmem:[#allocation2 + $0x128] sm:$0xff]
      %v2380 = vld [vmem:[#allocation2 + $0x130] sm:$0xff]
      %v2381 = vld [vmem:[#allocation2 + $0x138] sm:$0xff]
      %v2382 = vld [vmem:[#allocation2 + $0x140] sm:$0xff]
      %v2383 = vld [vmem:[#allocation2 + $0x148] sm:$0xff]
      %v2384 = vld [vmem:[#allocation2 + $0x150] sm:$0xff]
      %v2385 = vld [vmem:[#allocation2 + $0x158] sm:$0xff]
      %v2386 = vld [vmem:[#allocation2 + $0x160] sm:$0xff]
      %v2387 = vld [vmem:[#allocation2 + $0x168] sm:$0xff]
      %v2388 = vld [vmem:[#allocation2 + $0x170] sm:$0xff]
      %v2389 = vld [vmem:[#allocation2 + $0x178] sm:$0xff]
      %v2390 = vld [vmem:[#allocation2 + $0x180] sm:$0xff]
      %v2391 = vld [vmem:[#allocation2 + $0x188] sm:$0xff]
      %v2392 = vld [vmem:[#allocation2 + $0x190] sm:$0xff]
      %v2393 = vld [vmem:[#allocation2 + $0x198] sm:$0xff]
      %v2394 = vld [vmem:[#allocation2 + $0x1a0] sm:$0xff]
      %v2395 = vld [vmem:[#allocation2 + $0x1a8] sm:$0xff]
      %v2396 = vld [vmem:[#allocation2 + $0x1b0] sm:$0xff]
      %v2397 = vld [vmem:[#allocation2 + $0x1b8] sm:$0xff]
      %v2398 = vld [vmem:[#allocation2 + $0x1c0] sm:$0xff]
      %v2399 = vld [vmem:[#allocation2 + $0x1c8] sm:$0xff]
      %v2400 = vld [vmem:[#allocation2 + $0x1d0] sm:$0xff]
      %v2401 = vld [vmem:[#allocation2 + $0x1d8] sm:$0xff]
      %v2402 = vld [vmem:[#allocation2 + $0x1e0] sm:$0xff]
      %v2403 = vld [vmem:[#allocation2 + $0x1e8] sm:$0xff]
      %v2404 = vld [vmem:[#allocation2 + $0x1f0] sm:$0xff]
      %v2405 = vld [vmem:[#allocation2 + $0x1f8] sm:$0xff]
      %v2406 = vld [vmem:[#allocation2 + $0x200] sm:$0xff]
      %v2407 = vld [vmem:[#allocation2 + $0x208] sm:$0xff]
      %v2408 = vld [vmem:[#allocation2 + $0x210] sm:$0xff]
      %v2409 = vld [vmem:[#allocation2 + $0x218] sm:$0xff]
      %v2410 = vld [vmem:[#allocation2 + $0x220] sm:$0xff]
      %v2411 = vld [vmem:[#allocation2 + $0x228] sm:$0xff]
      %v2412 = vld [vmem:[#allocation2 + $0x230] sm:$0xff]
      %v2413 = vld [vmem:[#allocation2 + $0x238] sm:$0xff]
      %v2414 = vld [vmem:[#allocation2 + $0x240] sm:$0xff]
      %v2415 = vld [vmem:[#allocation2 + $0x248] sm:$0xff]
      %v2416 = vld [vmem:[#allocation2 + $0x250] sm:$0xff]
      %v2417 = vld [vmem:[#allocation2 + $0x258] sm:$0xff]
      %v2418 = vld [vmem:[#allocation2 + $0x260] sm:$0xff]
      %v2419 = vld [vmem:[#allocation2 + $0x268] sm:$0xff]
      %v2420 = vld [vmem:[#allocation2 + $0x270] sm:$0xff]
      %v2421 = vld [vmem:[#allocation2 + $0x278] sm:$0xff]
      %v2422 = vld [vmem:[%s1] sm:$0xf]
      %v2423 = vld [vmem:[%s1 + $0x4] sm:$0xf]
      %v2424 = vld [vmem:[%s1 + $0x8] sm:$0xf]
      %v2425 = vld [vmem:[%s1 + $0xc] sm:$0xf]
      %v2426 = vld [vmem:[%s1 + $0x10] sm:$0xf]
      %v2427 = vld [vmem:[%s1 + $0x14] sm:$0xf]
      %v2428 = vld [vmem:[%s1 + $0x18] sm:$0xf]
      %v2429 = vld [vmem:[%s1 + $0x1c] sm:$0xf]
      %v2430 = vld [vmem:[%s1 + $0x20] sm:$0xf]
      %v2431 = vld [vmem:[%s1 + $0x24] sm:$0xf]
      %v2432 = vld [vmem:[%s1 + $0x28] sm:$0xf]
      %v2433 = vld [vmem:[%s1 + $0x2c] sm:$0xf]
      %v2434 = vld [vmem:[%s1 + $0x30] sm:$0xf]
      %v2435 = vld [vmem:[%s1 + $0x34] sm:$0xf]
      %v2436 = vld [vmem:[%s1 + $0x38] sm:$0xf]
      %v2437 = vld [vmem:[%s1 + $0x3c] sm:$0xf]
      %v2438 = vld [vmem:[%s1 + $0x40] sm:$0xf]
      %v2439 = vld [vmem:[%s1 + $0x44] sm:$0xf]
      %v2440 = vld [vmem:[%s1 + $0x48] sm:$0xf]
      %v2441 = vld [vmem:[%s1 + $0x4c] sm:$0xf]
      %v2442 = vld [vmem:[%s1 + $0x50] sm:$0xf]
      %v2443 = vld [vmem:[%s1 + $0x54] sm:$0xf]
      %v2444 = vld [vmem:[%s1 + $0x58] sm:$0xf]
      %v2445 = vld [vmem:[%s1 + $0x5c] sm:$0xf]
      %v2446 = vld [vmem:[%s1 + $0x60] sm:$0xf]
      %v2447 = vld [vmem:[%s1 + $0x64] sm:$0xf]
      %v2448 = vld [vmem:[%s1 + $0x68] sm:$0xf]
      %v2449 = vld [vmem:[%s1 + $0x6c] sm:$0xf]
      %v2450 = vld [vmem:[%s1 + $0x70] sm:$0xf]
      %v2451 = vld [vmem:[%s1 + $0x74] sm:$0xf]
      %v2452 = vld [vmem:[%s1 + $0x78] sm:$0xf]
      %v2453 = vld [vmem:[%s1 + $0x7c] sm:$0xf]
      %v2454 = vld [vmem:[%s1 + $0x80] sm:$0xf]
      %v2455 = vld [vmem:[%s1 + $0x84] sm:$0xf]
      %v2456 = vld [vmem:[%s1 + $0x88] sm:$0xf]
      %v2457 = vld [vmem:[%s1 + $0x8c] sm:$0xf]
      %v2458 = vld [vmem:[%s1 + $0x90] sm:$0xf]
      %v2459 = vld [vmem:[%s1 + $0x94] sm:$0xf]
      %v2460 = vld [vmem:[%s1 + $0x98] sm:$0xf]
      %v2461 = vld [vmem:[%s1 + $0x9c] sm:$0xf]
      %v2462 = vld [vmem:[%s1 + $0xa0] sm:$0xf]
      %v2463 = vld [vmem:[%s1 + $0xa4] sm:$0xf]
      %v2464 = vld [vmem:[%s1 + $0xa8] sm:$0xf]
      %v2465 = vld [vmem:[%s1 + $0xac] sm:$0xf]
      %v2466 = vld [vmem:[%s1 + $0xb0] sm:$0xf]
      %v2467 = vld [vmem:[%s1 + $0xb4] sm:$0xf]
      %v2468 = vld [vmem:[%s1 + $0xb8] sm:$0xf]
      %v2469 = vld [vmem:[%s1 + $0xbc] sm:$0xf]
      %v2470 = vld [vmem:[%s1 + $0xc0] sm:$0xf]
      %v2471 = vld [vmem:[%s1 + $0xc4] sm:$0xf]
      %v2472 = vld [vmem:[%s1 + $0xc8] sm:$0xf]
      %v2473 = vld [vmem:[%s1 + $0xcc] sm:$0xf]
      %v2474 = vld [vmem:[%s1 + $0xd0] sm:$0xf]
      %v2475 = vld [vmem:[%s1 + $0xd4] sm:$0xf]
      %v2476 = vld [vmem:[%s1 + $0xd8] sm:$0xf]
      %v2477 = vld [vmem:[%s1 + $0xdc] sm:$0xf]
      %v2478 = vld [vmem:[%s1 + $0xe0] sm:$0xf]
      %v2479 = vld [vmem:[%s1 + $0xe4] sm:$0xf]
      %v2480 = vld [vmem:[%s1 + $0xe8] sm:$0xf]
      %v2481 = vld [vmem:[%s1 + $0xec] sm:$0xf]
      %v2482 = vld [vmem:[%s1 + $0xf0] sm:$0xf]
      %v2483 = vld [vmem:[%s1 + $0xf4] sm:$0xf]
      %v2484 = vld [vmem:[%s1 + $0xf8] sm:$0xf]
      %v2485 = vld [vmem:[%s1 + $0xfc] sm:$0xf]
      %v2486 = vld [vmem:[%s1 + $0x100] sm:$0xf]
      %v2487 = vld [vmem:[%s1 + $0x104] sm:$0xf]
      %v2488 = vld [vmem:[%s1 + $0x108] sm:$0xf]
      %v2489 = vld [vmem:[%s1 + $0x10c] sm:$0xf]
      %v2490 = vld [vmem:[%s1 + $0x110] sm:$0xf]
      %v2491 = vld [vmem:[%s1 + $0x114] sm:$0xf]
      %v2492 = vld [vmem:[%s1 + $0x118] sm:$0xf]
      %v2493 = vld [vmem:[%s1 + $0x11c] sm:$0xf]
      %v2566 = vunpack.c.l.b16 %v2422
      %v2567 = vunpack.c.l.b16 %v2423
      %v2568 = vunpack.c.l.b16 %v2424
      %v2569 = vunpack.c.l.b16 %v2425
      %v2570 = vunpack.c.l.b16 %v2426
      %v2571 = vunpack.c.l.b16 %v2427
      %v2572 = vunpack.c.l.b16 %v2428
      %v2573 = vunpack.c.l.b16 %v2429
      %v2574 = vunpack.c.l.b16 %v2430
      %v2575 = vunpack.c.l.b16 %v2431
      %v2576 = vunpack.c.l.b16 %v2432
      %v2577 = vunpack.c.l.b16 %v2433
      %v2578 = vunpack.c.l.b16 %v2434
      %v2579 = vunpack.c.l.b16 %v2435
      %v2580 = vunpack.c.l.b16 %v2436
      %v2581 = vunpack.c.l.b16 %v2437
      %v2582 = vunpack.c.l.b16 %v2438
      %v2583 = vunpack.c.l.b16 %v2439
      %v2584 = vunpack.c.l.b16 %v2440
      %v2585 = vunpack.c.l.b16 %v2441
      %v2586 = vunpack.c.l.b16 %v2442
      %v2587 = vunpack.c.l.b16 %v2443
      %v2588 = vunpack.c.l.b16 %v2444
      %v2589 = vunpack.c.l.b16 %v2445
      %v2590 = vunpack.c.l.b16 %v2446
      %v2591 = vunpack.c.l.b16 %v2447
      %v2592 = vunpack.c.l.b16 %v2448
      %v2593 = vunpack.c.l.b16 %v2449
      %v2594 = vunpack.c.l.b16 %v2450
      %v2595 = vunpack.c.l.b16 %v2451
      %v2596 = vunpack.c.l.b16 %v2452
      %v2597 = vunpack.c.l.b16 %v2453
      %v2598 = vunpack.c.l.b16 %v2454
      %v2599 = vunpack.c.l.b16 %v2455
      %v2600 = vunpack.c.l.b16 %v2456
      %v2601 = vunpack.c.l.b16 %v2457
      %v2602 = vunpack.c.l.b16 %v2458
      %v2603 = vunpack.c.l.b16 %v2459
      %v2604 = vunpack.c.l.b16 %v2460
      %v2605 = vunpack.c.l.b16 %v2461
      %v2606 = vunpack.c.l.b16 %v2462
      %v2607 = vunpack.c.l.b16 %v2463
      %v2608 = vunpack.c.l.b16 %v2464
      %v2609 = vunpack.c.l.b16 %v2465
      %v2610 = vunpack.c.l.b16 %v2466
      %v2611 = vunpack.c.l.b16 %v2467
      %v2612 = vunpack.c.l.b16 %v2468
      %v2613 = vunpack.c.l.b16 %v2469
      %v2614 = vunpack.c.l.b16 %v2470
      %v2615 = vunpack.c.l.b16 %v2471
      %v2616 = vunpack.c.l.b16 %v2472
      %v2617 = vunpack.c.l.b16 %v2473
      %v2618 = vunpack.c.l.b16 %v2474
      %v2619 = vunpack.c.l.b16 %v2475
      %v2620 = vunpack.c.l.b16 %v2476
      %v2621 = vunpack.c.l.b16 %v2477
      %v2622 = vunpack.c.l.b16 %v2478
      %v2623 = vunpack.c.l.b16 %v2479
      %v2624 = vunpack.c.l.b16 %v2480
      %v2625 = vunpack.c.l.b16 %v2481
      %v2626 = vunpack.c.l.b16 %v2482
      %v2627 = vunpack.c.l.b16 %v2483
      %v2628 = vunpack.c.l.b16 %v2484
      %v2629 = vunpack.c.l.b16 %v2485
      %v2630 = vunpack.c.l.b16 %v2486
      %v2631 = vunpack.c.l.b16 %v2487
      %v2632 = vunpack.c.l.b16 %v2488
      %v2633 = vunpack.c.l.b16 %v2489
      %v2634 = vunpack.c.l.b16 %v2490
      %v2635 = vunpack.c.l.b16 %v2491
      %v2636 = vunpack.c.l.b16 %v2492
      %v2637 = vunpack.c.l.b16 %v2493
      %v2638 = vpack.c.b16 %v2567, %v2566
      %v2639 = vpack.c.b16 %v2569, %v2568
      %v2640 = vpack.c.b16 %v2571, %v2570
      %v2641 = vpack.c.b16 %v2573, %v2572
      %v2642 = vpack.c.b16 %v2575, %v2574
      %v2643 = vpack.c.b16 %v2577, %v2576
      %v2644 = vpack.c.b16 %v2579, %v2578
      %v2645 = vpack.c.b16 %v2581, %v2580
      %v2646 = vpack.c.b16 %v2583, %v2582
      %v2647 = vpack.c.b16 %v2585, %v2584
      %v2648 = vpack.c.b16 %v2587, %v2586
      %v2649 = vpack.c.b16 %v2589, %v2588
      %v2650 = vpack.c.b16 %v2591, %v2590
      %v2651 = vpack.c.b16 %v2593, %v2592
      %v2652 = vpack.c.b16 %v2595, %v2594
      %v2653 = vpack.c.b16 %v2597, %v2596
      %v2654 = vpack.c.b16 %v2599, %v2598
      %v2655 = vpack.c.b16 %v2601, %v2600
      %v2656 = vpack.c.b16 %v2603, %v2602
      %v2657 = vpack.c.b16 %v2605, %v2604
      %v2658 = vpack.c.b16 %v2607, %v2606
      %v2659 = vpack.c.b16 %v2609, %v2608
      %v2660 = vpack.c.b16 %v2611, %v2610
      %v2661 = vpack.c.b16 %v2613, %v2612
      %v2662 = vpack.c.b16 %v2615, %v2614
      %v2663 = vpack.c.b16 %v2617, %v2616
      %v2664 = vpack.c.b16 %v2619, %v2618
      %v2665 = vpack.c.b16 %v2621, %v2620
      %v2666 = vpack.c.b16 %v2623, %v2622
      %v2667 = vpack.c.b16 %v2625, %v2624
      %v2668 = vpack.c.b16 %v2627, %v2626
      %v2669 = vpack.c.b16 %v2629, %v2628
      %v2670 = vpack.c.b16 %v2631, %v2630
      %v2671 = vpack.c.b16 %v2633, %v2632
      %v2672 = vpack.c.b16 %v2635, %v2634
      %v2673 = vpack.c.b16 %v2637, %v2636
      %v2711 = vsel %vm308, %v2346, 0
      %v2714 = vsel %vm308, %v2351, 0
      %v2717 = vsel %vm308, %v2356, 0
      %v2720 = vsel %vm308, %v2361, 0
      %v2723 = vsel %vm308, %v2366, 0
      %v2726 = vsel %vm308, %v2371, 0
      %v2729 = vsel %vm308, %v2376, 0
      %v2732 = vsel %vm308, %v2381, 0
      %v2735 = vsel %vm308, %v2386, 0
      %v2738 = vsel %vm308, %v2391, 0
      %v2741 = vsel %vm308, %v2396, 0
      %v2744 = vsel %vm308, %v2401, 0
      %v2747 = vsel %vm308, %v2406, 0
      %v2750 = vsel %vm308, %v2411, 0
      %v2753 = vsel %vm308, %v2416, 0
      %v2756 = vsel %vm308, %v2421, 0
      %2758 = vmatprep.subr.bf16.mxu0 0
      %2759 = vmatpush1.bf16.msra.mxu0 %v2638
      %2760 = vmatprep.subr.bf16.mxu0 0
      %2761 = vmatpush1.bf16.msra.mxu0 %v2639
      %2762 = vmatprep.subr.bf16.mxu0 0
      %2763 = vmatpush1.bf16.msra.mxu0 %v2640
      %2764 = vmatprep.subr.bf16.mxu0 0
      %2765 = vmatpush1.bf16.msra.mxu0 %v2641
      %2766 = vmatprep.subr.bf16.mxu0 0
      %2767 = vmatpush1.bf16.msra.mxu0 %v2642
      %2768 = vmatprep.subr.bf16.mxu0 0
      %2769 = vmatpush1.bf16.msra.mxu0 %v2643
      %2770 = vmatprep.subr.bf16.mxu0 0
      %2771 = vmatpush1.bf16.msra.mxu0 %v2644
      %2772 = vmatprep.subr.bf16.mxu0 0
      %2773 = vmatpush1.bf16.msra.mxu0 %v2645
      %2774 = vmatprep.subr.bf16.mxu0 0
      %2775 = vmatpush1.bf16.msra.mxu0 %v2646
      %2776 = vmatprep.subr.bf16.mxu0 0
      %2777 = vmatpush1.bf16.msra.mxu0 %v2647
      %2778 = vmatprep.subr.bf16.mxu0 0
      %2779 = vmatpush1.bf16.msra.mxu0 %v2648
      %2780 = vmatprep.subr.bf16.mxu0 0
      %2781 = vmatpush1.bf16.msra.mxu0 %v2649
      %2782 = vmatprep.subr.bf16.mxu0 0
      %2783 = vmatpush1.bf16.msra.mxu0 %v2650
      %2784 = vmatprep.subr.bf16.mxu0 0
      %2785 = vmatpush1.bf16.msra.mxu0 %v2651
      %2786 = vmatprep.subr.bf16.mxu0 0
      %2787 = vmatpush1.bf16.msra.mxu0 %v2652
      %2788 = vmatprep.subr.bf16.mxu0 0
      %2789 = vmatpush1.bf16.msra.mxu0 %v2653
      %2790 = vmatprep.mubr.bf16.mxu0 %v2343
      %2791 = vmatmul.mubr.bf16.gmra.mrb[0].mxu0 %v2342
      %v2792 = vpop.f32.mrb[0].mxu0
      %v2793 = vadd.f32 0.0, %v2792
      %v2794 = vpop.f32.mrb[0].mxu0
      %v2795 = vpop.f32.mrb[0].mxu0
      %v2796 = vadd.f32 0.0, %v2795
      %v2797 = vpop.f32.mrb[0].mxu0
      %2798 = vmatprep.mubr.bf16.mxu0 %v2348
      %2799 = vmatmul.mubr.bf16.gmra.mrb[0].mxu0 %v2347
      %v2800 = vpop.f32.mrb[0].mxu0
      %v2801 = vadd.f32 0.0, %v2800
      %v2802 = vpop.f32.mrb[0].mxu0
      %v2803 = vpop.f32.mrb[0].mxu0
      %v2804 = vadd.f32 0.0, %v2803
      %v2805 = vpop.f32.mrb[0].mxu0
      %2806 = vmatprep.mubr.bf16.mxu0 %v2353
      %2807 = vmatmul.mubr.bf16.gmra.mrb[0].mxu0 %v2352
      %v2808 = vpop.f32.mrb[0].mxu0
      %v2809 = vadd.f32 0.0, %v2808
      %v2810 = vpop.f32.mrb[0].mxu0
      %v2811 = vpop.f32.mrb[0].mxu0
      %v2812 = vadd.f32 0.0, %v2811
      %v2813 = vpop.f32.mrb[0].mxu0
      %2814 = vmatprep.mubr.bf16.mxu0 %v2358
      %2815 = vmatmul.mubr.bf16.gmra.mrb[0].mxu0 %v2357
      %v2816 = vpop.f32.mrb[0].mxu0
      %v2817 = vadd.f32 0.0, %v2816
      %v2818 = vpop.f32.mrb[0].mxu0
      %v2819 = vpop.f32.mrb[0].mxu0
      %v2820 = vadd.f32 0.0, %v2819
      %v2821 = vpop.f32.mrb[0].mxu0
      %2822 = vmatprep.mubr.bf16.mxu0 %v2363
      %2823 = vmatmul.mubr.bf16.gmra.mrb[0].mxu0 %v2362
      %v2824 = vpop.f32.mrb[0].mxu0
      %v2825 = vadd.f32 0.0, %v2824
      %v2826 = vpop.f32.mrb[0].mxu0
      %v2827 = vpop.f32.mrb[0].mxu0
      %v2828 = vadd.f32 0.0, %v2827
      %v2829 = vpop.f32.mrb[0].mxu0
      %2830 = vmatprep.mubr.bf16.mxu0 %v2368
      %2831 = vmatmul.mubr.bf16.gmra.mrb[0].mxu0 %v2367
      %v2832 = vpop.f32.mrb[0].mxu0
      %v2833 = vadd.f32 0.0, %v2832
      %v2834 = vpop.f32.mrb[0].mxu0
      %v2835 = vpop.f32.mrb[0].mxu0
      %v2836 = vadd.f32 0.0, %v2835
      %v2837 = vpop.f32.mrb[0].mxu0
      %2838 = vmatprep.mubr.bf16.mxu0 %v2373
      %2839 = vmatmul.mubr.bf16.gmra.mrb[0].mxu0 %v2372
      %v2840 = vpop.f32.mrb[0].mxu0
      %v2841 = vadd.f32 0.0, %v2840
      %v2842 = vpop.f32.mrb[0].mxu0
      %v2843 = vpop.f32.mrb[0].mxu0
      %v2844 = vadd.f32 0.0, %v2843
      %v2845 = vpop.f32.mrb[0].mxu0
      %2846 = vmatprep.mubr.bf16.mxu0 %v2378
      %2847 = vmatmul.mubr.bf16.gmra.mrb[0].mxu0 %v2377
      %v2848 = vpop.f32.mrb[0].mxu0
      %v2849 = vadd.f32 0.0, %v2848
      %v2850 = vpop.f32.mrb[0].mxu0
      %v2851 = vpop.f32.mrb[0].mxu0
      %v2852 = vadd.f32 0.0, %v2851
      %v2853 = vpop.f32.mrb[0].mxu0
      %2854 = vmatprep.mubr.bf16.mxu0 %v2383
      %2855 = vmatmul.mubr.bf16.gmra.mrb[0].mxu0 %v2382
      %v2856 = vpop.f32.mrb[0].mxu0
      %v2857 = vadd.f32 0.0, %v2856
      %v2858 = vpop.f32.mrb[0].mxu0
      %v2859 = vpop.f32.mrb[0].mxu0
      %v2860 = vadd.f32 0.0, %v2859
      %v2861 = vpop.f32.mrb[0].mxu0
      %2862 = vmatprep.mubr.bf16.mxu0 %v2388
      %2863 = vmatmul.mubr.bf16.gmra.mrb[0].mxu0 %v2387
      %v2864 = vpop.f32.mrb[0].mxu0
      %v2865 = vadd.f32 0.0, %v2864
      %v2866 = vpop.f32.mrb[0].mxu0
      %v2867 = vpop.f32.mrb[0].mxu0
      %v2868 = vadd.f32 0.0, %v2867
      %v2869 = vpop.f32.mrb[0].mxu0
      %2870 = vmatprep.mubr.bf16.mxu0 %v2393
      %2871 = vmatmul.mubr.bf16.gmra.mrb[0].mxu0 %v2392
      %v2872 = vpop.f32.mrb[0].mxu0
      %v2873 = vadd.f32 0.0, %v2872
      %v2874 = vpop.f32.mrb[0].mxu0
      %v2875 = vpop.f32.mrb[0].mxu0
      %v2876 = vadd.f32 0.0, %v2875
      %v2877 = vpop.f32.mrb[0].mxu0
      %2878 = vmatprep.mubr.bf16.mxu0 %v2398
      %2879 = vmatmul.mubr.bf16.gmra.mrb[0].mxu0 %v2397
      %v2880 = vpop.f32.mrb[0].mxu0
      %v2881 = vadd.f32 0.0, %v2880
      %v2882 = vpop.f32.mrb[0].mxu0
      %v2883 = vpop.f32.mrb[0].mxu0
      %v2884 = vadd.f32 0.0, %v2883
      %v2885 = vpop.f32.mrb[0].mxu0
      %2886 = vmatprep.mubr.bf16.mxu0 %v2403
      %2887 = vmatmul.mubr.bf16.gmra.mrb[0].mxu0 %v2402
      %v2888 = vpop.f32.mrb[0].mxu0
      %v2889 = vadd.f32 0.0, %v2888
      %v2890 = vpop.f32.mrb[0].mxu0
      %v2891 = vpop.f32.mrb[0].mxu0
      %v2892 = vadd.f32 0.0, %v2891
      %v2893 = vpop.f32.mrb[0].mxu0
      %2894 = vmatprep.mubr.bf16.mxu0 %v2408
      %2895 = vmatmul.mubr.bf16.gmra.mrb[0].mxu0 %v2407
      %v2896 = vpop.f32.mrb[0].mxu0
      %v2897 = vadd.f32 0.0, %v2896
      %v2898 = vpop.f32.mrb[0].mxu0
      %v2899 = vpop.f32.mrb[0].mxu0
      %v2900 = vadd.f32 0.0, %v2899
      %v2901 = vpop.f32.mrb[0].mxu0
      %2902 = vmatprep.mubr.bf16.mxu0 %v2413
      %2903 = vmatmul.mubr.bf16.gmra.mrb[0].mxu0 %v2412
      %v2904 = vpop.f32.mrb[0].mxu0
      %v2905 = vadd.f32 0.0, %v2904
      %v2906 = vpop.f32.mrb[0].mxu0
      %v2907 = vpop.f32.mrb[0].mxu0
      %v2908 = vadd.f32 0.0, %v2907
      %v2909 = vpop.f32.mrb[0].mxu0
      %2910 = vmatprep.mubr.bf16.mxu0 %v2418
      %2911 = vmatmul.mubr.bf16.gmra.mrb[0].mxu0 %v2417
      %v2912 = vpop.f32.mrb[0].mxu0
      %v2913 = vadd.f32 0.0, %v2912
      %v2914 = vpop.f32.mrb[0].mxu0
      %v2915 = vpop.f32.mrb[0].mxu0
      %v2916 = vadd.f32 0.0, %v2915
      %v2917 = vpop.f32.mrb[0].mxu0
      %2918 = vdwg.mxu0
      %2919 = vmatprep.subr.bf16.mxu0 0
      %2920 = vmatpush1.bf16.msra.mxu0 %v2654
      %2921 = vmatprep.subr.bf16.mxu0 0
      %2922 = vmatpush1.bf16.msra.mxu0 %v2655
      %2923 = vmatprep.subr.bf16.mxu0 0
      %2924 = vmatpush1.bf16.msra.mxu0 %v2656
      %2925 = vmatprep.subr.bf16.mxu0 0
      %2926 = vmatpush1.bf16.msra.mxu0 %v2657
      %2927 = vmatprep.subr.bf16.mxu0 0
      %2928 = vmatpush1.bf16.msra.mxu0 %v2658
      %2929 = vmatprep.subr.bf16.mxu0 0
      %2930 = vmatpush1.bf16.msra.mxu0 %v2659
      %2931 = vmatprep.subr.bf16.mxu0 0
      %2932 = vmatpush1.bf16.msra.mxu0 %v2660
      %2933 = vmatprep.subr.bf16.mxu0 0
      %2934 = vmatpush1.bf16.msra.mxu0 %v2661
      %2935 = vmatprep.subr.bf16.mxu0 0
      %2936 = vmatpush1.bf16.msra.mxu0 %v2662
      %2937 = vmatprep.subr.bf16.mxu0 0
      %2938 = vmatpush1.bf16.msra.mxu0 %v2663
      %2939 = vmatprep.subr.bf16.mxu0 0
      %2940 = vmatpush1.bf16.msra.mxu0 %v2664
      %2941 = vmatprep.subr.bf16.mxu0 0
      %2942 = vmatpush1.bf16.msra.mxu0 %v2665
      %2943 = vmatprep.subr.bf16.mxu0 0
      %2944 = vmatpush1.bf16.msra.mxu0 %v2666
      %2945 = vmatprep.subr.bf16.mxu0 0
      %2946 = vmatpush1.bf16.msra.mxu0 %v2667
      %2947 = vmatprep.subr.bf16.mxu0 0
      %2948 = vmatpush1.bf16.msra.mxu0 %v2668
      %2949 = vmatprep.subr.bf16.mxu0 0
      %2950 = vmatpush1.bf16.msra.mxu0 %v2669
      %2951 = vmatprep.mubr.bf16.mxu0 %v2345
      %2952 = vmatmul.mubr.bf16.gmra.mrb[0].mxu0 %v2344
      %v2953 = vpop.f32.mrb[0].mxu0
      %v2954 = vadd.f32 %v2793, %v2953
      %v2955 = vpop.f32.mrb[0].mxu0
      %v2956 = vpop.f32.mrb[0].mxu0
      %v2957 = vadd.f32 %v2796, %v2956
      %v2958 = vpop.f32.mrb[0].mxu0
      %2959 = vmatprep.mubr.bf16.mxu0 %v2350
      %2960 = vmatmul.mubr.bf16.gmra.mrb[0].mxu0 %v2349
      %v2961 = vpop.f32.mrb[0].mxu0
      %v2962 = vadd.f32 %v2801, %v2961
      %v2963 = vpop.f32.mrb[0].mxu0
      %v2964 = vpop.f32.mrb[0].mxu0
      %v2965 = vadd.f32 %v2804, %v2964
      %v2966 = vpop.f32.mrb[0].mxu0
      %2967 = vmatprep.mubr.bf16.mxu0 %v2355
      %2968 = vmatmul.mubr.bf16.gmra.mrb[0].mxu0 %v2354
      %v2969 = vpop.f32.mrb[0].mxu0
      %v2970 = vadd.f32 %v2809, %v2969
      %v2971 = vpop.f32.mrb[0].mxu0
      %v2972 = vpop.f32.mrb[0].mxu0
      %v2973 = vadd.f32 %v2812, %v2972
      %v2974 = vpop.f32.mrb[0].mxu0
      %2975 = vmatprep.mubr.bf16.mxu0 %v2360
      %2976 = vmatmul.mubr.bf16.gmra.mrb[0].mxu0 %v2359
      %v2977 = vpop.f32.mrb[0].mxu0
      %v2978 = vadd.f32 %v2817, %v2977
      %v2979 = vpop.f32.mrb[0].mxu0
      %v2980 = vpop.f32.mrb[0].mxu0
      %v2981 = vadd.f32 %v2820, %v2980
      %v2982 = vpop.f32.mrb[0].mxu0
      %2983 = vmatprep.mubr.bf16.mxu0 %v2365
      %2984 = vmatmul.mubr.bf16.gmra.mrb[0].mxu0 %v2364
      %v2985 = vpop.f32.mrb[0].mxu0
      %v2986 = vadd.f32 %v2825, %v2985
      %v2987 = vpop.f32.mrb[0].mxu0
      %v2988 = vpop.f32.mrb[0].mxu0
      %v2989 = vadd.f32 %v2828, %v2988
      %v2990 = vpop.f32.mrb[0].mxu0
      %2991 = vmatprep.mubr.bf16.mxu0 %v2370
      %2992 = vmatmul.mubr.bf16.gmra.mrb[0].mxu0 %v2369
      %v2993 = vpop.f32.mrb[0].mxu0
      %v2994 = vadd.f32 %v2833, %v2993
      %v2995 = vpop.f32.mrb[0].mxu0
      %v2996 = vpop.f32.mrb[0].mxu0
      %v2997 = vadd.f32 %v2836, %v2996
      %v2998 = vpop.f32.mrb[0].mxu0
      %2999 = vmatprep.mubr.bf16.mxu0 %v2375
      %3000 = vmatmul.mubr.bf16.gmra.mrb[0].mxu0 %v2374
      %v3001 = vpop.f32.mrb[0].mxu0
      %v3002 = vadd.f32 %v2841, %v3001
      %v3003 = vpop.f32.mrb[0].mxu0
      %v3004 = vpop.f32.mrb[0].mxu0
      %v3005 = vadd.f32 %v2844, %v3004
      %v3006 = vpop.f32.mrb[0].mxu0
      %3007 = vmatprep.mubr.bf16.mxu0 %v2380
      %3008 = vmatmul.mubr.bf16.gmra.mrb[0].mxu0 %v2379
      %v3009 = vpop.f32.mrb[0].mxu0
      %v3010 = vadd.f32 %v2849, %v3009
      %v3011 = vpop.f32.mrb[0].mxu0
      %v3012 = vpop.f32.mrb[0].mxu0
      %v3013 = vadd.f32 %v2852, %v3012
      %v3014 = vpop.f32.mrb[0].mxu0
      %3015 = vmatprep.mubr.bf16.mxu0 %v2385
      %3016 = vmatmul.mubr.bf16.gmra.mrb[0].mxu0 %v2384
      %v3017 = vpop.f32.mrb[0].mxu0
      %v3018 = vadd.f32 %v2857, %v3017
      %v3019 = vpop.f32.mrb[0].mxu0
      %v3020 = vpop.f32.mrb[0].mxu0
      %v3021 = vadd.f32 %v2860, %v3020
      %v3022 = vpop.f32.mrb[0].mxu0
      %3023 = vmatprep.mubr.bf16.mxu0 %v2390
      %3024 = vmatmul.mubr.bf16.gmra.mrb[0].mxu0 %v2389
      %v3025 = vpop.f32.mrb[0].mxu0
      %v3026 = vadd.f32 %v2865, %v3025
      %v3027 = vpop.f32.mrb[0].mxu0
      %v3028 = vpop.f32.mrb[0].mxu0
      %v3029 = vadd.f32 %v2868, %v3028
      %v3030 = vpop.f32.mrb[0].mxu0
      %3031 = vmatprep.mubr.bf16.mxu0 %v2395
      %3032 = vmatmul.mubr.bf16.gmra.mrb[0].mxu0 %v2394
      %v3033 = vpop.f32.mrb[0].mxu0
      %v3034 = vadd.f32 %v2873, %v3033
      %v3035 = vpop.f32.mrb[0].mxu0
      %v3036 = vpop.f32.mrb[0].mxu0
      %v3037 = vadd.f32 %v2876, %v3036
      %v3038 = vpop.f32.mrb[0].mxu0
      %3039 = vmatprep.mubr.bf16.mxu0 %v2400
      %3040 = vmatmul.mubr.bf16.gmra.mrb[0].mxu0 %v2399
      %v3041 = vpop.f32.mrb[0].mxu0
      %v3042 = vadd.f32 %v2881, %v3041
      %v3043 = vpop.f32.mrb[0].mxu0
      %v3044 = vpop.f32.mrb[0].mxu0
      %v3045 = vadd.f32 %v2884, %v3044
      %v3046 = vpop.f32.mrb[0].mxu0
      %3047 = vmatprep.mubr.bf16.mxu0 %v2405
      %3048 = vmatmul.mubr.bf16.gmra.mrb[0].mxu0 %v2404
      %v3049 = vpop.f32.mrb[0].mxu0
      %v3050 = vadd.f32 %v2889, %v3049
      %v3051 = vpop.f32.mrb[0].mxu0
      %v3052 = vpop.f32.mrb[0].mxu0
      %v3053 = vadd.f32 %v2892, %v3052
      %v3054 = vpop.f32.mrb[0].mxu0
      %3055 = vmatprep.mubr.bf16.mxu0 %v2410
      %3056 = vmatmul.mubr.bf16.gmra.mrb[0].mxu0 %v2409
      %v3057 = vpop.f32.mrb[0].mxu0
      %v3058 = vadd.f32 %v2897, %v3057
      %v3059 = vpop.f32.mrb[0].mxu0
      %v3060 = vpop.f32.mrb[0].mxu0
      %v3061 = vadd.f32 %v2900, %v3060
      %v3062 = vpop.f32.mrb[0].mxu0
      %3063 = vmatprep.mubr.bf16.mxu0 %v2415
      %3064 = vmatmul.mubr.bf16.gmra.mrb[0].mxu0 %v2414
      %v3065 = vpop.f32.mrb[0].mxu0
      %v3066 = vadd.f32 %v2905, %v3065
      %v3067 = vpop.f32.mrb[0].mxu0
      %v3068 = vpop.f32.mrb[0].mxu0
      %v3069 = vadd.f32 %v2908, %v3068
      %v3070 = vpop.f32.mrb[0].mxu0
      %3071 = vmatprep.mubr.bf16.mxu0 %v2420
      %3072 = vmatmul.mubr.bf16.gmra.mrb[0].mxu0 %v2419
      %v3073 = vpop.f32.mrb[0].mxu0
      %v3074 = vadd.f32 %v2913, %v3073
      %v3075 = vpop.f32.mrb[0].mxu0
      %v3076 = vpop.f32.mrb[0].mxu0
      %v3077 = vadd.f32 %v2916, %v3076
      %v3078 = vpop.f32.mrb[0].mxu0
      %3079 = vdwg.mxu0
      %3080 = vmatprep.subr.bf16.mxu0 0
      %3081 = vmatpush1.bf16.msra.mxu0 %v2670
      %3082 = vmatprep.subr.bf16.mxu0 0
      %3083 = vmatpush1.bf16.msra.mxu0 %v2671
      %3084 = vmatprep.subr.bf16.mxu0 0
      %3085 = vmatpush1.bf16.msra.mxu0 %v2672
      %3086 = vmatprep.subr.bf16.mxu0 0
      %3087 = vmatpush1.bf16.msra.mxu0 %v2673
      %3088 = vmatprep.subr.bf16.mxu0 0
      %3089 = vmatpush1.bf16.msra.mxu0 0
      %3090 = vmatprep.subr.bf16.mxu0 0
      %3091 = vmatpush1.bf16.msra.mxu0 0
      %3092 = vmatprep.subr.bf16.mxu0 0
      %3093 = vmatpush1.bf16.msra.mxu0 0
      %3094 = vmatprep.subr.bf16.mxu0 0
      %3095 = vmatpush1.bf16.msra.mxu0 0
      %3096 = vmatprep.subr.bf16.mxu0 0
      %3097 = vmatpush1.bf16.msra.mxu0 0
      %3098 = vmatprep.subr.bf16.mxu0 0
      %3099 = vmatpush1.bf16.msra.mxu0 0
      %3100 = vmatprep.subr.bf16.mxu0 0
      %3101 = vmatpush1.bf16.msra.mxu0 0
      %3102 = vmatprep.subr.bf16.mxu0 0
      %3103 = vmatpush1.bf16.msra.mxu0 0
      %3104 = vmatprep.subr.bf16.mxu0 0
      %3105 = vmatpush1.bf16.msra.mxu0 0
      %3106 = vmatprep.subr.bf16.mxu0 0
      %3107 = vmatpush1.bf16.msra.mxu0 0
      %3108 = vmatprep.subr.bf16.mxu0 0
      %3109 = vmatpush1.bf16.msra.mxu0 0
      %3110 = vmatprep.subr.bf16.mxu0 0
      %3111 = vmatpush1.bf16.msra.mxu0 0
      %3112 = vmatprep.mubr.bf16.mxu0 0
      %3113 = vmatmul.mubr.bf16.gmra.mrb[0].mxu0 %v2711
      %v3114 = vpop.f32.mrb[0].mxu0
      %v3115 = vadd.f32 %v2954, %v3114
      %v3116 = vpop.f32.mrb[0].mxu0
      %v3117 = vpop.f32.mrb[0].mxu0
      %v3118 = vadd.f32 %v2957, %v3117
      %v3119 = vpop.f32.mrb[0].mxu0
      %3120 = vmatprep.mubr.bf16.mxu0 0
      %3121 = vmatmul.mubr.bf16.gmra.mrb[0].mxu0 %v2714
      %v3122 = vpop.f32.mrb[0].mxu0
      %v3123 = vadd.f32 %v2962, %v3122
      %v3124 = vpop.f32.mrb[0].mxu0
      %v3125 = vpop.f32.mrb[0].mxu0
      %v3126 = vadd.f32 %v2965, %v3125
      %v3127 = vpop.f32.mrb[0].mxu0
      %3128 = vmatprep.mubr.bf16.mxu0 0
      %3129 = vmatmul.mubr.bf16.gmra.mrb[0].mxu0 %v2717
      %v3130 = vpop.f32.mrb[0].mxu0
      %v3131 = vadd.f32 %v2970, %v3130
      %v3132 = vpop.f32.mrb[0].mxu0
      %v3133 = vpop.f32.mrb[0].mxu0
      %v3134 = vadd.f32 %v2973, %v3133
      %v3135 = vpop.f32.mrb[0].mxu0
      %3136 = vmatprep.mubr.bf16.mxu0 0
      %3137 = vmatmul.mubr.bf16.gmra.mrb[0].mxu0 %v2720
      %v3138 = vpop.f32.mrb[0].mxu0
      %v3139 = vadd.f32 %v2978, %v3138
      %v3140 = vpop.f32.mrb[0].mxu0
      %v3141 = vpop.f32.mrb[0].mxu0
      %v3142 = vadd.f32 %v2981, %v3141
      %v3143 = vpop.f32.mrb[0].mxu0
      %3144 = vmatprep.mubr.bf16.mxu0 0
      %3145 = vmatmul.mubr.bf16.gmra.mrb[0].mxu0 %v2723
      %v3146 = vpop.f32.mrb[0].mxu0
      %v3147 = vadd.f32 %v2986, %v3146
      %v3148 = vpop.f32.mrb[0].mxu0
      %v3149 = vpop.f32.mrb[0].mxu0
      %v3150 = vadd.f32 %v2989, %v3149
      %v3151 = vpop.f32.mrb[0].mxu0
      %3152 = vmatprep.mubr.bf16.mxu0 0
      %3153 = vmatmul.mubr.bf16.gmra.mrb[0].mxu0 %v2726
      %v3154 = vpop.f32.mrb[0].mxu0
      %v3155 = vadd.f32 %v2994, %v3154
      %v3156 = vpop.f32.mrb[0].mxu0
      %v3157 = vpop.f32.mrb[0].mxu0
      %v3158 = vadd.f32 %v2997, %v3157
      %v3159 = vpop.f32.mrb[0].mxu0
      %3160 = vmatprep.mubr.bf16.mxu0 0
      %3161 = vmatmul.mubr.bf16.gmra.mrb[0].mxu0 %v2729
      %v3162 = vpop.f32.mrb[0].mxu0
      %v3163 = vadd.f32 %v3002, %v3162
      %v3164 = vpop.f32.mrb[0].mxu0
      %v3165 = vpop.f32.mrb[0].mxu0
      %v3166 = vadd.f32 %v3005, %v3165
      %v3167 = vpop.f32.mrb[0].mxu0
      %3168 = vmatprep.mubr.bf16.mxu0 0
      %3169 = vmatmul.mubr.bf16.gmra.mrb[0].mxu0 %v2732
      %v3170 = vpop.f32.mrb[0].mxu0
      %v3171 = vadd.f32 %v3010, %v3170
      %v3172 = vpop.f32.mrb[0].mxu0
      %v3173 = vpop.f32.mrb[0].mxu0
      %v3174 = vadd.f32 %v3013, %v3173
      %v3175 = vpop.f32.mrb[0].mxu0
      %3176 = vmatprep.mubr.bf16.mxu0 0
      %3177 = vmatmul.mubr.bf16.gmra.mrb[0].mxu0 %v2735
      %v3178 = vpop.f32.mrb[0].mxu0
      %v3179 = vadd.f32 %v3018, %v3178
      %v3180 = vpop.f32.mrb[0].mxu0
      %v3181 = vpop.f32.mrb[0].mxu0
      %v3182 = vadd.f32 %v3021, %v3181
      %v3183 = vpop.f32.mrb[0].mxu0
      %3184 = vmatprep.mubr.bf16.mxu0 0
      %3185 = vmatmul.mubr.bf16.gmra.mrb[0].mxu0 %v2738
      %v3186 = vpop.f32.mrb[0].mxu0
      %v3187 = vadd.f32 %v3026, %v3186
      %v3188 = vpop.f32.mrb[0].mxu0
      %v3189 = vpop.f32.mrb[0].mxu0
      %v3190 = vadd.f32 %v3029, %v3189
      %v3191 = vpop.f32.mrb[0].mxu0
      %3192 = vmatprep.mubr.bf16.mxu0 0
      %3193 = vmatmul.mubr.bf16.gmra.mrb[0].mxu0 %v2741
      %v3194 = vpop.f32.mrb[0].mxu0
      %v3195 = vadd.f32 %v3034, %v3194
      %v3196 = vpop.f32.mrb[0].mxu0
      %v3197 = vpop.f32.mrb[0].mxu0
      %v3198 = vadd.f32 %v3037, %v3197
      %v3199 = vpop.f32.mrb[0].mxu0
      %3200 = vmatprep.mubr.bf16.mxu0 0
      %3201 = vmatmul.mubr.bf16.gmra.mrb[0].mxu0 %v2744
      %v3202 = vpop.f32.mrb[0].mxu0
      %v3203 = vadd.f32 %v3042, %v3202
      %v3204 = vpop.f32.mrb[0].mxu0
      %v3205 = vpop.f32.mrb[0].mxu0
      %v3206 = vadd.f32 %v3045, %v3205
      %v3207 = vpop.f32.mrb[0].mxu0
      %3208 = vmatprep.mubr.bf16.mxu0 0
      %3209 = vmatmul.mubr.bf16.gmra.mrb[0].mxu0 %v2747
      %v3210 = vpop.f32.mrb[0].mxu0
      %v3211 = vadd.f32 %v3050, %v3210
      %v3212 = vpop.f32.mrb[0].mxu0
      %v3213 = vpop.f32.mrb[0].mxu0
      %v3214 = vadd.f32 %v3053, %v3213
      %v3215 = vpop.f32.mrb[0].mxu0
      %3216 = vmatprep.mubr.bf16.mxu0 0
      %3217 = vmatmul.mubr.bf16.gmra.mrb[0].mxu0 %v2750
      %v3218 = vpop.f32.mrb[0].mxu0
      %v3219 = vadd.f32 %v3058, %v3218
      %v3220 = vpop.f32.mrb[0].mxu0
      %v3221 = vpop.f32.mrb[0].mxu0
      %v3222 = vadd.f32 %v3061, %v3221
      %v3223 = vpop.f32.mrb[0].mxu0
      %3224 = vmatprep.mubr.bf16.mxu0 0
      %3225 = vmatmul.mubr.bf16.gmra.mrb[0].mxu0 %v2753
      %v3226 = vpop.f32.mrb[0].mxu0
      %v3227 = vadd.f32 %v3066, %v3226
      %v3228 = vpop.f32.mrb[0].mxu0
      %v3229 = vpop.f32.mrb[0].mxu0
      %v3230 = vadd.f32 %v3069, %v3229
      %v3231 = vpop.f32.mrb[0].mxu0
      %3232 = vmatprep.mubr.bf16.mxu0 0
      %3233 = vmatmul.mubr.bf16.gmra.mrb[0].mxu0 %v2756
      %v3234 = vpop.f32.mrb[0].mxu0
      %v3235 = vadd.f32 %v3074, %v3234
      %v3236 = vpop.f32.mrb[0].mxu0
      %v3237 = vpop.f32.mrb[0].mxu0
      %v3238 = vadd.f32 %v3077, %v3237
      %v3239 = vpop.f32.mrb[0].mxu0
      %3240 = vdwg.mxu0
      %v3241 = vmax.f32 %v3115, 0.0
      %v3242 = vmax.f32 %v3118, 0.0
      %v3243 = vmax.f32 %v3123, 0.0
      %v3244 = vmax.f32 %v3126, 0.0
      %v3245 = vmax.f32 %v3131, 0.0
      %v3246 = vmax.f32 %v3134, 0.0
      %v3247 = vmax.f32 %v3139, 0.0
      %v3248 = vmax.f32 %v3142, 0.0
      %v3249 = vmax.f32 %v3147, 0.0
      %v3250 = vmax.f32 %v3150, 0.0
      %v3251 = vmax.f32 %v3155, 0.0
      %v3252 = vmax.f32 %v3158, 0.0
      %v3253 = vmax.f32 %v3163, 0.0
      %v3254 = vmax.f32 %v3166, 0.0
      %v3255 = vmax.f32 %v3171, 0.0
      %v3256 = vmax.f32 %v3174, 0.0
      %v3257 = vmax.f32 %v3179, 0.0
      %v3258 = vmax.f32 %v3182, 0.0
      %v3259 = vmax.f32 %v3187, 0.0
      %v3260 = vmax.f32 %v3190, 0.0
      %v3261 = vmax.f32 %v3195, 0.0
      %v3262 = vmax.f32 %v3198, 0.0
      %v3263 = vmax.f32 %v3203, 0.0
      %v3264 = vmax.f32 %v3206, 0.0
      %v3265 = vmax.f32 %v3211, 0.0
      %v3266 = vmax.f32 %v3214, 0.0
      %v3267 = vmax.f32 %v3219, 0.0
      %v3268 = vmax.f32 %v3222, 0.0
      %v3269 = vmax.f32 %v3227, 0.0
      %v3270 = vmax.f32 %v3230, 0.0
      %v3271 = vmax.f32 %v3235, 0.0
      %v3272 = vmax.f32 %v3238, 0.0
      %v3273 = vpack.c.bf16 %v3242, %v3241
      %v3274 = vpack.c.bf16 %v3244, %v3243
      %v3275 = vpack.c.bf16 %v3246, %v3245
      %v3276 = vpack.c.bf16 %v3248, %v3247
      %v3277 = vpack.c.bf16 %v3250, %v3249
      %v3278 = vpack.c.bf16 %v3252, %v3251
      %v3279 = vpack.c.bf16 %v3254, %v3253
      %v3280 = vpack.c.bf16 %v3256, %v3255
      %v3281 = vpack.c.bf16 %v3258, %v3257
      %v3282 = vpack.c.bf16 %v3260, %v3259
      %v3283 = vpack.c.bf16 %v3262, %v3261
      %v3284 = vpack.c.bf16 %v3264, %v3263
      %v3285 = vpack.c.bf16 %v3266, %v3265
      %v3286 = vpack.c.bf16 %v3268, %v3267
      %v3287 = vpack.c.bf16 %v3270, %v3269
      %v3288 = vpack.c.bf16 %v3272, %v3271
      %v3289 = vld [vmem:[%s2] sm:$0xff]
      %v3290 = vld [vmem:[%s2 + $0x8] sm:$0xff]
      %v3291 = vld [vmem:[%s2 + $0x10] sm:$0xff]
      %v3292 = vld [vmem:[%s2 + $0x18] sm:$0xff]
      %v3293 = vld [vmem:[%s2 + $0x20] sm:$0xff]
      %v3299 = vunpack.c.l.b16 %v3289
      %v3300 = vunpack.c.h.b16 %v3289
      %v3301 = vunpack.c.l.b16 %v3290
      %v3302 = vunpack.c.h.b16 %v3290
      %v3303 = vunpack.c.l.b16 %v3291
      %v3304 = vunpack.c.h.b16 %v3291
      %v3305 = vunpack.c.l.b16 %v3292
      %v3306 = vunpack.c.h.b16 %v3292
      %v3307 = vunpack.c.l.b16 %v3293
      %v3308 = vunpack.c.h.b16 %v3293
      %v3309 = vpack.c.b16 %v3301, %v3299
      %v3310 = vpack.c.b16 %v3302, %v3300
      %v3311 = vpack.c.b16 %v3305, %v3303
      %v3312 = vpack.c.b16 %v3306, %v3304
      %v3313 = vpack.c.b16 %v3307, %v3307
      %v3314 = vpack.c.b16 %v3308, %v3308
      %3321 = vmatprep.subr.bf16.mxu0 0
      %3322 = vmatpush1.bf16.msra.mxu0 %v3273
      %3323 = vmatprep.subr.bf16.mxu0 0
      %3324 = vmatpush1.bf16.msra.mxu0 %v3274
      %3325 = vmatprep.subr.bf16.mxu0 0
      %3326 = vmatpush1.bf16.msra.mxu0 %v3275
      %3327 = vmatprep.subr.bf16.mxu0 0
      %3328 = vmatpush1.bf16.msra.mxu0 %v3276
      %3329 = vmatprep.subr.bf16.mxu0 0
      %3330 = vmatpush1.bf16.msra.mxu0 %v3277
      %3331 = vmatprep.subr.bf16.mxu0 0
      %3332 = vmatpush1.bf16.msra.mxu0 %v3278
      %3333 = vmatprep.subr.bf16.mxu0 0
      %3334 = vmatpush1.bf16.msra.mxu0 %v3279
      %3335 = vmatprep.subr.bf16.mxu0 0
      %3336 = vmatpush1.bf16.msra.mxu0 %v3280
      %3337 = vmatprep.subr.bf16.mxu0 0
      %3338 = vmatpush1.bf16.msra.mxu0 %v3281
      %3339 = vmatprep.subr.bf16.mxu0 0
      %3340 = vmatpush1.bf16.msra.mxu0 %v3282
      %3341 = vmatprep.subr.bf16.mxu0 0
      %3342 = vmatpush1.bf16.msra.mxu0 %v3283
      %3343 = vmatprep.subr.bf16.mxu0 0
      %3344 = vmatpush1.bf16.msra.mxu0 %v3284
      %3345 = vmatprep.subr.bf16.mxu0 0
      %3346 = vmatpush1.bf16.msra.mxu0 %v3285
      %3347 = vmatprep.subr.bf16.mxu0 0
      %3348 = vmatpush1.bf16.msra.mxu0 %v3286
      %3349 = vmatprep.subr.bf16.mxu0 0
      %3350 = vmatpush1.bf16.msra.mxu0 %v3287
      %3351 = vmatprep.subr.bf16.mxu0 0
      %3352 = vmatpush1.bf16.msra.mxu0 %v3288
      %3353 = vmatprep.mubr.bf16.mxu0 %v3310
      %3354 = vmatmul.mubr.bf16.gmra.mrb[0].mxu0 %v3309
      %v3355 = vpop.f32.mrb[0].mxu0
      %v3356 = vadd.f32 0.0, %v3355
      %v3357 = vpop.f32.mrb[0].mxu0
      %v3358 = vpop.f32.mrb[0].mxu0
      %v3359 = vadd.f32 0.0, %v3358
      %v3360 = vpop.f32.mrb[0].mxu0
      %3361 = vmatprep.mubr.bf16.mxu0 %v3312
      %3362 = vmatmul.mubr.bf16.gmra.mrb[0].mxu0 %v3311
      %v3363 = vpop.f32.mrb[0].mxu0
      %v3364 = vadd.f32 0.0, %v3363
      %v3365 = vpop.f32.mrb[0].mxu0
      %v3366 = vpop.f32.mrb[0].mxu0
      %v3367 = vadd.f32 0.0, %v3366
      %v3368 = vpop.f32.mrb[0].mxu0
      %3369 = vmatprep.mubr.bf16.mxu0 %v3314
      %3370 = vmatmul.mubr.bf16.gmra.mrb[0].mxu0 %v3313
      %v3371 = vpop.f32.mrb[0].mxu0
      %v3372 = vadd.f32 0.0, %v3371
      %v3373 = vpop.f32.mrb[0].mxu0
      %v3374 = vpop.f32.mrb[0].mxu0
      %v3375 = vpop.f32.mrb[0].mxu0
      %3376 = vdwg.mxu0
      %3377 = vst [vmem:[%s177] sm:$0xff] %v3356
      %3378 = vst [vmem:[%s177 + $0x8] sm:$0xff] %v3359
      %3379 = vst [vmem:[%s177 + $0x10] sm:$0xff] %v3364
      %3380 = vst [vmem:[%s177 + $0x18] sm:$0xff] %v3367
      %3381 = vst [vmem:[%s177 + $0x20] sm:$0xff] %v3372
      %s3382 = scalar_lea.vmem %s170, 148
      %v3383 = vld [vmem:[%s3382] sm:$0xf]
      %v3384 = vld [vmem:[%s3382 + $0x4] sm:$0xf]
      %v3385 = vld [vmem:[%s3382 + $0x8] sm:$0xf]
      %v3386 = vld [vmem:[%s3382 + $0xc] sm:$0xf]
      %v3387 = vld [vmem:[%s3382 + $0x10] sm:$0xf]
      %v3388 = vld [vmem:[%s3382 + $0x14] sm:$0xf]
      %v3389 = vld [vmem:[%s3382 + $0x18] sm:$0xf]
      %v3390 = vld [vmem:[%s3382 + $0x1c] sm:$0xf]
      %v3391 = vld [vmem:[%s3382 + $0x20] sm:$0xf]
      %v3392 = vld [vmem:[%s3382 + $0x24] sm:$0xf]
      %v3393 = vld [vmem:[%s3382 + $0x28] sm:$0xf]
      %v3394 = vld [vmem:[%s3382 + $0x2c] sm:$0xf]
      %v3395 = vld [vmem:[%s3382 + $0x30] sm:$0xf]
      %v3396 = vld [vmem:[%s3382 + $0x34] sm:$0xf]
      %v3397 = vld [vmem:[%s3382 + $0x38] sm:$0xf]
      %v3398 = vld [vmem:[%s3382 + $0x3c] sm:$0xf]
      %v3399 = vld [vmem:[%s3382 + $0x40] sm:$0xf]
      %v3400 = vld [vmem:[%s3382 + $0x44] sm:$0xf]
      %v3401 = vld [vmem:[%s3382 + $0x48] sm:$0xf]
      %v3402 = vld [vmem:[%s3382 + $0x4c] sm:$0xf]
      %v3403 = vld [vmem:[%s3382 + $0x50] sm:$0xf]
      %v3404 = vld [vmem:[%s3382 + $0x54] sm:$0xf]
      %v3405 = vld [vmem:[%s3382 + $0x58] sm:$0xf]
      %v3406 = vld [vmem:[%s3382 + $0x5c] sm:$0xf]
      %v3407 = vld [vmem:[%s3382 + $0x60] sm:$0xf]
      %v3408 = vld [vmem:[%s3382 + $0x64] sm:$0xf]
      %v3409 = vld [vmem:[%s3382 + $0x68] sm:$0xf]
      %v3410 = vld [vmem:[%s3382 + $0x6c] sm:$0xf]
      %v3411 = vld [vmem:[%s3382 + $0x70] sm:$0xf]
      %v3412 = vld [vmem:[%s3382 + $0x74] sm:$0xf]
      %v3413 = vld [vmem:[%s3382 + $0x78] sm:$0xf]
      %v3414 = vld [vmem:[%s3382 + $0x7c] sm:$0xf]
      %v3447 = vunpack.c.l.b16 %v3383
      %v3448 = vunpack.c.l.b16 %v3384
      %v3449 = vunpack.c.l.b16 %v3385
      %v3450 = vunpack.c.l.b16 %v3386
      %v3451 = vunpack.c.l.b16 %v3387
      %v3452 = vunpack.c.l.b16 %v3388
      %v3453 = vunpack.c.l.b16 %v3389
      %v3454 = vunpack.c.l.b16 %v3390
      %v3455 = vunpack.c.l.b16 %v3391
      %v3456 = vunpack.c.l.b16 %v3392
      %v3457 = vunpack.c.l.b16 %v3393
      %v3458 = vunpack.c.l.b16 %v3394
      %v3459 = vunpack.c.l.b16 %v3395
      %v3460 = vunpack.c.l.b16 %v3396
      %v3461 = vunpack.c.l.b16 %v3397
      %v3462 = vunpack.c.l.b16 %v3398
      %v3463 = vunpack.c.l.b16 %v3399
      %v3464 = vunpack.c.l.b16 %v3400
      %v3465 = vunpack.c.l.b16 %v3401
      %v3466 = vunpack.c.l.b16 %v3402
      %v3467 = vunpack.c.l.b16 %v3403
      %v3468 = vunpack.c.l.b16 %v3404
      %v3469 = vunpack.c.l.b16 %v3405
      %v3470 = vunpack.c.l.b16 %v3406
      %v3471 = vunpack.c.l.b16 %v3407
      %v3472 = vunpack.c.l.b16 %v3408
      %v3473 = vunpack.c.l.b16 %v3409
      %v3474 = vunpack.c.l.b16 %v3410
      %v3475 = vunpack.c.l.b16 %v3411
      %v3476 = vunpack.c.l.b16 %v3412
      %v3477 = vunpack.c.l.b16 %v3413
      %v3478 = vunpack.c.l.b16 %v3414
      %v3479 = vpack.c.b16 %v3448, %v3447
      %v3480 = vpack.c.b16 %v3450, %v3449
      %v3481 = vpack.c.b16 %v3452, %v3451
      %v3482 = vpack.c.b16 %v3454, %v3453
      %v3483 = vpack.c.b16 %v3456, %v3455
      %v3484 = vpack.c.b16 %v3458, %v3457
      %v3485 = vpack.c.b16 %v3460, %v3459
      %v3486 = vpack.c.b16 %v3462, %v3461
      %v3487 = vpack.c.b16 %v3464, %v3463
      %v3488 = vpack.c.b16 %v3466, %v3465
      %v3489 = vpack.c.b16 %v3468, %v3467
      %v3490 = vpack.c.b16 %v3470, %v3469
      %v3491 = vpack.c.b16 %v3472, %v3471
      %v3492 = vpack.c.b16 %v3474, %v3473
      %v3493 = vpack.c.b16 %v3476, %v3475
      %v3494 = vpack.c.b16 %v3478, %v3477
      %3511 = vst.msk [vmem:[#allocation2] sm:$0xff] %vm308, %v3479
      %3512 = vst.msk [vmem:[#allocation2 + $0x28] sm:$0xff] %vm308, %v3480
      %3513 = vst.msk [vmem:[#allocation2 + $0x50] sm:$0xff] %vm308, %v3481
      %3514 = vst.msk [vmem:[#allocation2 + $0x78] sm:$0xff] %vm308, %v3482
      %3515 = vst.msk [vmem:[#allocation2 + $0xa0] sm:$0xff] %vm308, %v3483
      %3516 = vst.msk [vmem:[#allocation2 + $0xc8] sm:$0xff] %vm308, %v3484
      %3517 = vst.msk [vmem:[#allocation2 + $0xf0] sm:$0xff] %vm308, %v3485
      %3518 = vst.msk [vmem:[#allocation2 + $0x118] sm:$0xff] %vm308, %v3486
      %3519 = vst.msk [vmem:[#allocation2 + $0x140] sm:$0xff] %vm308, %v3487
      %3520 = vst.msk [vmem:[#allocation2 + $0x168] sm:$0xff] %vm308, %v3488
      %3521 = vst.msk [vmem:[#allocation2 + $0x190] sm:$0xff] %vm308, %v3489
      %3522 = vst.msk [vmem:[#allocation2 + $0x1b8] sm:$0xff] %vm308, %v3490
      %3523 = vst.msk [vmem:[#allocation2 + $0x1e0] sm:$0xff] %vm308, %v3491
      %3524 = vst.msk [vmem:[#allocation2 + $0x208] sm:$0xff] %vm308, %v3492
      %3525 = vst.msk [vmem:[#allocation2 + $0x230] sm:$0xff] %vm308, %v3493
      %3526 = vst.msk [vmem:[#allocation2 + $0x258] sm:$0xff] %vm308, %v3494
      %v3527 = vld [vmem:[%s3382] sm:$0xf]
      %v3528 = vld [vmem:[%s3382 + $0x4] sm:$0xf]
      %v3529 = vld [vmem:[%s3382 + $0x8] sm:$0xf]
      %v3530 = vld [vmem:[%s3382 + $0xc] sm:$0xf]
      %v3531 = vld [vmem:[%s3382 + $0x10] sm:$0xf]
      %v3532 = vld [vmem:[%s3382 + $0x14] sm:$0xf]
      %v3533 = vld [vmem:[%s3382 + $0x18] sm:$0xf]
      %v3534 = vld [vmem:[%s3382 + $0x1c] sm:$0xf]
      %v3535 = vld [vmem:[%s3382 + $0x20] sm:$0xf]
      %v3536 = vld [vmem:[%s3382 + $0x24] sm:$0xf]
      %v3537 = vld [vmem:[%s3382 + $0x28] sm:$0xf]
      %v3538 = vld [vmem:[%s3382 + $0x2c] sm:$0xf]
      %v3539 = vld [vmem:[%s3382 + $0x30] sm:$0xf]
      %v3540 = vld [vmem:[%s3382 + $0x34] sm:$0xf]
      %v3541 = vld [vmem:[%s3382 + $0x38] sm:$0xf]
      %v3542 = vld [vmem:[%s3382 + $0x3c] sm:$0xf]
      %v3543 = vld [vmem:[%s3382 + $0x40] sm:$0xf]
      %v3544 = vld [vmem:[%s3382 + $0x44] sm:$0xf]
      %v3545 = vld [vmem:[%s3382 + $0x48] sm:$0xf]
      %v3546 = vld [vmem:[%s3382 + $0x4c] sm:$0xf]
      %v3547 = vld [vmem:[%s3382 + $0x50] sm:$0xf]
      %v3548 = vld [vmem:[%s3382 + $0x54] sm:$0xf]
      %v3549 = vld [vmem:[%s3382 + $0x58] sm:$0xf]
      %v3550 = vld [vmem:[%s3382 + $0x5c] sm:$0xf]
      %v3551 = vld [vmem:[%s3382 + $0x60] sm:$0xf]
      %v3552 = vld [vmem:[%s3382 + $0x64] sm:$0xf]
      %v3553 = vld [vmem:[%s3382 + $0x68] sm:$0xf]
      %v3554 = vld [vmem:[%s3382 + $0x6c] sm:$0xf]
      %v3555 = vld [vmem:[%s3382 + $0x70] sm:$0xf]
      %v3556 = vld [vmem:[%s3382 + $0x74] sm:$0xf]
      %v3557 = vld [vmem:[%s3382 + $0x78] sm:$0xf]
      %v3558 = vld [vmem:[%s3382 + $0x7c] sm:$0xf]
      %v3559 = vld [vmem:[%s3382 + $0x80] sm:$0x1]
      %v3593 = vunpack.c.l.b16 %v3527
      %v3594 = vunpack.c.l.b16 %v3528
      %v3595 = vunpack.c.l.b16 %v3529
      %v3596 = vunpack.c.l.b16 %v3530
      %v3597 = vunpack.c.l.b16 %v3531
      %v3598 = vunpack.c.l.b16 %v3532
      %v3599 = vunpack.c.l.b16 %v3533
      %v3600 = vunpack.c.l.b16 %v3534
      %v3601 = vunpack.c.l.b16 %v3535
      %v3602 = vunpack.c.l.b16 %v3536
      %v3603 = vunpack.c.l.b16 %v3537
      %v3604 = vunpack.c.l.b16 %v3538
      %v3605 = vunpack.c.l.b16 %v3539
      %v3606 = vunpack.c.l.b16 %v3540
      %v3607 = vunpack.c.l.b16 %v3541
      %v3608 = vunpack.c.l.b16 %v3542
      %v3609 = vunpack.c.l.b16 %v3543
      %v3610 = vunpack.c.l.b16 %v3544
      %v3611 = vunpack.c.l.b16 %v3545
      %v3612 = vunpack.c.l.b16 %v3546
      %v3613 = vunpack.c.l.b16 %v3547
      %v3614 = vunpack.c.l.b16 %v3548
      %v3615 = vunpack.c.l.b16 %v3549
      %v3616 = vunpack.c.l.b16 %v3550
      %v3617 = vunpack.c.l.b16 %v3551
      %v3618 = vunpack.c.l.b16 %v3552
      %v3619 = vunpack.c.l.b16 %v3553
      %v3620 = vunpack.c.l.b16 %v3554
      %v3621 = vunpack.c.l.b16 %v3555
      %v3622 = vunpack.c.l.b16 %v3556
      %v3623 = vunpack.c.l.b16 %v3557
      %v3624 = vunpack.c.l.b16 %v3558
      %v3625 = vunpack.c.l.b16 %v3559
      %v3626 = vpack.c.b16 %v3594, %v3593
      %v3627 = vpack.c.b16 %v3596, %v3595
      %v3628 = vpack.c.b16 %v3598, %v3597
      %v3629 = vpack.c.b16 %v3600, %v3599
      %v3630 = vpack.c.b16 %v3602, %v3601
      %v3631 = vpack.c.b16 %v3604, %v3603
      %v3632 = vpack.c.b16 %v3606, %v3605
      %v3633 = vpack.c.b16 %v3608, %v3607
      %v3634 = vpack.c.b16 %v3610, %v3609
      %v3635 = vpack.c.b16 %v3612, %v3611
      %v3636 = vpack.c.b16 %v3614, %v3613
      %v3637 = vpack.c.b16 %v3616, %v3615
      %v3638 = vpack.c.b16 %v3618, %v3617
      %v3639 = vpack.c.b16 %v3620, %v3619
      %v3640 = vpack.c.b16 %v3622, %v3621
      %v3641 = vpack.c.b16 %v3624, %v3623
      %v3642 = vpack.c.b16 %v3625, %v3625
      %v3644 = vshrl.u32 %v3626, 16
      %v3646 = vshll.u32 %v3626, 16
      %v3648 = vrot.slane %v3646, 1
      %v3649 = vor.u32 %v3644, %v3648
      %v3651 = vshll.u32 %v3627, 16
      %v3653 = vrot.slane %v3651, 1
      %v3654 = vsel %vm441, %v3649, %v3653
      %v3655 = vshrl.u32 %v3627, 16
      %v3657 = vor.u32 %v3655, %v3653
      %v3659 = vshll.u32 %v3628, 16
      %v3661 = vrot.slane %v3659, 1
      %v3662 = vsel %vm441, %v3657, %v3661
      %v3663 = vshrl.u32 %v3628, 16
      %v3665 = vor.u32 %v3663, %v3661
      %v3667 = vshll.u32 %v3629, 16
      %v3669 = vrot.slane %v3667, 1
      %v3670 = vsel %vm441, %v3665, %v3669
      %v3671 = vshrl.u32 %v3629, 16
      %v3673 = vor.u32 %v3671, %v3669
      %v3675 = vshll.u32 %v3630, 16
      %v3677 = vrot.slane %v3675, 1
      %v3678 = vsel %vm441, %v3673, %v3677
      %v3679 = vshrl.u32 %v3630, 16
      %v3681 = vor.u32 %v3679, %v3677
      %v3683 = vshll.u32 %v3631, 16
      %v3685 = vrot.slane %v3683, 1
      %v3686 = vsel %vm441, %v3681, %v3685
      %v3687 = vshrl.u32 %v3631, 16
      %v3689 = vor.u32 %v3687, %v3685
      %v3691 = vshll.u32 %v3632, 16
      %v3693 = vrot.slane %v3691, 1
      %v3694 = vsel %vm441, %v3689, %v3693
      %v3695 = vshrl.u32 %v3632, 16
      %v3697 = vor.u32 %v3695, %v3693
      %v3699 = vshll.u32 %v3633, 16
      %v3701 = vrot.slane %v3699, 1
      %v3702 = vsel %vm441, %v3697, %v3701
      %v3703 = vshrl.u32 %v3633, 16
      %v3705 = vor.u32 %v3703, %v3701
      %v3707 = vshll.u32 %v3634, 16
      %v3709 = vrot.slane %v3707, 1
      %v3710 = vsel %vm441, %v3705, %v3709
      %v3711 = vshrl.u32 %v3634, 16
      %v3713 = vor.u32 %v3711, %v3709
      %v3715 = vshll.u32 %v3635, 16
      %v3717 = vrot.slane %v3715, 1
      %v3718 = vsel %vm441, %v3713, %v3717
      %v3719 = vshrl.u32 %v3635, 16
      %v3721 = vor.u32 %v3719, %v3717
      %v3723 = vshll.u32 %v3636, 16
      %v3725 = vrot.slane %v3723, 1
      %v3726 = vsel %vm441, %v3721, %v3725
      %v3727 = vshrl.u32 %v3636, 16
      %v3729 = vor.u32 %v3727, %v3725
      %v3731 = vshll.u32 %v3637, 16
      %v3733 = vrot.slane %v3731, 1
      %v3734 = vsel %vm441, %v3729, %v3733
      %v3735 = vshrl.u32 %v3637, 16
      %v3737 = vor.u32 %v3735, %v3733
      %v3739 = vshll.u32 %v3638, 16
      %v3741 = vrot.slane %v3739, 1
      %v3742 = vsel %vm441, %v3737, %v3741
      %v3743 = vshrl.u32 %v3638, 16
      %v3745 = vor.u32 %v3743, %v3741
      %v3747 = vshll.u32 %v3639, 16
      %v3749 = vrot.slane %v3747, 1
      %v3750 = vsel %vm441, %v3745, %v3749
      %v3751 = vshrl.u32 %v3639, 16
      %v3753 = vor.u32 %v3751, %v3749
      %v3755 = vshll.u32 %v3640, 16
      %v3757 = vrot.slane %v3755, 1
      %v3758 = vsel %vm441, %v3753, %v3757
      %v3759 = vshrl.u32 %v3640, 16
      %v3761 = vor.u32 %v3759, %v3757
      %v3763 = vshll.u32 %v3641, 16
      %v3765 = vrot.slane %v3763, 1
      %v3766 = vsel %vm441, %v3761, %v3765
      %v3767 = vshrl.u32 %v3641, 16
      %v3769 = vor.u32 %v3767, %v3765
      %v3771 = vshll.u32 %v3642, 16
      %v3773 = vrot.slane %v3771, 1
      %v3774 = vsel %vm441, %v3769, %v3773
      %3775 = vrot.lane.b32.xlu0 %v3654, 64
      %v3776 = vpop.permute.xlu0 %3775
      %3777 = vrot.lane.b32.xlu0 %v3662, 64
      %v3778 = vpop.permute.xlu0 %3777
      %3779 = vrot.lane.b32.xlu0 %v3670, 64
      %v3780 = vpop.permute.xlu0 %3779
      %3781 = vrot.lane.b32.xlu0 %v3678, 64
      %v3782 = vpop.permute.xlu0 %3781
      %3783 = vrot.lane.b32.xlu0 %v3686, 64
      %v3784 = vpop.permute.xlu0 %3783
      %3785 = vrot.lane.b32.xlu0 %v3694, 64
      %v3786 = vpop.permute.xlu0 %3785
      %3787 = vrot.lane.b32.xlu0 %v3702, 64
      %v3788 = vpop.permute.xlu0 %3787
      %3789 = vrot.lane.b32.xlu0 %v3710, 64
      %v3790 = vpop.permute.xlu0 %3789
      %3791 = vrot.lane.b32.xlu0 %v3718, 64
      %v3792 = vpop.permute.xlu0 %3791
      %3793 = vrot.lane.b32.xlu0 %v3726, 64
      %v3794 = vpop.permute.xlu0 %3793
      %3795 = vrot.lane.b32.xlu0 %v3734, 64
      %v3796 = vpop.permute.xlu0 %3795
      %3797 = vrot.lane.b32.xlu0 %v3742, 64
      %v3798 = vpop.permute.xlu0 %3797
      %3799 = vrot.lane.b32.xlu0 %v3750, 64
      %v3800 = vpop.permute.xlu0 %3799
      %3801 = vrot.lane.b32.xlu0 %v3758, 64
      %v3802 = vpop.permute.xlu0 %3801
      %3803 = vrot.lane.b32.xlu0 %v3766, 64
      %v3804 = vpop.permute.xlu0 %3803
      %3805 = vrot.lane.b32.xlu0 %v3774, 64
      %v3806 = vpop.permute.xlu0 %3805
      %3823 = vst.msk [vmem:[#allocation2] sm:$0xff] %vm622, %v3776
      %3824 = vst.msk [vmem:[#allocation2 + $0x28] sm:$0xff] %vm622, %v3778
      %3825 = vst.msk [vmem:[#allocation2 + $0x50] sm:$0xff] %vm622, %v3780
      %3826 = vst.msk [vmem:[#allocation2 + $0x78] sm:$0xff] %vm622, %v3782
      %3827 = vst.msk [vmem:[#allocation2 + $0xa0] sm:$0xff] %vm622, %v3784
      %3828 = vst.msk [vmem:[#allocation2 + $0xc8] sm:$0xff] %vm622, %v3786
      %3829 = vst.msk [vmem:[#allocation2 + $0xf0] sm:$0xff] %vm622, %v3788
      %3830 = vst.msk [vmem:[#allocation2 + $0x118] sm:$0xff] %vm622, %v3790
      %3831 = vst.msk [vmem:[#allocation2 + $0x140] sm:$0xff] %vm622, %v3792
      %3832 = vst.msk [vmem:[#allocation2 + $0x168] sm:$0xff] %vm622, %v3794
      %3833 = vst.msk [vmem:[#allocation2 + $0x190] sm:$0xff] %vm622, %v3796
      %3834 = vst.msk [vmem:[#allocation2 + $0x1b8] sm:$0xff] %vm622, %v3798
      %3835 = vst.msk [vmem:[#allocation2 + $0x1e0] sm:$0xff] %vm622, %v3800
      %3836 = vst.msk [vmem:[#allocation2 + $0x208] sm:$0xff] %vm622, %v3802
      %3837 = vst.msk [vmem:[#allocation2 + $0x230] sm:$0xff] %vm622, %v3804
      %3838 = vst.msk [vmem:[#allocation2 + $0x258] sm:$0xff] %vm622, %v3806
      %v3839 = vld [vmem:[%s3382] sm:$0xe]
      %v3840 = vld [vmem:[%s3382 + $0x4] sm:$0xf]
      %v3841 = vld [vmem:[%s3382 + $0x8] sm:$0xf]
      %v3842 = vld [vmem:[%s3382 + $0xc] sm:$0xf]
      %v3843 = vld [vmem:[%s3382 + $0x10] sm:$0xf]
      %v3844 = vld [vmem:[%s3382 + $0x14] sm:$0xf]
      %v3845 = vld [vmem:[%s3382 + $0x18] sm:$0xf]
      %v3846 = vld [vmem:[%s3382 + $0x1c] sm:$0xf]
      %v3847 = vld [vmem:[%s3382 + $0x20] sm:$0xf]
      %v3848 = vld [vmem:[%s3382 + $0x24] sm:$0xf]
      %v3849 = vld [vmem:[%s3382 + $0x28] sm:$0xf]
      %v3850 = vld [vmem:[%s3382 + $0x2c] sm:$0xf]
      %v3851 = vld [vmem:[%s3382 + $0x30] sm:$0xf]
      %v3852 = vld [vmem:[%s3382 + $0x34] sm:$0xf]
      %v3853 = vld [vmem:[%s3382 + $0x38] sm:$0xf]
      %v3854 = vld [vmem:[%s3382 + $0x3c] sm:$0xf]
      %v3855 = vld [vmem:[%s3382 + $0x40] sm:$0xf]
      %v3856 = vld [vmem:[%s3382 + $0x44] sm:$0xf]
      %v3857 = vld [vmem:[%s3382 + $0x48] sm:$0xf]
      %v3858 = vld [vmem:[%s3382 + $0x4c] sm:$0xf]
      %v3859 = vld [vmem:[%s3382 + $0x50] sm:$0xf]
      %v3860 = vld [vmem:[%s3382 + $0x54] sm:$0xf]
      %v3861 = vld [vmem:[%s3382 + $0x58] sm:$0xf]
      %v3862 = vld [vmem:[%s3382 + $0x5c] sm:$0xf]
      %v3863 = vld [vmem:[%s3382 + $0x60] sm:$0xf]
      %v3864 = vld [vmem:[%s3382 + $0x64] sm:$0xf]
      %v3865 = vld [vmem:[%s3382 + $0x68] sm:$0xf]
      %v3866 = vld [vmem:[%s3382 + $0x6c] sm:$0xf]
      %v3867 = vld [vmem:[%s3382 + $0x70] sm:$0xf]
      %v3868 = vld [vmem:[%s3382 + $0x74] sm:$0xf]
      %v3869 = vld [vmem:[%s3382 + $0x78] sm:$0xf]
      %v3870 = vld [vmem:[%s3382 + $0x7c] sm:$0xf]
      %v3871 = vld [vmem:[%s3382 + $0x80] sm:$0x1]
      %v3905 = vunpack.c.l.b16 %v3839
      %v3906 = vunpack.c.l.b16 %v3840
      %v3907 = vunpack.c.l.b16 %v3841
      %v3908 = vunpack.c.l.b16 %v3842
      %v3909 = vunpack.c.l.b16 %v3843
      %v3910 = vunpack.c.l.b16 %v3844
      %v3911 = vunpack.c.l.b16 %v3845
      %v3912 = vunpack.c.l.b16 %v3846
      %v3913 = vunpack.c.l.b16 %v3847
      %v3914 = vunpack.c.l.b16 %v3848
      %v3915 = vunpack.c.l.b16 %v3849
      %v3916 = vunpack.c.l.b16 %v3850
      %v3917 = vunpack.c.l.b16 %v3851
      %v3918 = vunpack.c.l.b16 %v3852
      %v3919 = vunpack.c.l.b16 %v3853
      %v3920 = vunpack.c.l.b16 %v3854
      %v3921 = vunpack.c.l.b16 %v3855
      %v3922 = vunpack.c.l.b16 %v3856
      %v3923 = vunpack.c.l.b16 %v3857
      %v3924 = vunpack.c.l.b16 %v3858
      %v3925 = vunpack.c.l.b16 %v3859
      %v3926 = vunpack.c.l.b16 %v3860
      %v3927 = vunpack.c.l.b16 %v3861
      %v3928 = vunpack.c.l.b16 %v3862
      %v3929 = vunpack.c.l.b16 %v3863
      %v3930 = vunpack.c.l.b16 %v3864
      %v3931 = vunpack.c.l.b16 %v3865
      %v3932 = vunpack.c.l.b16 %v3866
      %v3933 = vunpack.c.l.b16 %v3867
      %v3934 = vunpack.c.l.b16 %v3868
      %v3935 = vunpack.c.l.b16 %v3869
      %v3936 = vunpack.c.l.b16 %v3870
      %v3937 = vunpack.c.l.b16 %v3871
      %v3938 = vpack.c.b16 %v3906, %v3905
      %v3939 = vpack.c.b16 %v3908, %v3907
      %v3940 = vpack.c.b16 %v3910, %v3909
      %v3941 = vpack.c.b16 %v3912, %v3911
      %v3942 = vpack.c.b16 %v3914, %v3913
      %v3943 = vpack.c.b16 %v3916, %v3915
      %v3944 = vpack.c.b16 %v3918, %v3917
      %v3945 = vpack.c.b16 %v3920, %v3919
      %v3946 = vpack.c.b16 %v3922, %v3921
      %v3947 = vpack.c.b16 %v3924, %v3923
      %v3948 = vpack.c.b16 %v3926, %v3925
      %v3949 = vpack.c.b16 %v3928, %v3927
      %v3950 = vpack.c.b16 %v3930, %v3929
      %v3951 = vpack.c.b16 %v3932, %v3931
      %v3952 = vpack.c.b16 %v3934, %v3933
      %v3953 = vpack.c.b16 %v3936, %v3935
      %v3954 = vpack.c.b16 %v3937, %v3937
      %v3955 = vrot.slane %v3938, 1
      %v3956 = vrot.slane %v3939, 1
      %v3957 = vsel %vm755, %v3955, %v3956
      %v3958 = vrot.slane %v3940, 1
      %v3959 = vsel %vm755, %v3956, %v3958
      %v3960 = vrot.slane %v3941, 1
      %v3961 = vsel %vm755, %v3958, %v3960
      %v3962 = vrot.slane %v3942, 1
      %v3963 = vsel %vm755, %v3960, %v3962
      %v3964 = vrot.slane %v3943, 1
      %v3965 = vsel %vm755, %v3962, %v3964
      %v3966 = vrot.slane %v3944, 1
      %v3967 = vsel %vm755, %v3964, %v3966
      %v3968 = vrot.slane %v3945, 1
      %v3969 = vsel %vm755, %v3966, %v3968
      %v3970 = vrot.slane %v3946, 1
      %v3971 = vsel %vm755, %v3968, %v3970
      %v3972 = vrot.slane %v3947, 1
      %v3973 = vsel %vm755, %v3970, %v3972
      %v3974 = vrot.slane %v3948, 1
      %v3975 = vsel %vm755, %v3972, %v3974
      %v3976 = vrot.slane %v3949, 1
      %v3977 = vsel %vm755, %v3974, %v3976
      %v3978 = vrot.slane %v3950, 1
      %v3979 = vsel %vm755, %v3976, %v3978
      %v3980 = vrot.slane %v3951, 1
      %v3981 = vsel %vm755, %v3978, %v3980
      %v3982 = vrot.slane %v3952, 1
      %v3983 = vsel %vm755, %v3980, %v3982
      %v3984 = vrot.slane %v3953, 1
      %v3985 = vsel %vm755, %v3982, %v3984
      %v3986 = vrot.slane %v3954, 1
      %v3987 = vsel %vm755, %v3984, %v3986
      %4004 = vst.msk [vmem:[#allocation2 + $0x8] sm:$0xff] %vm308, %v3957
      %4005 = vst.msk [vmem:[#allocation2 + $0x30] sm:$0xff] %vm308, %v3959
      %4006 = vst.msk [vmem:[#allocation2 + $0x58] sm:$0xff] %vm308, %v3961
      %4007 = vst.msk [vmem:[#allocation2 + $0x80] sm:$0xff] %vm308, %v3963
      %4008 = vst.msk [vmem:[#allocation2 + $0xa8] sm:$0xff] %vm308, %v3965
      %4009 = vst.msk [vmem:[#allocation2 + $0xd0] sm:$0xff] %vm308, %v3967
      %4010 = vst.msk [vmem:[#allocation2 + $0xf8] sm:$0xff] %vm308, %v3969
      %4011 = vst.msk [vmem:[#allocation2 + $0x120] sm:$0xff] %vm308, %v3971
      %4012 = vst.msk [vmem:[#allocation2 + $0x148] sm:$0xff] %vm308, %v3973
      %4013 = vst.msk [vmem:[#allocation2 + $0x170] sm:$0xff] %vm308, %v3975
      %4014 = vst.msk [vmem:[#allocation2 + $0x198] sm:$0xff] %vm308, %v3977
      %4015 = vst.msk [vmem:[#allocation2 + $0x1c0] sm:$0xff] %vm308, %v3979
      %4016 = vst.msk [vmem:[#allocation2 + $0x1e8] sm:$0xff] %vm308, %v3981
      %4017 = vst.msk [vmem:[#allocation2 + $0x210] sm:$0xff] %vm308, %v3983
      %4018 = vst.msk [vmem:[#allocation2 + $0x238] sm:$0xff] %vm308, %v3985
      %4019 = vst.msk [vmem:[#allocation2 + $0x260] sm:$0xff] %vm308, %v3987
      %v4020 = vld [vmem:[%s3382 + $0x8] sm:$0xf]
      %v4021 = vld [vmem:[%s3382 + $0xc] sm:$0xf]
      %v4022 = vld [vmem:[%s3382 + $0x10] sm:$0xf]
      %v4023 = vld [vmem:[%s3382 + $0x14] sm:$0xf]
      %v4024 = vld [vmem:[%s3382 + $0x18] sm:$0xf]
      %v4025 = vld [vmem:[%s3382 + $0x1c] sm:$0xf]
      %v4026 = vld [vmem:[%s3382 + $0x20] sm:$0xf]
      %v4027 = vld [vmem:[%s3382 + $0x24] sm:$0xf]
      %v4028 = vld [vmem:[%s3382 + $0x28] sm:$0xf]
      %v4029 = vld [vmem:[%s3382 + $0x2c] sm:$0xf]
      %v4030 = vld [vmem:[%s3382 + $0x30] sm:$0xf]
      %v4031 = vld [vmem:[%s3382 + $0x34] sm:$0xf]
      %v4032 = vld [vmem:[%s3382 + $0x38] sm:$0xf]
      %v4033 = vld [vmem:[%s3382 + $0x3c] sm:$0xf]
      %v4034 = vld [vmem:[%s3382 + $0x40] sm:$0xf]
      %v4035 = vld [vmem:[%s3382 + $0x44] sm:$0xf]
      %v4036 = vld [vmem:[%s3382 + $0x48] sm:$0xf]
      %v4037 = vld [vmem:[%s3382 + $0x4c] sm:$0xf]
      %v4038 = vld [vmem:[%s3382 + $0x50] sm:$0xf]
      %v4039 = vld [vmem:[%s3382 + $0x54] sm:$0xf]
      %v4040 = vld [vmem:[%s3382 + $0x58] sm:$0xf]
      %v4041 = vld [vmem:[%s3382 + $0x5c] sm:$0xf]
      %v4042 = vld [vmem:[%s3382 + $0x60] sm:$0xf]
      %v4043 = vld [vmem:[%s3382 + $0x64] sm:$0xf]
      %v4044 = vld [vmem:[%s3382 + $0x68] sm:$0xf]
      %v4045 = vld [vmem:[%s3382 + $0x6c] sm:$0xf]
      %v4046 = vld [vmem:[%s3382 + $0x70] sm:$0xf]
      %v4047 = vld [vmem:[%s3382 + $0x74] sm:$0xf]
      %v4048 = vld [vmem:[%s3382 + $0x78] sm:$0xf]
      %v4049 = vld [vmem:[%s3382 + $0x7c] sm:$0xf]
      %v4050 = vld [vmem:[%s3382 + $0x80] sm:$0xf]
      %v4051 = vld [vmem:[%s3382 + $0x84] sm:$0xf]
      %v4052 = vld [vmem:[%s3382 + $0x88] sm:$0x1]
      %v4086 = vunpack.c.l.b16 %v4020
      %v4087 = vunpack.c.l.b16 %v4021
      %v4088 = vunpack.c.l.b16 %v4022
      %v4089 = vunpack.c.l.b16 %v4023
      %v4090 = vunpack.c.l.b16 %v4024
      %v4091 = vunpack.c.l.b16 %v4025
      %v4092 = vunpack.c.l.b16 %v4026
      %v4093 = vunpack.c.l.b16 %v4027
      %v4094 = vunpack.c.l.b16 %v4028
      %v4095 = vunpack.c.l.b16 %v4029
      %v4096 = vunpack.c.l.b16 %v4030
      %v4097 = vunpack.c.l.b16 %v4031
      %v4098 = vunpack.c.l.b16 %v4032
      %v4099 = vunpack.c.l.b16 %v4033
      %v4100 = vunpack.c.l.b16 %v4034
      %v4101 = vunpack.c.l.b16 %v4035
      %v4102 = vunpack.c.l.b16 %v4036
      %v4103 = vunpack.c.l.b16 %v4037
      %v4104 = vunpack.c.l.b16 %v4038
      %v4105 = vunpack.c.l.b16 %v4039
      %v4106 = vunpack.c.l.b16 %v4040
      %v4107 = vunpack.c.l.b16 %v4041
      %v4108 = vunpack.c.l.b16 %v4042
      %v4109 = vunpack.c.l.b16 %v4043
      %v4110 = vunpack.c.l.b16 %v4044
      %v4111 = vunpack.c.l.b16 %v4045
      %v4112 = vunpack.c.l.b16 %v4046
      %v4113 = vunpack.c.l.b16 %v4047
      %v4114 = vunpack.c.l.b16 %v4048
      %v4115 = vunpack.c.l.b16 %v4049
      %v4116 = vunpack.c.l.b16 %v4050
      %v4117 = vunpack.c.l.b16 %v4051
      %v4118 = vunpack.c.l.b16 %v4052
      %v4119 = vpack.c.b16 %v4087, %v4086
      %v4120 = vpack.c.b16 %v4089, %v4088
      %v4121 = vpack.c.b16 %v4091, %v4090
      %v4122 = vpack.c.b16 %v4093, %v4092
      %v4123 = vpack.c.b16 %v4095, %v4094
      %v4124 = vpack.c.b16 %v4097, %v4096
      %v4125 = vpack.c.b16 %v4099, %v4098
      %v4126 = vpack.c.b16 %v4101, %v4100
      %v4127 = vpack.c.b16 %v4103, %v4102
      %v4128 = vpack.c.b16 %v4105, %v4104
      %v4129 = vpack.c.b16 %v4107, %v4106
      %v4130 = vpack.c.b16 %v4109, %v4108
      %v4131 = vpack.c.b16 %v4111, %v4110
      %v4132 = vpack.c.b16 %v4113, %v4112
      %v4133 = vpack.c.b16 %v4115, %v4114
      %v4134 = vpack.c.b16 %v4117, %v4116
      %v4135 = vpack.c.b16 %v4118, %v4118
      %v4137 = vshrl.u32 %v4119, 16
      %v4139 = vshll.u32 %v4119, 16
      %v4141 = vrot.slane %v4139, 1
      %v4142 = vor.u32 %v4137, %v4141
      %v4144 = vshll.u32 %v4120, 16
      %v4146 = vrot.slane %v4144, 1
      %v4147 = vsel %vm441, %v4142, %v4146
      %v4148 = vshrl.u32 %v4120, 16
      %v4150 = vor.u32 %v4148, %v4146
      %v4152 = vshll.u32 %v4121, 16
      %v4154 = vrot.slane %v4152, 1
      %v4155 = vsel %vm441, %v4150, %v4154
      %v4156 = vshrl.u32 %v4121, 16
      %v4158 = vor.u32 %v4156, %v4154
      %v4160 = vshll.u32 %v4122, 16
      %v4162 = vrot.slane %v4160, 1
      %v4163 = vsel %vm441, %v4158, %v4162
      %v4164 = vshrl.u32 %v4122, 16
      %v4166 = vor.u32 %v4164, %v4162
      %v4168 = vshll.u32 %v4123, 16
      %v4170 = vrot.slane %v4168, 1
      %v4171 = vsel %vm441, %v4166, %v4170
      %v4172 = vshrl.u32 %v4123, 16
      %v4174 = vor.u32 %v4172, %v4170
      %v4176 = vshll.u32 %v4124, 16
      %v4178 = vrot.slane %v4176, 1
      %v4179 = vsel %vm441, %v4174, %v4178
      %v4180 = vshrl.u32 %v4124, 16
      %v4182 = vor.u32 %v4180, %v4178
      %v4184 = vshll.u32 %v4125, 16
      %v4186 = vrot.slane %v4184, 1
      %v4187 = vsel %vm441, %v4182, %v4186
      %v4188 = vshrl.u32 %v4125, 16
      %v4190 = vor.u32 %v4188, %v4186
      %v4192 = vshll.u32 %v4126, 16
      %v4194 = vrot.slane %v4192, 1
      %v4195 = vsel %vm441, %v4190, %v4194
      %v4196 = vshrl.u32 %v4126, 16
      %v4198 = vor.u32 %v4196, %v4194
      %v4200 = vshll.u32 %v4127, 16
      %v4202 = vrot.slane %v4200, 1
      %v4203 = vsel %vm441, %v4198, %v4202
      %v4204 = vshrl.u32 %v4127, 16
      %v4206 = vor.u32 %v4204, %v4202
      %v4208 = vshll.u32 %v4128, 16
      %v4210 = vrot.slane %v4208, 1
      %v4211 = vsel %vm441, %v4206, %v4210
      %v4212 = vshrl.u32 %v4128, 16
      %v4214 = vor.u32 %v4212, %v4210
      %v4216 = vshll.u32 %v4129, 16
      %v4218 = vrot.slane %v4216, 1
      %v4219 = vsel %vm441, %v4214, %v4218
      %v4220 = vshrl.u32 %v4129, 16
      %v4222 = vor.u32 %v4220, %v4218
      %v4224 = vshll.u32 %v4130, 16
      %v4226 = vrot.slane %v4224, 1
      %v4227 = vsel %vm441, %v4222, %v4226
      %v4228 = vshrl.u32 %v4130, 16
      %v4230 = vor.u32 %v4228, %v4226
      %v4232 = vshll.u32 %v4131, 16
      %v4234 = vrot.slane %v4232, 1
      %v4235 = vsel %vm441, %v4230, %v4234
      %v4236 = vshrl.u32 %v4131, 16
      %v4238 = vor.u32 %v4236, %v4234
      %v4240 = vshll.u32 %v4132, 16
      %v4242 = vrot.slane %v4240, 1
      %v4243 = vsel %vm441, %v4238, %v4242
      %v4244 = vshrl.u32 %v4132, 16
      %v4246 = vor.u32 %v4244, %v4242
      %v4248 = vshll.u32 %v4133, 16
      %v4250 = vrot.slane %v4248, 1
      %v4251 = vsel %vm441, %v4246, %v4250
      %v4252 = vshrl.u32 %v4133, 16
      %v4254 = vor.u32 %v4252, %v4250
      %v4256 = vshll.u32 %v4134, 16
      %v4258 = vrot.slane %v4256, 1
      %v4259 = vsel %vm441, %v4254, %v4258
      %v4260 = vshrl.u32 %v4134, 16
      %v4262 = vor.u32 %v4260, %v4258
      %v4264 = vshll.u32 %v4135, 16
      %v4266 = vrot.slane %v4264, 1
      %v4267 = vsel %vm441, %v4262, %v4266
      %4268 = vrot.lane.b32.xlu0 %v4147, 64
      %v4269 = vpop.permute.xlu0 %4268
      %4270 = vrot.lane.b32.xlu0 %v4155, 64
      %v4271 = vpop.permute.xlu0 %4270
      %4272 = vrot.lane.b32.xlu0 %v4163, 64
      %v4273 = vpop.permute.xlu0 %4272
      %4274 = vrot.lane.b32.xlu0 %v4171, 64
      %v4275 = vpop.permute.xlu0 %4274
      %4276 = vrot.lane.b32.xlu0 %v4179, 64
      %v4277 = vpop.permute.xlu0 %4276
      %4278 = vrot.lane.b32.xlu0 %v4187, 64
      %v4279 = vpop.permute.xlu0 %4278
      %4280 = vrot.lane.b32.xlu0 %v4195, 64
      %v4281 = vpop.permute.xlu0 %4280
      %4282 = vrot.lane.b32.xlu0 %v4203, 64
      %v4283 = vpop.permute.xlu0 %4282
      %4284 = vrot.lane.b32.xlu0 %v4211, 64
      %v4285 = vpop.permute.xlu0 %4284
      %4286 = vrot.lane.b32.xlu0 %v4219, 64
      %v4287 = vpop.permute.xlu0 %4286
      %4288 = vrot.lane.b32.xlu0 %v4227, 64
      %v4289 = vpop.permute.xlu0 %4288
      %4290 = vrot.lane.b32.xlu0 %v4235, 64
      %v4291 = vpop.permute.xlu0 %4290
      %4292 = vrot.lane.b32.xlu0 %v4243, 64
      %v4293 = vpop.permute.xlu0 %4292
      %4294 = vrot.lane.b32.xlu0 %v4251, 64
      %v4295 = vpop.permute.xlu0 %4294
      %4296 = vrot.lane.b32.xlu0 %v4259, 64
      %v4297 = vpop.permute.xlu0 %4296
      %4298 = vrot.lane.b32.xlu0 %v4267, 64
      %v4299 = vpop.permute.xlu0 %4298
      %4316 = vst.msk [vmem:[#allocation2 + $0x8] sm:$0xff] %vm622, %v4269
      %4317 = vst.msk [vmem:[#allocation2 + $0x30] sm:$0xff] %vm622, %v4271
      %4318 = vst.msk [vmem:[#allocation2 + $0x58] sm:$0xff] %vm622, %v4273
      %4319 = vst.msk [vmem:[#allocation2 + $0x80] sm:$0xff] %vm622, %v4275
      %4320 = vst.msk [vmem:[#allocation2 + $0xa8] sm:$0xff] %vm622, %v4277
      %4321 = vst.msk [vmem:[#allocation2 + $0xd0] sm:$0xff] %vm622, %v4279
      %4322 = vst.msk [vmem:[#allocation2 + $0xf8] sm:$0xff] %vm622, %v4281
      %4323 = vst.msk [vmem:[#allocation2 + $0x120] sm:$0xff] %vm622, %v4283
      %4324 = vst.msk [vmem:[#allocation2 + $0x148] sm:$0xff] %vm622, %v4285
      %4325 = vst.msk [vmem:[#allocation2 + $0x170] sm:$0xff] %vm622, %v4287
      %4326 = vst.msk [vmem:[#allocation2 + $0x198] sm:$0xff] %vm622, %v4289
      %4327 = vst.msk [vmem:[#allocation2 + $0x1c0] sm:$0xff] %vm622, %v4291
      %4328 = vst.msk [vmem:[#allocation2 + $0x1e8] sm:$0xff] %vm622, %v4293
      %4329 = vst.msk [vmem:[#allocation2 + $0x210] sm:$0xff] %vm622, %v4295
      %4330 = vst.msk [vmem:[#allocation2 + $0x238] sm:$0xff] %vm622, %v4297
      %4331 = vst.msk [vmem:[#allocation2 + $0x260] sm:$0xff] %vm622, %v4299
      %v4332 = vld [vmem:[%s3382 + $0x8] sm:$0xe]
      %v4333 = vld [vmem:[%s3382 + $0xc] sm:$0xf]
      %v4334 = vld [vmem:[%s3382 + $0x10] sm:$0xf]
      %v4335 = vld [vmem:[%s3382 + $0x14] sm:$0xf]
      %v4336 = vld [vmem:[%s3382 + $0x18] sm:$0xf]
      %v4337 = vld [vmem:[%s3382 + $0x1c] sm:$0xf]
      %v4338 = vld [vmem:[%s3382 + $0x20] sm:$0xf]
      %v4339 = vld [vmem:[%s3382 + $0x24] sm:$0xf]
      %v4340 = vld [vmem:[%s3382 + $0x28] sm:$0xf]
      %v4341 = vld [vmem:[%s3382 + $0x2c] sm:$0xf]
      %v4342 = vld [vmem:[%s3382 + $0x30] sm:$0xf]
      %v4343 = vld [vmem:[%s3382 + $0x34] sm:$0xf]
      %v4344 = vld [vmem:[%s3382 + $0x38] sm:$0xf]
      %v4345 = vld [vmem:[%s3382 + $0x3c] sm:$0xf]
      %v4346 = vld [vmem:[%s3382 + $0x40] sm:$0xf]
      %v4347 = vld [vmem:[%s3382 + $0x44] sm:$0xf]
      %v4348 = vld [vmem:[%s3382 + $0x48] sm:$0xf]
      %v4349 = vld [vmem:[%s3382 + $0x4c] sm:$0xf]
      %v4350 = vld [vmem:[%s3382 + $0x50] sm:$0xf]
      %v4351 = vld [vmem:[%s3382 + $0x54] sm:$0xf]
      %v4352 = vld [vmem:[%s3382 + $0x58] sm:$0xf]
      %v4353 = vld [vmem:[%s3382 + $0x5c] sm:$0xf]
      %v4354 = vld [vmem:[%s3382 + $0x60] sm:$0xf]
      %v4355 = vld [vmem:[%s3382 + $0x64] sm:$0xf]
      %v4356 = vld [vmem:[%s3382 + $0x68] sm:$0xf]
      %v4357 = vld [vmem:[%s3382 + $0x6c] sm:$0xf]
      %v4358 = vld [vmem:[%s3382 + $0x70] sm:$0xf]
      %v4359 = vld [vmem:[%s3382 + $0x74] sm:$0xf]
      %v4360 = vld [vmem:[%s3382 + $0x78] sm:$0xf]
      %v4361 = vld [vmem:[%s3382 + $0x7c] sm:$0xf]
      %v4362 = vld [vmem:[%s3382 + $0x80] sm:$0xf]
      %v4363 = vld [vmem:[%s3382 + $0x84] sm:$0xf]
      %v4364 = vld [vmem:[%s3382 + $0x88] sm:$0x1]
      %v4398 = vunpack.c.l.b16 %v4332
      %v4399 = vunpack.c.l.b16 %v4333
      %v4400 = vunpack.c.l.b16 %v4334
      %v4401 = vunpack.c.l.b16 %v4335
      %v4402 = vunpack.c.l.b16 %v4336
      %v4403 = vunpack.c.l.b16 %v4337
      %v4404 = vunpack.c.l.b16 %v4338
      %v4405 = vunpack.c.l.b16 %v4339
      %v4406 = vunpack.c.l.b16 %v4340
      %v4407 = vunpack.c.l.b16 %v4341
      %v4408 = vunpack.c.l.b16 %v4342
      %v4409 = vunpack.c.l.b16 %v4343
      %v4410 = vunpack.c.l.b16 %v4344
      %v4411 = vunpack.c.l.b16 %v4345
      %v4412 = vunpack.c.l.b16 %v4346
      %v4413 = vunpack.c.l.b16 %v4347
      %v4414 = vunpack.c.l.b16 %v4348
      %v4415 = vunpack.c.l.b16 %v4349
      %v4416 = vunpack.c.l.b16 %v4350
      %v4417 = vunpack.c.l.b16 %v4351
      %v4418 = vunpack.c.l.b16 %v4352
      %v4419 = vunpack.c.l.b16 %v4353
      %v4420 = vunpack.c.l.b16 %v4354
      %v4421 = vunpack.c.l.b16 %v4355
      %v4422 = vunpack.c.l.b16 %v4356
      %v4423 = vunpack.c.l.b16 %v4357
      %v4424 = vunpack.c.l.b16 %v4358
      %v4425 = vunpack.c.l.b16 %v4359
      %v4426 = vunpack.c.l.b16 %v4360
      %v4427 = vunpack.c.l.b16 %v4361
      %v4428 = vunpack.c.l.b16 %v4362
      %v4429 = vunpack.c.l.b16 %v4363
      %v4430 = vunpack.c.l.b16 %v4364
      %v4431 = vpack.c.b16 %v4399, %v4398
      %v4432 = vpack.c.b16 %v4401, %v4400
      %v4433 = vpack.c.b16 %v4403, %v4402
      %v4434 = vpack.c.b16 %v4405, %v4404
      %v4435 = vpack.c.b16 %v4407, %v4406
      %v4436 = vpack.c.b16 %v4409, %v4408
      %v4437 = vpack.c.b16 %v4411, %v4410
      %v4438 = vpack.c.b16 %v4413, %v4412
      %v4439 = vpack.c.b16 %v4415, %v4414
      %v4440 = vpack.c.b16 %v4417, %v4416
      %v4441 = vpack.c.b16 %v4419, %v4418
      %v4442 = vpack.c.b16 %v4421, %v4420
      %v4443 = vpack.c.b16 %v4423, %v4422
      %v4444 = vpack.c.b16 %v4425, %v4424
      %v4445 = vpack.c.b16 %v4427, %v4426
      %v4446 = vpack.c.b16 %v4429, %v4428
      %v4447 = vpack.c.b16 %v4430, %v4430
      %v4448 = vrot.slane %v4431, 1
      %v4449 = vrot.slane %v4432, 1
      %v4450 = vsel %vm755, %v4448, %v4449
      %v4451 = vrot.slane %v4433, 1
      %v4452 = vsel %vm755, %v4449, %v4451
      %v4453 = vrot.slane %v4434, 1
      %v4454 = vsel %vm755, %v4451, %v4453
      %v4455 = vrot.slane %v4435, 1
      %v4456 = vsel %vm755, %v4453, %v4455
      %v4457 = vrot.slane %v4436, 1
      %v4458 = vsel %vm755, %v4455, %v4457
      %v4459 = vrot.slane %v4437, 1
      %v4460 = vsel %vm755, %v4457, %v4459
      %v4461 = vrot.slane %v4438, 1
      %v4462 = vsel %vm755, %v4459, %v4461
      %v4463 = vrot.slane %v4439, 1
      %v4464 = vsel %vm755, %v4461, %v4463
      %v4465 = vrot.slane %v4440, 1
      %v4466 = vsel %vm755, %v4463, %v4465
      %v4467 = vrot.slane %v4441, 1
      %v4468 = vsel %vm755, %v4465, %v4467
      %v4469 = vrot.slane %v4442, 1
      %v4470 = vsel %vm755, %v4467, %v4469
      %v4471 = vrot.slane %v4443, 1
      %v4472 = vsel %vm755, %v4469, %v4471
      %v4473 = vrot.slane %v4444, 1
      %v4474 = vsel %vm755, %v4471, %v4473
      %v4475 = vrot.slane %v4445, 1
      %v4476 = vsel %vm755, %v4473, %v4475
      %v4477 = vrot.slane %v4446, 1
      %v4478 = vsel %vm755, %v4475, %v4477
      %v4479 = vrot.slane %v4447, 1
      %v4480 = vsel %vm755, %v4477, %v4479
      %4497 = vst.msk [vmem:[#allocation2 + $0x10] sm:$0xff] %vm308, %v4450
      %4498 = vst.msk [vmem:[#allocation2 + $0x38] sm:$0xff] %vm308, %v4452
      %4499 = vst.msk [vmem:[#allocation2 + $0x60] sm:$0xff] %vm308, %v4454
      %4500 = vst.msk [vmem:[#allocation2 + $0x88] sm:$0xff] %vm308, %v4456
      %4501 = vst.msk [vmem:[#allocation2 + $0xb0] sm:$0xff] %vm308, %v4458
      %4502 = vst.msk [vmem:[#allocation2 + $0xd8] sm:$0xff] %vm308, %v4460
      %4503 = vst.msk [vmem:[#allocation2 + $0x100] sm:$0xff] %vm308, %v4462
      %4504 = vst.msk [vmem:[#allocation2 + $0x128] sm:$0xff] %vm308, %v4464
      %4505 = vst.msk [vmem:[#allocation2 + $0x150] sm:$0xff] %vm308, %v4466
      %4506 = vst.msk [vmem:[#allocation2 + $0x178] sm:$0xff] %vm308, %v4468
      %4507 = vst.msk [vmem:[#allocation2 + $0x1a0] sm:$0xff] %vm308, %v4470
      %4508 = vst.msk [vmem:[#allocation2 + $0x1c8] sm:$0xff] %vm308, %v4472
      %4509 = vst.msk [vmem:[#allocation2 + $0x1f0] sm:$0xff] %vm308, %v4474
      %4510 = vst.msk [vmem:[#allocation2 + $0x218] sm:$0xff] %vm308, %v4476
      %4511 = vst.msk [vmem:[#allocation2 + $0x240] sm:$0xff] %vm308, %v4478
      %4512 = vst.msk [vmem:[#allocation2 + $0x268] sm:$0xff] %vm308, %v4480
      %v4513 = vld [vmem:[%s3382 + $0x8] sm:$0xe]
      %v4514 = vld [vmem:[%s3382 + $0xc] sm:$0xf]
      %v4515 = vld [vmem:[%s3382 + $0x10] sm:$0xf]
      %v4516 = vld [vmem:[%s3382 + $0x14] sm:$0xf]
      %v4517 = vld [vmem:[%s3382 + $0x18] sm:$0xf]
      %v4518 = vld [vmem:[%s3382 + $0x1c] sm:$0xf]
      %v4519 = vld [vmem:[%s3382 + $0x20] sm:$0xf]
      %v4520 = vld [vmem:[%s3382 + $0x24] sm:$0xf]
      %v4521 = vld [vmem:[%s3382 + $0x28] sm:$0xf]
      %v4522 = vld [vmem:[%s3382 + $0x2c] sm:$0xf]
      %v4523 = vld [vmem:[%s3382 + $0x30] sm:$0xf]
      %v4524 = vld [vmem:[%s3382 + $0x34] sm:$0xf]
      %v4525 = vld [vmem:[%s3382 + $0x38] sm:$0xf]
      %v4526 = vld [vmem:[%s3382 + $0x3c] sm:$0xf]
      %v4527 = vld [vmem:[%s3382 + $0x40] sm:$0xf]
      %v4528 = vld [vmem:[%s3382 + $0x44] sm:$0xf]
      %v4529 = vld [vmem:[%s3382 + $0x48] sm:$0xf]
      %v4530 = vld [vmem:[%s3382 + $0x4c] sm:$0xf]
      %v4531 = vld [vmem:[%s3382 + $0x50] sm:$0xf]
      %v4532 = vld [vmem:[%s3382 + $0x54] sm:$0xf]
      %v4533 = vld [vmem:[%s3382 + $0x58] sm:$0xf]
      %v4534 = vld [vmem:[%s3382 + $0x5c] sm:$0xf]
      %v4535 = vld [vmem:[%s3382 + $0x60] sm:$0xf]
      %v4536 = vld [vmem:[%s3382 + $0x64] sm:$0xf]
      %v4537 = vld [vmem:[%s3382 + $0x68] sm:$0xf]
      %v4538 = vld [vmem:[%s3382 + $0x6c] sm:$0xf]
      %v4539 = vld [vmem:[%s3382 + $0x70] sm:$0xf]
      %v4540 = vld [vmem:[%s3382 + $0x74] sm:$0xf]
      %v4541 = vld [vmem:[%s3382 + $0x78] sm:$0xf]
      %v4542 = vld [vmem:[%s3382 + $0x7c] sm:$0xf]
      %v4543 = vld [vmem:[%s3382 + $0x80] sm:$0xf]
      %v4544 = vld [vmem:[%s3382 + $0x84] sm:$0xf]
      %v4545 = vld [vmem:[%s3382 + $0x88] sm:$0x3]
      %v4579 = vunpack.c.l.b16 %v4513
      %v4580 = vunpack.c.l.b16 %v4514
      %v4581 = vunpack.c.l.b16 %v4515
      %v4582 = vunpack.c.l.b16 %v4516
      %v4583 = vunpack.c.l.b16 %v4517
      %v4584 = vunpack.c.l.b16 %v4518
      %v4585 = vunpack.c.l.b16 %v4519
      %v4586 = vunpack.c.l.b16 %v4520
      %v4587 = vunpack.c.l.b16 %v4521
      %v4588 = vunpack.c.l.b16 %v4522
      %v4589 = vunpack.c.l.b16 %v4523
      %v4590 = vunpack.c.l.b16 %v4524
      %v4591 = vunpack.c.l.b16 %v4525
      %v4592 = vunpack.c.l.b16 %v4526
      %v4593 = vunpack.c.l.b16 %v4527
      %v4594 = vunpack.c.l.b16 %v4528
      %v4595 = vunpack.c.l.b16 %v4529
      %v4596 = vunpack.c.l.b16 %v4530
      %v4597 = vunpack.c.l.b16 %v4531
      %v4598 = vunpack.c.l.b16 %v4532
      %v4599 = vunpack.c.l.b16 %v4533
      %v4600 = vunpack.c.l.b16 %v4534
      %v4601 = vunpack.c.l.b16 %v4535
      %v4602 = vunpack.c.l.b16 %v4536
      %v4603 = vunpack.c.l.b16 %v4537
      %v4604 = vunpack.c.l.b16 %v4538
      %v4605 = vunpack.c.l.b16 %v4539
      %v4606 = vunpack.c.l.b16 %v4540
      %v4607 = vunpack.c.l.b16 %v4541
      %v4608 = vunpack.c.l.b16 %v4542
      %v4609 = vunpack.c.l.b16 %v4543
      %v4610 = vunpack.c.l.b16 %v4544
      %v4611 = vunpack.c.l.b16 %v4545
      %v4612 = vpack.c.b16 %v4580, %v4579
      %v4613 = vpack.c.b16 %v4582, %v4581
      %v4614 = vpack.c.b16 %v4584, %v4583
      %v4615 = vpack.c.b16 %v4586, %v4585
      %v4616 = vpack.c.b16 %v4588, %v4587
      %v4617 = vpack.c.b16 %v4590, %v4589
      %v4618 = vpack.c.b16 %v4592, %v4591
      %v4619 = vpack.c.b16 %v4594, %v4593
      %v4620 = vpack.c.b16 %v4596, %v4595
      %v4621 = vpack.c.b16 %v4598, %v4597
      %v4622 = vpack.c.b16 %v4600, %v4599
      %v4623 = vpack.c.b16 %v4602, %v4601
      %v4624 = vpack.c.b16 %v4604, %v4603
      %v4625 = vpack.c.b16 %v4606, %v4605
      %v4626 = vpack.c.b16 %v4608, %v4607
      %v4627 = vpack.c.b16 %v4610, %v4609
      %v4628 = vpack.c.b16 %v4611, %v4611
      %v4630 = vshrl.u32 %v4612, 16
      %v4632 = vrot.slane %v4630, 1
      %v4633 = vshll.u32 %v4612, 16
      %v4635 = vrot.slane %v4633, 2
      %v4636 = vor.u32 %v4632, %v4635
      %v4638 = vshrl.u32 %v4613, 16
      %v4640 = vrot.slane %v4638, 1
      %v4641 = vshll.u32 %v4613, 16
      %v4643 = vrot.slane %v4641, 2
      %v4644 = vor.u32 %v4640, %v4643
      %v4645 = vsel %vm1430, %v4636, %v4644
      %v4647 = vshrl.u32 %v4614, 16
      %v4649 = vrot.slane %v4647, 1
      %v4650 = vshll.u32 %v4614, 16
      %v4652 = vrot.slane %v4650, 2
      %v4653 = vor.u32 %v4649, %v4652
      %v4654 = vsel %vm1430, %v4644, %v4653
      %v4656 = vshrl.u32 %v4615, 16
      %v4658 = vrot.slane %v4656, 1
      %v4659 = vshll.u32 %v4615, 16
      %v4661 = vrot.slane %v4659, 2
      %v4662 = vor.u32 %v4658, %v4661
      %v4663 = vsel %vm1430, %v4653, %v4662
      %v4665 = vshrl.u32 %v4616, 16
      %v4667 = vrot.slane %v4665, 1
      %v4668 = vshll.u32 %v4616, 16
      %v4670 = vrot.slane %v4668, 2
      %v4671 = vor.u32 %v4667, %v4670
      %v4672 = vsel %vm1430, %v4662, %v4671
      %v4674 = vshrl.u32 %v4617, 16
      %v4676 = vrot.slane %v4674, 1
      %v4677 = vshll.u32 %v4617, 16
      %v4679 = vrot.slane %v4677, 2
      %v4680 = vor.u32 %v4676, %v4679
      %v4681 = vsel %vm1430, %v4671, %v4680
      %v4683 = vshrl.u32 %v4618, 16
      %v4685 = vrot.slane %v4683, 1
      %v4686 = vshll.u32 %v4618, 16
      %v4688 = vrot.slane %v4686, 2
      %v4689 = vor.u32 %v4685, %v4688
      %v4690 = vsel %vm1430, %v4680, %v4689
      %v4692 = vshrl.u32 %v4619, 16
      %v4694 = vrot.slane %v4692, 1
      %v4695 = vshll.u32 %v4619, 16
      %v4697 = vrot.slane %v4695, 2
      %v4698 = vor.u32 %v4694, %v4697
      %v4699 = vsel %vm1430, %v4689, %v4698
      %v4701 = vshrl.u32 %v4620, 16
      %v4703 = vrot.slane %v4701, 1
      %v4704 = vshll.u32 %v4620, 16
      %v4706 = vrot.slane %v4704, 2
      %v4707 = vor.u32 %v4703, %v4706
      %v4708 = vsel %vm1430, %v4698, %v4707
      %v4710 = vshrl.u32 %v4621, 16
      %v4712 = vrot.slane %v4710, 1
      %v4713 = vshll.u32 %v4621, 16
      %v4715 = vrot.slane %v4713, 2
      %v4716 = vor.u32 %v4712, %v4715
      %v4717 = vsel %vm1430, %v4707, %v4716
      %v4719 = vshrl.u32 %v4622, 16
      %v4721 = vrot.slane %v4719, 1
      %v4722 = vshll.u32 %v4622, 16
      %v4724 = vrot.slane %v4722, 2
      %v4725 = vor.u32 %v4721, %v4724
      %v4726 = vsel %vm1430, %v4716, %v4725
      %v4728 = vshrl.u32 %v4623, 16
      %v4730 = vrot.slane %v4728, 1
      %v4731 = vshll.u32 %v4623, 16
      %v4733 = vrot.slane %v4731, 2
      %v4734 = vor.u32 %v4730, %v4733
      %v4735 = vsel %vm1430, %v4725, %v4734
      %v4737 = vshrl.u32 %v4624, 16
      %v4739 = vrot.slane %v4737, 1
      %v4740 = vshll.u32 %v4624, 16
      %v4742 = vrot.slane %v4740, 2
      %v4743 = vor.u32 %v4739, %v4742
      %v4744 = vsel %vm1430, %v4734, %v4743
      %v4746 = vshrl.u32 %v4625, 16
      %v4748 = vrot.slane %v4746, 1
      %v4749 = vshll.u32 %v4625, 16
      %v4751 = vrot.slane %v4749, 2
      %v4752 = vor.u32 %v4748, %v4751
      %v4753 = vsel %vm1430, %v4743, %v4752
      %v4755 = vshrl.u32 %v4626, 16
      %v4757 = vrot.slane %v4755, 1
      %v4758 = vshll.u32 %v4626, 16
      %v4760 = vrot.slane %v4758, 2
      %v4761 = vor.u32 %v4757, %v4760
      %v4762 = vsel %vm1430, %v4752, %v4761
      %v4764 = vshrl.u32 %v4627, 16
      %v4766 = vrot.slane %v4764, 1
      %v4767 = vshll.u32 %v4627, 16
      %v4769 = vrot.slane %v4767, 2
      %v4770 = vor.u32 %v4766, %v4769
      %v4771 = vsel %vm1430, %v4761, %v4770
      %v4773 = vshrl.u32 %v4628, 16
      %v4775 = vrot.slane %v4773, 1
      %v4776 = vshll.u32 %v4628, 16
      %v4778 = vrot.slane %v4776, 2
      %v4779 = vor.u32 %v4775, %v4778
      %v4780 = vsel %vm1430, %v4770, %v4779
      %4781 = vrot.lane.b32.xlu0 %v4645, 64
      %v4782 = vpop.permute.xlu0 %4781
      %4783 = vrot.lane.b32.xlu0 %v4654, 64
      %v4784 = vpop.permute.xlu0 %4783
      %4785 = vrot.lane.b32.xlu0 %v4663, 64
      %v4786 = vpop.permute.xlu0 %4785
      %4787 = vrot.lane.b32.xlu0 %v4672, 64
      %v4788 = vpop.permute.xlu0 %4787
      %4789 = vrot.lane.b32.xlu0 %v4681, 64
      %v4790 = vpop.permute.xlu0 %4789
      %4791 = vrot.lane.b32.xlu0 %v4690, 64
      %v4792 = vpop.permute.xlu0 %4791
      %4793 = vrot.lane.b32.xlu0 %v4699, 64
      %v4794 = vpop.permute.xlu0 %4793
      %4795 = vrot.lane.b32.xlu0 %v4708, 64
      %v4796 = vpop.permute.xlu0 %4795
      %4797 = vrot.lane.b32.xlu0 %v4717, 64
      %v4798 = vpop.permute.xlu0 %4797
      %4799 = vrot.lane.b32.xlu0 %v4726, 64
      %v4800 = vpop.permute.xlu0 %4799
      %4801 = vrot.lane.b32.xlu0 %v4735, 64
      %v4802 = vpop.permute.xlu0 %4801
      %4803 = vrot.lane.b32.xlu0 %v4744, 64
      %v4804 = vpop.permute.xlu0 %4803
      %4805 = vrot.lane.b32.xlu0 %v4753, 64
      %v4806 = vpop.permute.xlu0 %4805
      %4807 = vrot.lane.b32.xlu0 %v4762, 64
      %v4808 = vpop.permute.xlu0 %4807
      %4809 = vrot.lane.b32.xlu0 %v4771, 64
      %v4810 = vpop.permute.xlu0 %4809
      %4811 = vrot.lane.b32.xlu0 %v4780, 64
      %v4812 = vpop.permute.xlu0 %4811
      %4829 = vst.msk [vmem:[#allocation2 + $0x10] sm:$0xff] %vm622, %v4782
      %4830 = vst.msk [vmem:[#allocation2 + $0x38] sm:$0xff] %vm622, %v4784
      %4831 = vst.msk [vmem:[#allocation2 + $0x60] sm:$0xff] %vm622, %v4786
      %4832 = vst.msk [vmem:[#allocation2 + $0x88] sm:$0xff] %vm622, %v4788
      %4833 = vst.msk [vmem:[#allocation2 + $0xb0] sm:$0xff] %vm622, %v4790
      %4834 = vst.msk [vmem:[#allocation2 + $0xd8] sm:$0xff] %vm622, %v4792
      %4835 = vst.msk [vmem:[#allocation2 + $0x100] sm:$0xff] %vm622, %v4794
      %4836 = vst.msk [vmem:[#allocation2 + $0x128] sm:$0xff] %vm622, %v4796
      %4837 = vst.msk [vmem:[#allocation2 + $0x150] sm:$0xff] %vm622, %v4798
      %4838 = vst.msk [vmem:[#allocation2 + $0x178] sm:$0xff] %vm622, %v4800
      %4839 = vst.msk [vmem:[#allocation2 + $0x1a0] sm:$0xff] %vm622, %v4802
      %4840 = vst.msk [vmem:[#allocation2 + $0x1c8] sm:$0xff] %vm622, %v4804
      %4841 = vst.msk [vmem:[#allocation2 + $0x1f0] sm:$0xff] %vm622, %v4806
      %4842 = vst.msk [vmem:[#allocation2 + $0x218] sm:$0xff] %vm622, %v4808
      %4843 = vst.msk [vmem:[#allocation2 + $0x240] sm:$0xff] %vm622, %v4810
      %4844 = vst.msk [vmem:[#allocation2 + $0x268] sm:$0xff] %vm622, %v4812
      %v4845 = vld [vmem:[%s3382 + $0x10] sm:$0xe]
      %v4846 = vld [vmem:[%s3382 + $0x14] sm:$0xf]
      %v4847 = vld [vmem:[%s3382 + $0x18] sm:$0xf]
      %v4848 = vld [vmem:[%s3382 + $0x1c] sm:$0xf]
      %v4849 = vld [vmem:[%s3382 + $0x20] sm:$0xf]
      %v4850 = vld [vmem:[%s3382 + $0x24] sm:$0xf]
      %v4851 = vld [vmem:[%s3382 + $0x28] sm:$0xf]
      %v4852 = vld [vmem:[%s3382 + $0x2c] sm:$0xf]
      %v4853 = vld [vmem:[%s3382 + $0x30] sm:$0xf]
      %v4854 = vld [vmem:[%s3382 + $0x34] sm:$0xf]
      %v4855 = vld [vmem:[%s3382 + $0x38] sm:$0xf]
      %v4856 = vld [vmem:[%s3382 + $0x3c] sm:$0xf]
      %v4857 = vld [vmem:[%s3382 + $0x40] sm:$0xf]
      %v4858 = vld [vmem:[%s3382 + $0x44] sm:$0xf]
      %v4859 = vld [vmem:[%s3382 + $0x48] sm:$0xf]
      %v4860 = vld [vmem:[%s3382 + $0x4c] sm:$0xf]
      %v4861 = vld [vmem:[%s3382 + $0x50] sm:$0xf]
      %v4862 = vld [vmem:[%s3382 + $0x54] sm:$0xf]
      %v4863 = vld [vmem:[%s3382 + $0x58] sm:$0xf]
      %v4864 = vld [vmem:[%s3382 + $0x5c] sm:$0xf]
      %v4865 = vld [vmem:[%s3382 + $0x60] sm:$0xf]
      %v4866 = vld [vmem:[%s3382 + $0x64] sm:$0xf]
      %v4867 = vld [vmem:[%s3382 + $0x68] sm:$0xf]
      %v4868 = vld [vmem:[%s3382 + $0x6c] sm:$0xf]
      %v4869 = vld [vmem:[%s3382 + $0x70] sm:$0xf]
      %v4870 = vld [vmem:[%s3382 + $0x74] sm:$0xf]
      %v4871 = vld [vmem:[%s3382 + $0x78] sm:$0xf]
      %v4872 = vld [vmem:[%s3382 + $0x7c] sm:$0xf]
      %v4873 = vld [vmem:[%s3382 + $0x80] sm:$0xf]
      %v4874 = vld [vmem:[%s3382 + $0x84] sm:$0xf]
      %v4875 = vld [vmem:[%s3382 + $0x88] sm:$0xf]
      %v4876 = vld [vmem:[%s3382 + $0x8c] sm:$0xf]
      %v4877 = vld [vmem:[%s3382 + $0x90] sm:$0x1]
      %v4911 = vunpack.c.l.b16 %v4845
      %v4912 = vunpack.c.l.b16 %v4846
      %v4913 = vunpack.c.l.b16 %v4847
      %v4914 = vunpack.c.l.b16 %v4848
      %v4915 = vunpack.c.l.b16 %v4849
      %v4916 = vunpack.c.l.b16 %v4850
      %v4917 = vunpack.c.l.b16 %v4851
      %v4918 = vunpack.c.l.b16 %v4852
      %v4919 = vunpack.c.l.b16 %v4853
      %v4920 = vunpack.c.l.b16 %v4854
      %v4921 = vunpack.c.l.b16 %v4855
      %v4922 = vunpack.c.l.b16 %v4856
      %v4923 = vunpack.c.l.b16 %v4857
      %v4924 = vunpack.c.l.b16 %v4858
      %v4925 = vunpack.c.l.b16 %v4859
      %v4926 = vunpack.c.l.b16 %v4860
      %v4927 = vunpack.c.l.b16 %v4861
      %v4928 = vunpack.c.l.b16 %v4862
      %v4929 = vunpack.c.l.b16 %v4863
      %v4930 = vunpack.c.l.b16 %v4864
      %v4931 = vunpack.c.l.b16 %v4865
      %v4932 = vunpack.c.l.b16 %v4866
      %v4933 = vunpack.c.l.b16 %v4867
      %v4934 = vunpack.c.l.b16 %v4868
      %v4935 = vunpack.c.l.b16 %v4869
      %v4936 = vunpack.c.l.b16 %v4870
      %v4937 = vunpack.c.l.b16 %v4871
      %v4938 = vunpack.c.l.b16 %v4872
      %v4939 = vunpack.c.l.b16 %v4873
      %v4940 = vunpack.c.l.b16 %v4874
      %v4941 = vunpack.c.l.b16 %v4875
      %v4942 = vunpack.c.l.b16 %v4876
      %v4943 = vunpack.c.l.b16 %v4877
      %v4944 = vpack.c.b16 %v4912, %v4911
      %v4945 = vpack.c.b16 %v4914, %v4913
      %v4946 = vpack.c.b16 %v4916, %v4915
      %v4947 = vpack.c.b16 %v4918, %v4917
      %v4948 = vpack.c.b16 %v4920, %v4919
      %v4949 = vpack.c.b16 %v4922, %v4921
      %v4950 = vpack.c.b16 %v4924, %v4923
      %v4951 = vpack.c.b16 %v4926, %v4925
      %v4952 = vpack.c.b16 %v4928, %v4927
      %v4953 = vpack.c.b16 %v4930, %v4929
      %v4954 = vpack.c.b16 %v4932, %v4931
      %v4955 = vpack.c.b16 %v4934, %v4933
      %v4956 = vpack.c.b16 %v4936, %v4935
      %v4957 = vpack.c.b16 %v4938, %v4937
      %v4958 = vpack.c.b16 %v4940, %v4939
      %v4959 = vpack.c.b16 %v4942, %v4941
      %v4960 = vpack.c.b16 %v4943, %v4943
      %v4961 = vrot.slane %v4944, 1
      %v4962 = vrot.slane %v4945, 1
      %v4963 = vsel %vm755, %v4961, %v4962
      %v4964 = vrot.slane %v4946, 1
      %v4965 = vsel %vm755, %v4962, %v4964
      %v4966 = vrot.slane %v4947, 1
      %v4967 = vsel %vm755, %v4964, %v4966
      %v4968 = vrot.slane %v4948, 1
      %v4969 = vsel %vm755, %v4966, %v4968
      %v4970 = vrot.slane %v4949, 1
      %v4971 = vsel %vm755, %v4968, %v4970
      %v4972 = vrot.slane %v4950, 1
      %v4973 = vsel %vm755, %v4970, %v4972
      %v4974 = vrot.slane %v4951, 1
      %v4975 = vsel %vm755, %v4972, %v4974
      %v4976 = vrot.slane %v4952, 1
      %v4977 = vsel %vm755, %v4974, %v4976
      %v4978 = vrot.slane %v4953, 1
      %v4979 = vsel %vm755, %v4976, %v4978
      %v4980 = vrot.slane %v4954, 1
      %v4981 = vsel %vm755, %v4978, %v4980
      %v4982 = vrot.slane %v4955, 1
      %v4983 = vsel %vm755, %v4980, %v4982
      %v4984 = vrot.slane %v4956, 1
      %v4985 = vsel %vm755, %v4982, %v4984
      %v4986 = vrot.slane %v4957, 1
      %v4987 = vsel %vm755, %v4984, %v4986
      %v4988 = vrot.slane %v4958, 1
      %v4989 = vsel %vm755, %v4986, %v4988
      %v4990 = vrot.slane %v4959, 1
      %v4991 = vsel %vm755, %v4988, %v4990
      %v4992 = vrot.slane %v4960, 1
      %v4993 = vsel %vm755, %v4990, %v4992
      %5010 = vst.msk [vmem:[#allocation2 + $0x18] sm:$0xff] %vm308, %v4963
      %5011 = vst.msk [vmem:[#allocation2 + $0x40] sm:$0xff] %vm308, %v4965
      %5012 = vst.msk [vmem:[#allocation2 + $0x68] sm:$0xff] %vm308, %v4967
      %5013 = vst.msk [vmem:[#allocation2 + $0x90] sm:$0xff] %vm308, %v4969
      %5014 = vst.msk [vmem:[#allocation2 + $0xb8] sm:$0xff] %vm308, %v4971
      %5015 = vst.msk [vmem:[#allocation2 + $0xe0] sm:$0xff] %vm308, %v4973
      %5016 = vst.msk [vmem:[#allocation2 + $0x108] sm:$0xff] %vm308, %v4975
      %5017 = vst.msk [vmem:[#allocation2 + $0x130] sm:$0xff] %vm308, %v4977
      %5018 = vst.msk [vmem:[#allocation2 + $0x158] sm:$0xff] %vm308, %v4979
      %5019 = vst.msk [vmem:[#allocation2 + $0x180] sm:$0xff] %vm308, %v4981
      %5020 = vst.msk [vmem:[#allocation2 + $0x1a8] sm:$0xff] %vm308, %v4983
      %5021 = vst.msk [vmem:[#allocation2 + $0x1d0] sm:$0xff] %vm308, %v4985
      %5022 = vst.msk [vmem:[#allocation2 + $0x1f8] sm:$0xff] %vm308, %v4987
      %5023 = vst.msk [vmem:[#allocation2 + $0x220] sm:$0xff] %vm308, %v4989
      %5024 = vst.msk [vmem:[#allocation2 + $0x248] sm:$0xff] %vm308, %v4991
      %5025 = vst.msk [vmem:[#allocation2 + $0x270] sm:$0xff] %vm308, %v4993
      %v5026 = vld [vmem:[%s3382 + $0x10] sm:$0xe]
      %v5027 = vld [vmem:[%s3382 + $0x14] sm:$0xf]
      %v5028 = vld [vmem:[%s3382 + $0x18] sm:$0xf]
      %v5029 = vld [vmem:[%s3382 + $0x1c] sm:$0xf]
      %v5030 = vld [vmem:[%s3382 + $0x20] sm:$0xf]
      %v5031 = vld [vmem:[%s3382 + $0x24] sm:$0xf]
      %v5032 = vld [vmem:[%s3382 + $0x28] sm:$0xf]
      %v5033 = vld [vmem:[%s3382 + $0x2c] sm:$0xf]
      %v5034 = vld [vmem:[%s3382 + $0x30] sm:$0xf]
      %v5035 = vld [vmem:[%s3382 + $0x34] sm:$0xf]
      %v5036 = vld [vmem:[%s3382 + $0x38] sm:$0xf]
      %v5037 = vld [vmem:[%s3382 + $0x3c] sm:$0xf]
      %v5038 = vld [vmem:[%s3382 + $0x40] sm:$0xf]
      %v5039 = vld [vmem:[%s3382 + $0x44] sm:$0xf]
      %v5040 = vld [vmem:[%s3382 + $0x48] sm:$0xf]
      %v5041 = vld [vmem:[%s3382 + $0x4c] sm:$0xf]
      %v5042 = vld [vmem:[%s3382 + $0x50] sm:$0xf]
      %v5043 = vld [vmem:[%s3382 + $0x54] sm:$0xf]
      %v5044 = vld [vmem:[%s3382 + $0x58] sm:$0xf]
      %v5045 = vld [vmem:[%s3382 + $0x5c] sm:$0xf]
      %v5046 = vld [vmem:[%s3382 + $0x60] sm:$0xf]
      %v5047 = vld [vmem:[%s3382 + $0x64] sm:$0xf]
      %v5048 = vld [vmem:[%s3382 + $0x68] sm:$0xf]
      %v5049 = vld [vmem:[%s3382 + $0x6c] sm:$0xf]
      %v5050 = vld [vmem:[%s3382 + $0x70] sm:$0xf]
      %v5051 = vld [vmem:[%s3382 + $0x74] sm:$0xf]
      %v5052 = vld [vmem:[%s3382 + $0x78] sm:$0xf]
      %v5053 = vld [vmem:[%s3382 + $0x7c] sm:$0xf]
      %v5054 = vld [vmem:[%s3382 + $0x80] sm:$0xf]
      %v5055 = vld [vmem:[%s3382 + $0x84] sm:$0xf]
      %v5056 = vld [vmem:[%s3382 + $0x88] sm:$0xf]
      %v5057 = vld [vmem:[%s3382 + $0x8c] sm:$0xf]
      %v5058 = vld [vmem:[%s3382 + $0x90] sm:$0x3]
      %v5092 = vunpack.c.l.b16 %v5026
      %v5093 = vunpack.c.l.b16 %v5027
      %v5094 = vunpack.c.l.b16 %v5028
      %v5095 = vunpack.c.l.b16 %v5029
      %v5096 = vunpack.c.l.b16 %v5030
      %v5097 = vunpack.c.l.b16 %v5031
      %v5098 = vunpack.c.l.b16 %v5032
      %v5099 = vunpack.c.l.b16 %v5033
      %v5100 = vunpack.c.l.b16 %v5034
      %v5101 = vunpack.c.l.b16 %v5035
      %v5102 = vunpack.c.l.b16 %v5036
      %v5103 = vunpack.c.l.b16 %v5037
      %v5104 = vunpack.c.l.b16 %v5038
      %v5105 = vunpack.c.l.b16 %v5039
      %v5106 = vunpack.c.l.b16 %v5040
      %v5107 = vunpack.c.l.b16 %v5041
      %v5108 = vunpack.c.l.b16 %v5042
      %v5109 = vunpack.c.l.b16 %v5043
      %v5110 = vunpack.c.l.b16 %v5044
      %v5111 = vunpack.c.l.b16 %v5045
      %v5112 = vunpack.c.l.b16 %v5046
      %v5113 = vunpack.c.l.b16 %v5047
      %v5114 = vunpack.c.l.b16 %v5048
      %v5115 = vunpack.c.l.b16 %v5049
      %v5116 = vunpack.c.l.b16 %v5050
      %v5117 = vunpack.c.l.b16 %v5051
      %v5118 = vunpack.c.l.b16 %v5052
      %v5119 = vunpack.c.l.b16 %v5053
      %v5120 = vunpack.c.l.b16 %v5054
      %v5121 = vunpack.c.l.b16 %v5055
      %v5122 = vunpack.c.l.b16 %v5056
      %v5123 = vunpack.c.l.b16 %v5057
      %v5124 = vunpack.c.l.b16 %v5058
      %v5125 = vpack.c.b16 %v5093, %v5092
      %v5126 = vpack.c.b16 %v5095, %v5094
      %v5127 = vpack.c.b16 %v5097, %v5096
      %v5128 = vpack.c.b16 %v5099, %v5098
      %v5129 = vpack.c.b16 %v5101, %v5100
      %v5130 = vpack.c.b16 %v5103, %v5102
      %v5131 = vpack.c.b16 %v5105, %v5104
      %v5132 = vpack.c.b16 %v5107, %v5106
      %v5133 = vpack.c.b16 %v5109, %v5108
      %v5134 = vpack.c.b16 %v5111, %v5110
      %v5135 = vpack.c.b16 %v5113, %v5112
      %v5136 = vpack.c.b16 %v5115, %v5114
      %v5137 = vpack.c.b16 %v5117, %v5116
      %v5138 = vpack.c.b16 %v5119, %v5118
      %v5139 = vpack.c.b16 %v5121, %v5120
      %v5140 = vpack.c.b16 %v5123, %v5122
      %v5141 = vpack.c.b16 %v5124, %v5124
      %v5143 = vshrl.u32 %v5125, 16
      %v5145 = vrot.slane %v5143, 1
      %v5146 = vshll.u32 %v5125, 16
      %v5148 = vrot.slane %v5146, 2
      %v5149 = vor.u32 %v5145, %v5148
      %v5151 = vshrl.u32 %v5126, 16
      %v5153 = vrot.slane %v5151, 1
      %v5154 = vshll.u32 %v5126, 16
      %v5156 = vrot.slane %v5154, 2
      %v5157 = vor.u32 %v5153, %v5156
      %v5158 = vsel %vm1430, %v5149, %v5157
      %v5160 = vshrl.u32 %v5127, 16
      %v5162 = vrot.slane %v5160, 1
      %v5163 = vshll.u32 %v5127, 16
      %v5165 = vrot.slane %v5163, 2
      %v5166 = vor.u32 %v5162, %v5165
      %v5167 = vsel %vm1430, %v5157, %v5166
      %v5169 = vshrl.u32 %v5128, 16
      %v5171 = vrot.slane %v5169, 1
      %v5172 = vshll.u32 %v5128, 16
      %v5174 = vrot.slane %v5172, 2
      %v5175 = vor.u32 %v5171, %v5174
      %v5176 = vsel %vm1430, %v5166, %v5175
      %v5178 = vshrl.u32 %v5129, 16
      %v5180 = vrot.slane %v5178, 1
      %v5181 = vshll.u32 %v5129, 16
      %v5183 = vrot.slane %v5181, 2
      %v5184 = vor.u32 %v5180, %v5183
      %v5185 = vsel %vm1430, %v5175, %v5184
      %v5187 = vshrl.u32 %v5130, 16
      %v5189 = vrot.slane %v5187, 1
      %v5190 = vshll.u32 %v5130, 16
      %v5192 = vrot.slane %v5190, 2
      %v5193 = vor.u32 %v5189, %v5192
      %v5194 = vsel %vm1430, %v5184, %v5193
      %v5196 = vshrl.u32 %v5131, 16
      %v5198 = vrot.slane %v5196, 1
      %v5199 = vshll.u32 %v5131, 16
      %v5201 = vrot.slane %v5199, 2
      %v5202 = vor.u32 %v5198, %v5201
      %v5203 = vsel %vm1430, %v5193, %v5202
      %v5205 = vshrl.u32 %v5132, 16
      %v5207 = vrot.slane %v5205, 1
      %v5208 = vshll.u32 %v5132, 16
      %v5210 = vrot.slane %v5208, 2
      %v5211 = vor.u32 %v5207, %v5210
      %v5212 = vsel %vm1430, %v5202, %v5211
      %v5214 = vshrl.u32 %v5133, 16
      %v5216 = vrot.slane %v5214, 1
      %v5217 = vshll.u32 %v5133, 16
      %v5219 = vrot.slane %v5217, 2
      %v5220 = vor.u32 %v5216, %v5219
      %v5221 = vsel %vm1430, %v5211, %v5220
      %v5223 = vshrl.u32 %v5134, 16
      %v5225 = vrot.slane %v5223, 1
      %v5226 = vshll.u32 %v5134, 16
      %v5228 = vrot.slane %v5226, 2
      %v5229 = vor.u32 %v5225, %v5228
      %v5230 = vsel %vm1430, %v5220, %v5229
      %v5232 = vshrl.u32 %v5135, 16
      %v5234 = vrot.slane %v5232, 1
      %v5235 = vshll.u32 %v5135, 16
      %v5237 = vrot.slane %v5235, 2
      %v5238 = vor.u32 %v5234, %v5237
      %v5239 = vsel %vm1430, %v5229, %v5238
      %v5241 = vshrl.u32 %v5136, 16
      %v5243 = vrot.slane %v5241, 1
      %v5244 = vshll.u32 %v5136, 16
      %v5246 = vrot.slane %v5244, 2
      %v5247 = vor.u32 %v5243, %v5246
      %v5248 = vsel %vm1430, %v5238, %v5247
      %v5250 = vshrl.u32 %v5137, 16
      %v5252 = vrot.slane %v5250, 1
      %v5253 = vshll.u32 %v5137, 16
      %v5255 = vrot.slane %v5253, 2
      %v5256 = vor.u32 %v5252, %v5255
      %v5257 = vsel %vm1430, %v5247, %v5256
      %v5259 = vshrl.u32 %v5138, 16
      %v5261 = vrot.slane %v5259, 1
      %v5262 = vshll.u32 %v5138, 16
      %v5264 = vrot.slane %v5262, 2
      %v5265 = vor.u32 %v5261, %v5264
      %v5266 = vsel %vm1430, %v5256, %v5265
      %v5268 = vshrl.u32 %v5139, 16
      %v5270 = vrot.slane %v5268, 1
      %v5271 = vshll.u32 %v5139, 16
      %v5273 = vrot.slane %v5271, 2
      %v5274 = vor.u32 %v5270, %v5273
      %v5275 = vsel %vm1430, %v5265, %v5274
      %v5277 = vshrl.u32 %v5140, 16
      %v5279 = vrot.slane %v5277, 1
      %v5280 = vshll.u32 %v5140, 16
      %v5282 = vrot.slane %v5280, 2
      %v5283 = vor.u32 %v5279, %v5282
      %v5284 = vsel %vm1430, %v5274, %v5283
      %v5286 = vshrl.u32 %v5141, 16
      %v5288 = vrot.slane %v5286, 1
      %v5289 = vshll.u32 %v5141, 16
      %v5291 = vrot.slane %v5289, 2
      %v5292 = vor.u32 %v5288, %v5291
      %v5293 = vsel %vm1430, %v5283, %v5292
      %5294 = vrot.lane.b32.xlu0 %v5158, 64
      %v5295 = vpop.permute.xlu0 %5294
      %5296 = vrot.lane.b32.xlu0 %v5167, 64
      %v5297 = vpop.permute.xlu0 %5296
      %5298 = vrot.lane.b32.xlu0 %v5176, 64
      %v5299 = vpop.permute.xlu0 %5298
      %5300 = vrot.lane.b32.xlu0 %v5185, 64
      %v5301 = vpop.permute.xlu0 %5300
      %5302 = vrot.lane.b32.xlu0 %v5194, 64
      %v5303 = vpop.permute.xlu0 %5302
      %5304 = vrot.lane.b32.xlu0 %v5203, 64
      %v5305 = vpop.permute.xlu0 %5304
      %5306 = vrot.lane.b32.xlu0 %v5212, 64
      %v5307 = vpop.permute.xlu0 %5306
      %5308 = vrot.lane.b32.xlu0 %v5221, 64
      %v5309 = vpop.permute.xlu0 %5308
      %5310 = vrot.lane.b32.xlu0 %v5230, 64
      %v5311 = vpop.permute.xlu0 %5310
      %5312 = vrot.lane.b32.xlu0 %v5239, 64
      %v5313 = vpop.permute.xlu0 %5312
      %5314 = vrot.lane.b32.xlu0 %v5248, 64
      %v5315 = vpop.permute.xlu0 %5314
      %5316 = vrot.lane.b32.xlu0 %v5257, 64
      %v5317 = vpop.permute.xlu0 %5316
      %5318 = vrot.lane.b32.xlu0 %v5266, 64
      %v5319 = vpop.permute.xlu0 %5318
      %5320 = vrot.lane.b32.xlu0 %v5275, 64
      %v5321 = vpop.permute.xlu0 %5320
      %5322 = vrot.lane.b32.xlu0 %v5284, 64
      %v5323 = vpop.permute.xlu0 %5322
      %5324 = vrot.lane.b32.xlu0 %v5293, 64
      %v5325 = vpop.permute.xlu0 %5324
      %5342 = vst.msk [vmem:[#allocation2 + $0x18] sm:$0xff] %vm622, %v5295
      %5343 = vst.msk [vmem:[#allocation2 + $0x40] sm:$0xff] %vm622, %v5297
      %5344 = vst.msk [vmem:[#allocation2 + $0x68] sm:$0xff] %vm622, %v5299
      %5345 = vst.msk [vmem:[#allocation2 + $0x90] sm:$0xff] %vm622, %v5301
      %5346 = vst.msk [vmem:[#allocation2 + $0xb8] sm:$0xff] %vm622, %v5303
      %5347 = vst.msk [vmem:[#allocation2 + $0xe0] sm:$0xff] %vm622, %v5305
      %5348 = vst.msk [vmem:[#allocation2 + $0x108] sm:$0xff] %vm622, %v5307
      %5349 = vst.msk [vmem:[#allocation2 + $0x130] sm:$0xff] %vm622, %v5309
      %5350 = vst.msk [vmem:[#allocation2 + $0x158] sm:$0xff] %vm622, %v5311
      %5351 = vst.msk [vmem:[#allocation2 + $0x180] sm:$0xff] %vm622, %v5313
      %5352 = vst.msk [vmem:[#allocation2 + $0x1a8] sm:$0xff] %vm622, %v5315
      %5353 = vst.msk [vmem:[#allocation2 + $0x1d0] sm:$0xff] %vm622, %v5317
      %5354 = vst.msk [vmem:[#allocation2 + $0x1f8] sm:$0xff] %vm622, %v5319
      %5355 = vst.msk [vmem:[#allocation2 + $0x220] sm:$0xff] %vm622, %v5321
      %5356 = vst.msk [vmem:[#allocation2 + $0x248] sm:$0xff] %vm622, %v5323
      %5357 = vst.msk [vmem:[#allocation2 + $0x270] sm:$0xff] %vm622, %v5325
      %v5358 = vld [vmem:[%s3382 + $0x10] sm:$0xc]
      %v5359 = vld [vmem:[%s3382 + $0x14] sm:$0xf]
      %v5360 = vld [vmem:[%s3382 + $0x18] sm:$0xf]
      %v5361 = vld [vmem:[%s3382 + $0x1c] sm:$0xf]
      %v5362 = vld [vmem:[%s3382 + $0x20] sm:$0xf]
      %v5363 = vld [vmem:[%s3382 + $0x24] sm:$0xf]
      %v5364 = vld [vmem:[%s3382 + $0x28] sm:$0xf]
      %v5365 = vld [vmem:[%s3382 + $0x2c] sm:$0xf]
      %v5366 = vld [vmem:[%s3382 + $0x30] sm:$0xf]
      %v5367 = vld [vmem:[%s3382 + $0x34] sm:$0xf]
      %v5368 = vld [vmem:[%s3382 + $0x38] sm:$0xf]
      %v5369 = vld [vmem:[%s3382 + $0x3c] sm:$0xf]
      %v5370 = vld [vmem:[%s3382 + $0x40] sm:$0xf]
      %v5371 = vld [vmem:[%s3382 + $0x44] sm:$0xf]
      %v5372 = vld [vmem:[%s3382 + $0x48] sm:$0xf]
      %v5373 = vld [vmem:[%s3382 + $0x4c] sm:$0xf]
      %v5374 = vld [vmem:[%s3382 + $0x50] sm:$0xf]
      %v5375 = vld [vmem:[%s3382 + $0x54] sm:$0xf]
      %v5376 = vld [vmem:[%s3382 + $0x58] sm:$0xf]
      %v5377 = vld [vmem:[%s3382 + $0x5c] sm:$0xf]
      %v5378 = vld [vmem:[%s3382 + $0x60] sm:$0xf]
      %v5379 = vld [vmem:[%s3382 + $0x64] sm:$0xf]
      %v5380 = vld [vmem:[%s3382 + $0x68] sm:$0xf]
      %v5381 = vld [vmem:[%s3382 + $0x6c] sm:$0xf]
      %v5382 = vld [vmem:[%s3382 + $0x70] sm:$0xf]
      %v5383 = vld [vmem:[%s3382 + $0x74] sm:$0xf]
      %v5384 = vld [vmem:[%s3382 + $0x78] sm:$0xf]
      %v5385 = vld [vmem:[%s3382 + $0x7c] sm:$0xf]
      %v5386 = vld [vmem:[%s3382 + $0x80] sm:$0xf]
      %v5387 = vld [vmem:[%s3382 + $0x84] sm:$0xf]
      %v5388 = vld [vmem:[%s3382 + $0x88] sm:$0xf]
      %v5389 = vld [vmem:[%s3382 + $0x8c] sm:$0xf]
      %v5390 = vld [vmem:[%s3382 + $0x90] sm:$0x3]
      %v5424 = vunpack.c.l.b16 %v5358
      %v5425 = vunpack.c.l.b16 %v5359
      %v5426 = vunpack.c.l.b16 %v5360
      %v5427 = vunpack.c.l.b16 %v5361
      %v5428 = vunpack.c.l.b16 %v5362
      %v5429 = vunpack.c.l.b16 %v5363
      %v5430 = vunpack.c.l.b16 %v5364
      %v5431 = vunpack.c.l.b16 %v5365
      %v5432 = vunpack.c.l.b16 %v5366
      %v5433 = vunpack.c.l.b16 %v5367
      %v5434 = vunpack.c.l.b16 %v5368
      %v5435 = vunpack.c.l.b16 %v5369
      %v5436 = vunpack.c.l.b16 %v5370
      %v5437 = vunpack.c.l.b16 %v5371
      %v5438 = vunpack.c.l.b16 %v5372
      %v5439 = vunpack.c.l.b16 %v5373
      %v5440 = vunpack.c.l.b16 %v5374
      %v5441 = vunpack.c.l.b16 %v5375
      %v5442 = vunpack.c.l.b16 %v5376
      %v5443 = vunpack.c.l.b16 %v5377
      %v5444 = vunpack.c.l.b16 %v5378
      %v5445 = vunpack.c.l.b16 %v5379
      %v5446 = vunpack.c.l.b16 %v5380
      %v5447 = vunpack.c.l.b16 %v5381
      %v5448 = vunpack.c.l.b16 %v5382
      %v5449 = vunpack.c.l.b16 %v5383
      %v5450 = vunpack.c.l.b16 %v5384
      %v5451 = vunpack.c.l.b16 %v5385
      %v5452 = vunpack.c.l.b16 %v5386
      %v5453 = vunpack.c.l.b16 %v5387
      %v5454 = vunpack.c.l.b16 %v5388
      %v5455 = vunpack.c.l.b16 %v5389
      %v5456 = vunpack.c.l.b16 %v5390
      %v5457 = vpack.c.b16 %v5425, %v5424
      %v5458 = vpack.c.b16 %v5427, %v5426
      %v5459 = vpack.c.b16 %v5429, %v5428
      %v5460 = vpack.c.b16 %v5431, %v5430
      %v5461 = vpack.c.b16 %v5433, %v5432
      %v5462 = vpack.c.b16 %v5435, %v5434
      %v5463 = vpack.c.b16 %v5437, %v5436
      %v5464 = vpack.c.b16 %v5439, %v5438
      %v5465 = vpack.c.b16 %v5441, %v5440
      %v5466 = vpack.c.b16 %v5443, %v5442
      %v5467 = vpack.c.b16 %v5445, %v5444
      %v5468 = vpack.c.b16 %v5447, %v5446
      %v5469 = vpack.c.b16 %v5449, %v5448
      %v5470 = vpack.c.b16 %v5451, %v5450
      %v5471 = vpack.c.b16 %v5453, %v5452
      %v5472 = vpack.c.b16 %v5455, %v5454
      %v5473 = vpack.c.b16 %v5456, %v5456
      %v5474 = vrot.slane %v5457, 2
      %v5475 = vrot.slane %v5458, 2
      %v5476 = vsel %vm2276, %v5474, %v5475
      %v5477 = vrot.slane %v5459, 2
      %v5478 = vsel %vm2276, %v5475, %v5477
      %v5479 = vrot.slane %v5460, 2
      %v5480 = vsel %vm2276, %v5477, %v5479
      %v5481 = vrot.slane %v5461, 2
      %v5482 = vsel %vm2276, %v5479, %v5481
      %v5483 = vrot.slane %v5462, 2
      %v5484 = vsel %vm2276, %v5481, %v5483
      %v5485 = vrot.slane %v5463, 2
      %v5486 = vsel %vm2276, %v5483, %v5485
      %v5487 = vrot.slane %v5464, 2
      %v5488 = vsel %vm2276, %v5485, %v5487
      %v5489 = vrot.slane %v5465, 2
      %v5490 = vsel %vm2276, %v5487, %v5489
      %v5491 = vrot.slane %v5466, 2
      %v5492 = vsel %vm2276, %v5489, %v5491
      %v5493 = vrot.slane %v5467, 2
      %v5494 = vsel %vm2276, %v5491, %v5493
      %v5495 = vrot.slane %v5468, 2
      %v5496 = vsel %vm2276, %v5493, %v5495
      %v5497 = vrot.slane %v5469, 2
      %v5498 = vsel %vm2276, %v5495, %v5497
      %v5499 = vrot.slane %v5470, 2
      %v5500 = vsel %vm2276, %v5497, %v5499
      %v5501 = vrot.slane %v5471, 2
      %v5502 = vsel %vm2276, %v5499, %v5501
      %v5503 = vrot.slane %v5472, 2
      %v5504 = vsel %vm2276, %v5501, %v5503
      %v5505 = vrot.slane %v5473, 2
      %v5506 = vsel %vm2276, %v5503, %v5505
      %5523 = vst.msk [vmem:[#allocation2 + $0x20] sm:$0xff] %vm308, %v5476
      %5524 = vst.msk [vmem:[#allocation2 + $0x48] sm:$0xff] %vm308, %v5478
      %5525 = vst.msk [vmem:[#allocation2 + $0x70] sm:$0xff] %vm308, %v5480
      %5526 = vst.msk [vmem:[#allocation2 + $0x98] sm:$0xff] %vm308, %v5482
      %5527 = vst.msk [vmem:[#allocation2 + $0xc0] sm:$0xff] %vm308, %v5484
      %5528 = vst.msk [vmem:[#allocation2 + $0xe8] sm:$0xff] %vm308, %v5486
      %5529 = vst.msk [vmem:[#allocation2 + $0x110] sm:$0xff] %vm308, %v5488
      %5530 = vst.msk [vmem:[#allocation2 + $0x138] sm:$0xff] %vm308, %v5490
      %5531 = vst.msk [vmem:[#allocation2 + $0x160] sm:$0xff] %vm308, %v5492
      %5532 = vst.msk [vmem:[#allocation2 + $0x188] sm:$0xff] %vm308, %v5494
      %5533 = vst.msk [vmem:[#allocation2 + $0x1b0] sm:$0xff] %vm308, %v5496
      %5534 = vst.msk [vmem:[#allocation2 + $0x1d8] sm:$0xff] %vm308, %v5498
      %5535 = vst.msk [vmem:[#allocation2 + $0x200] sm:$0xff] %vm308, %v5500
      %5536 = vst.msk [vmem:[#allocation2 + $0x228] sm:$0xff] %vm308, %v5502
      %5537 = vst.msk [vmem:[#allocation2 + $0x250] sm:$0xff] %vm308, %v5504
      %5538 = vst.msk [vmem:[#allocation2 + $0x278] sm:$0xff] %vm308, %v5506
      %v5539 = vld [vmem:[#allocation2] sm:$0xff]
      %v5540 = vld [vmem:[#allocation2 + $0x8] sm:$0xff]
      %v5541 = vld [vmem:[#allocation2 + $0x10] sm:$0xff]
      %v5542 = vld [vmem:[#allocation2 + $0x18] sm:$0xff]
      %v5543 = vld [vmem:[#allocation2 + $0x20] sm:$0xff]
      %v5544 = vld [vmem:[#allocation2 + $0x28] sm:$0xff]
      %v5545 = vld [vmem:[#allocation2 + $0x30] sm:$0xff]
      %v5546 = vld [vmem:[#allocation2 + $0x38] sm:$0xff]
      %v5547 = vld [vmem:[#allocation2 + $0x40] sm:$0xff]
      %v5548 = vld [vmem:[#allocation2 + $0x48] sm:$0xff]
      %v5549 = vld [vmem:[#allocation2 + $0x50] sm:$0xff]
      %v5550 = vld [vmem:[#allocation2 + $0x58] sm:$0xff]
      %v5551 = vld [vmem:[#allocation2 + $0x60] sm:$0xff]
      %v5552 = vld [vmem:[#allocation2 + $0x68] sm:$0xff]
      %v5553 = vld [vmem:[#allocation2 + $0x70] sm:$0xff]
      %v5554 = vld [vmem:[#allocation2 + $0x78] sm:$0xff]
      %v5555 = vld [vmem:[#allocation2 + $0x80] sm:$0xff]
      %v5556 = vld [vmem:[#allocation2 + $0x88] sm:$0xff]
      %v5557 = vld [vmem:[#allocation2 + $0x90] sm:$0xff]
      %v5558 = vld [vmem:[#allocation2 + $0x98] sm:$0xff]
      %v5559 = vld [vmem:[#allocation2 + $0xa0] sm:$0xff]
      %v5560 = vld [vmem:[#allocation2 + $0xa8] sm:$0xff]
      %v5561 = vld [vmem:[#allocation2 + $0xb0] sm:$0xff]
      %v5562 = vld [vmem:[#allocation2 + $0xb8] sm:$0xff]
      %v5563 = vld [vmem:[#allocation2 + $0xc0] sm:$0xff]
      %v5564 = vld [vmem:[#allocation2 + $0xc8] sm:$0xff]
      %v5565 = vld [vmem:[#allocation2 + $0xd0] sm:$0xff]
      %v5566 = vld [vmem:[#allocation2 + $0xd8] sm:$0xff]
      %v5567 = vld [vmem:[#allocation2 + $0xe0] sm:$0xff]
      %v5568 = vld [vmem:[#allocation2 + $0xe8] sm:$0xff]
      %v5569 = vld [vmem:[#allocation2 + $0xf0] sm:$0xff]
      %v5570 = vld [vmem:[#allocation2 + $0xf8] sm:$0xff]
      %v5571 = vld [vmem:[#allocation2 + $0x100] sm:$0xff]
      %v5572 = vld [vmem:[#allocation2 + $0x108] sm:$0xff]
      %v5573 = vld [vmem:[#allocation2 + $0x110] sm:$0xff]
      %v5574 = vld [vmem:[#allocation2 + $0x118] sm:$0xff]
      %v5575 = vld [vmem:[#allocation2 + $0x120] sm:$0xff]
      %v5576 = vld [vmem:[#allocation2 + $0x128] sm:$0xff]
      %v5577 = vld [vmem:[#allocation2 + $0x130] sm:$0xff]
      %v5578 = vld [vmem:[#allocation2 + $0x138] sm:$0xff]
      %v5579 = vld [vmem:[#allocation2 + $0x140] sm:$0xff]
      %v5580 = vld [vmem:[#allocation2 + $0x148] sm:$0xff]
      %v5581 = vld [vmem:[#allocation2 + $0x150] sm:$0xff]
      %v5582 = vld [vmem:[#allocation2 + $0x158] sm:$0xff]
      %v5583 = vld [vmem:[#allocation2 + $0x160] sm:$0xff]
      %v5584 = vld [vmem:[#allocation2 + $0x168] sm:$0xff]
      %v5585 = vld [vmem:[#allocation2 + $0x170] sm:$0xff]
      %v5586 = vld [vmem:[#allocation2 + $0x178] sm:$0xff]
      %v5587 = vld [vmem:[#allocation2 + $0x180] sm:$0xff]
      %v5588 = vld [vmem:[#allocation2 + $0x188] sm:$0xff]
      %v5589 = vld [vmem:[#allocation2 + $0x190] sm:$0xff]
      %v5590 = vld [vmem:[#allocation2 + $0x198] sm:$0xff]
      %v5591 = vld [vmem:[#allocation2 + $0x1a0] sm:$0xff]
      %v5592 = vld [vmem:[#allocation2 + $0x1a8] sm:$0xff]
      %v5593 = vld [vmem:[#allocation2 + $0x1b0] sm:$0xff]
      %v5594 = vld [vmem:[#allocation2 + $0x1b8] sm:$0xff]
      %v5595 = vld [vmem:[#allocation2 + $0x1c0] sm:$0xff]
      %v5596 = vld [vmem:[#allocation2 + $0x1c8] sm:$0xff]
      %v5597 = vld [vmem:[#allocation2 + $0x1d0] sm:$0xff]
      %v5598 = vld [vmem:[#allocation2 + $0x1d8] sm:$0xff]
      %v5599 = vld [vmem:[#allocation2 + $0x1e0] sm:$0xff]
      %v5600 = vld [vmem:[#allocation2 + $0x1e8] sm:$0xff]
      %v5601 = vld [vmem:[#allocation2 + $0x1f0] sm:$0xff]
      %v5602 = vld [vmem:[#allocation2 + $0x1f8] sm:$0xff]
      %v5603 = vld [vmem:[#allocation2 + $0x200] sm:$0xff]
      %v5604 = vld [vmem:[#allocation2 + $0x208] sm:$0xff]
      %v5605 = vld [vmem:[#allocation2 + $0x210] sm:$0xff]
      %v5606 = vld [vmem:[#allocation2 + $0x218] sm:$0xff]
      %v5607 = vld [vmem:[#allocation2 + $0x220] sm:$0xff]
      %v5608 = vld [vmem:[#allocation2 + $0x228] sm:$0xff]
      %v5609 = vld [vmem:[#allocation2 + $0x230] sm:$0xff]
      %v5610 = vld [vmem:[#allocation2 + $0x238] sm:$0xff]
      %v5611 = vld [vmem:[#allocation2 + $0x240] sm:$0xff]
      %v5612 = vld [vmem:[#allocation2 + $0x248] sm:$0xff]
      %v5613 = vld [vmem:[#allocation2 + $0x250] sm:$0xff]
      %v5614 = vld [vmem:[#allocation2 + $0x258] sm:$0xff]
      %v5615 = vld [vmem:[#allocation2 + $0x260] sm:$0xff]
      %v5616 = vld [vmem:[#allocation2 + $0x268] sm:$0xff]
      %v5617 = vld [vmem:[#allocation2 + $0x270] sm:$0xff]
      %v5618 = vld [vmem:[#allocation2 + $0x278] sm:$0xff]
      %v5619 = vld [vmem:[%s1] sm:$0xf]
      %v5620 = vld [vmem:[%s1 + $0x4] sm:$0xf]
      %v5621 = vld [vmem:[%s1 + $0x8] sm:$0xf]
      %v5622 = vld [vmem:[%s1 + $0xc] sm:$0xf]
      %v5623 = vld [vmem:[%s1 + $0x10] sm:$0xf]
      %v5624 = vld [vmem:[%s1 + $0x14] sm:$0xf]
      %v5625 = vld [vmem:[%s1 + $0x18] sm:$0xf]
      %v5626 = vld [vmem:[%s1 + $0x1c] sm:$0xf]
      %v5627 = vld [vmem:[%s1 + $0x20] sm:$0xf]
      %v5628 = vld [vmem:[%s1 + $0x24] sm:$0xf]
      %v5629 = vld [vmem:[%s1 + $0x28] sm:$0xf]
      %v5630 = vld [vmem:[%s1 + $0x2c] sm:$0xf]
      %v5631 = vld [vmem:[%s1 + $0x30] sm:$0xf]
      %v5632 = vld [vmem:[%s1 + $0x34] sm:$0xf]
      %v5633 = vld [vmem:[%s1 + $0x38] sm:$0xf]
      %v5634 = vld [vmem:[%s1 + $0x3c] sm:$0xf]
      %v5635 = vld [vmem:[%s1 + $0x40] sm:$0xf]
      %v5636 = vld [vmem:[%s1 + $0x44] sm:$0xf]
      %v5637 = vld [vmem:[%s1 + $0x48] sm:$0xf]
      %v5638 = vld [vmem:[%s1 + $0x4c] sm:$0xf]
      %v5639 = vld [vmem:[%s1 + $0x50] sm:$0xf]
      %v5640 = vld [vmem:[%s1 + $0x54] sm:$0xf]
      %v5641 = vld [vmem:[%s1 + $0x58] sm:$0xf]
      %v5642 = vld [vmem:[%s1 + $0x5c] sm:$0xf]
      %v5643 = vld [vmem:[%s1 + $0x60] sm:$0xf]
      %v5644 = vld [vmem:[%s1 + $0x64] sm:$0xf]
      %v5645 = vld [vmem:[%s1 + $0x68] sm:$0xf]
      %v5646 = vld [vmem:[%s1 + $0x6c] sm:$0xf]
      %v5647 = vld [vmem:[%s1 + $0x70] sm:$0xf]
      %v5648 = vld [vmem:[%s1 + $0x74] sm:$0xf]
      %v5649 = vld [vmem:[%s1 + $0x78] sm:$0xf]
      %v5650 = vld [vmem:[%s1 + $0x7c] sm:$0xf]
      %v5651 = vld [vmem:[%s1 + $0x80] sm:$0xf]
      %v5652 = vld [vmem:[%s1 + $0x84] sm:$0xf]
      %v5653 = vld [vmem:[%s1 + $0x88] sm:$0xf]
      %v5654 = vld [vmem:[%s1 + $0x8c] sm:$0xf]
      %v5655 = vld [vmem:[%s1 + $0x90] sm:$0xf]
      %v5656 = vld [vmem:[%s1 + $0x94] sm:$0xf]
      %v5657 = vld [vmem:[%s1 + $0x98] sm:$0xf]
      %v5658 = vld [vmem:[%s1 + $0x9c] sm:$0xf]
      %v5659 = vld [vmem:[%s1 + $0xa0] sm:$0xf]
      %v5660 = vld [vmem:[%s1 + $0xa4] sm:$0xf]
      %v5661 = vld [vmem:[%s1 + $0xa8] sm:$0xf]
      %v5662 = vld [vmem:[%s1 + $0xac] sm:$0xf]
      %v5663 = vld [vmem:[%s1 + $0xb0] sm:$0xf]
      %v5664 = vld [vmem:[%s1 + $0xb4] sm:$0xf]
      %v5665 = vld [vmem:[%s1 + $0xb8] sm:$0xf]
      %v5666 = vld [vmem:[%s1 + $0xbc] sm:$0xf]
      %v5667 = vld [vmem:[%s1 + $0xc0] sm:$0xf]
      %v5668 = vld [vmem:[%s1 + $0xc4] sm:$0xf]
      %v5669 = vld [vmem:[%s1 + $0xc8] sm:$0xf]
      %v5670 = vld [vmem:[%s1 + $0xcc] sm:$0xf]
      %v5671 = vld [vmem:[%s1 + $0xd0] sm:$0xf]
      %v5672 = vld [vmem:[%s1 + $0xd4] sm:$0xf]
      %v5673 = vld [vmem:[%s1 + $0xd8] sm:$0xf]
      %v5674 = vld [vmem:[%s1 + $0xdc] sm:$0xf]
      %v5675 = vld [vmem:[%s1 + $0xe0] sm:$0xf]
      %v5676 = vld [vmem:[%s1 + $0xe4] sm:$0xf]
      %v5677 = vld [vmem:[%s1 + $0xe8] sm:$0xf]
      %v5678 = vld [vmem:[%s1 + $0xec] sm:$0xf]
      %v5679 = vld [vmem:[%s1 + $0xf0] sm:$0xf]
      %v5680 = vld [vmem:[%s1 + $0xf4] sm:$0xf]
      %v5681 = vld [vmem:[%s1 + $0xf8] sm:$0xf]
      %v5682 = vld [vmem:[%s1 + $0xfc] sm:$0xf]
      %v5683 = vld [vmem:[%s1 + $0x100] sm:$0xf]
      %v5684 = vld [vmem:[%s1 + $0x104] sm:$0xf]
      %v5685 = vld [vmem:[%s1 + $0x108] sm:$0xf]
      %v5686 = vld [vmem:[%s1 + $0x10c] sm:$0xf]
      %v5687 = vld [vmem:[%s1 + $0x110] sm:$0xf]
      %v5688 = vld [vmem:[%s1 + $0x114] sm:$0xf]
      %v5689 = vld [vmem:[%s1 + $0x118] sm:$0xf]
      %v5690 = vld [vmem:[%s1 + $0x11c] sm:$0xf]
      %v5763 = vunpack.c.l.b16 %v5619
      %v5764 = vunpack.c.l.b16 %v5620
      %v5765 = vunpack.c.l.b16 %v5621
      %v5766 = vunpack.c.l.b16 %v5622
      %v5767 = vunpack.c.l.b16 %v5623
      %v5768 = vunpack.c.l.b16 %v5624
      %v5769 = vunpack.c.l.b16 %v5625
      %v5770 = vunpack.c.l.b16 %v5626
      %v5771 = vunpack.c.l.b16 %v5627
      %v5772 = vunpack.c.l.b16 %v5628
      %v5773 = vunpack.c.l.b16 %v5629
      %v5774 = vunpack.c.l.b16 %v5630
      %v5775 = vunpack.c.l.b16 %v5631
      %v5776 = vunpack.c.l.b16 %v5632
      %v5777 = vunpack.c.l.b16 %v5633
      %v5778 = vunpack.c.l.b16 %v5634
      %v5779 = vunpack.c.l.b16 %v5635
      %v5780 = vunpack.c.l.b16 %v5636
      %v5781 = vunpack.c.l.b16 %v5637
      %v5782 = vunpack.c.l.b16 %v5638
      %v5783 = vunpack.c.l.b16 %v5639
      %v5784 = vunpack.c.l.b16 %v5640
      %v5785 = vunpack.c.l.b16 %v5641
      %v5786 = vunpack.c.l.b16 %v5642
      %v5787 = vunpack.c.l.b16 %v5643
      %v5788 = vunpack.c.l.b16 %v5644
      %v5789 = vunpack.c.l.b16 %v5645
      %v5790 = vunpack.c.l.b16 %v5646
      %v5791 = vunpack.c.l.b16 %v5647
      %v5792 = vunpack.c.l.b16 %v5648
      %v5793 = vunpack.c.l.b16 %v5649
      %v5794 = vunpack.c.l.b16 %v5650
      %v5795 = vunpack.c.l.b16 %v5651
      %v5796 = vunpack.c.l.b16 %v5652
      %v5797 = vunpack.c.l.b16 %v5653
      %v5798 = vunpack.c.l.b16 %v5654
      %v5799 = vunpack.c.l.b16 %v5655
      %v5800 = vunpack.c.l.b16 %v5656
      %v5801 = vunpack.c.l.b16 %v5657
      %v5802 = vunpack.c.l.b16 %v5658
      %v5803 = vunpack.c.l.b16 %v5659
      %v5804 = vunpack.c.l.b16 %v5660
      %v5805 = vunpack.c.l.b16 %v5661
      %v5806 = vunpack.c.l.b16 %v5662
      %v5807 = vunpack.c.l.b16 %v5663
      %v5808 = vunpack.c.l.b16 %v5664
      %v5809 = vunpack.c.l.b16 %v5665
      %v5810 = vunpack.c.l.b16 %v5666
      %v5811 = vunpack.c.l.b16 %v5667
      %v5812 = vunpack.c.l.b16 %v5668
      %v5813 = vunpack.c.l.b16 %v5669
      %v5814 = vunpack.c.l.b16 %v5670
      %v5815 = vunpack.c.l.b16 %v5671
      %v5816 = vunpack.c.l.b16 %v5672
      %v5817 = vunpack.c.l.b16 %v5673
      %v5818 = vunpack.c.l.b16 %v5674
      %v5819 = vunpack.c.l.b16 %v5675
      %v5820 = vunpack.c.l.b16 %v5676
      %v5821 = vunpack.c.l.b16 %v5677
      %v5822 = vunpack.c.l.b16 %v5678
      %v5823 = vunpack.c.l.b16 %v5679
      %v5824 = vunpack.c.l.b16 %v5680
      %v5825 = vunpack.c.l.b16 %v5681
      %v5826 = vunpack.c.l.b16 %v5682
      %v5827 = vunpack.c.l.b16 %v5683
      %v5828 = vunpack.c.l.b16 %v5684
      %v5829 = vunpack.c.l.b16 %v5685
      %v5830 = vunpack.c.l.b16 %v5686
      %v5831 = vunpack.c.l.b16 %v5687
      %v5832 = vunpack.c.l.b16 %v5688
      %v5833 = vunpack.c.l.b16 %v5689
      %v5834 = vunpack.c.l.b16 %v5690
      %v5835 = vpack.c.b16 %v5764, %v5763
      %v5836 = vpack.c.b16 %v5766, %v5765
      %v5837 = vpack.c.b16 %v5768, %v5767
      %v5838 = vpack.c.b16 %v5770, %v5769
      %v5839 = vpack.c.b16 %v5772, %v5771
      %v5840 = vpack.c.b16 %v5774, %v5773
      %v5841 = vpack.c.b16 %v5776, %v5775
      %v5842 = vpack.c.b16 %v5778, %v5777
      %v5843 = vpack.c.b16 %v5780, %v5779
      %v5844 = vpack.c.b16 %v5782, %v5781
      %v5845 = vpack.c.b16 %v5784, %v5783
      %v5846 = vpack.c.b16 %v5786, %v5785
      %v5847 = vpack.c.b16 %v5788, %v5787
      %v5848 = vpack.c.b16 %v5790, %v5789
      %v5849 = vpack.c.b16 %v5792, %v5791
      %v5850 = vpack.c.b16 %v5794, %v5793
      %v5851 = vpack.c.b16 %v5796, %v5795
      %v5852 = vpack.c.b16 %v5798, %v5797
      %v5853 = vpack.c.b16 %v5800, %v5799
      %v5854 = vpack.c.b16 %v5802, %v5801
      %v5855 = vpack.c.b16 %v5804, %v5803
      %v5856 = vpack.c.b16 %v5806, %v5805
      %v5857 = vpack.c.b16 %v5808, %v5807
      %v5858 = vpack.c.b16 %v5810, %v5809
      %v5859 = vpack.c.b16 %v5812, %v5811
      %v5860 = vpack.c.b16 %v5814, %v5813
      %v5861 = vpack.c.b16 %v5816, %v5815
      %v5862 = vpack.c.b16 %v5818, %v5817
      %v5863 = vpack.c.b16 %v5820, %v5819
      %v5864 = vpack.c.b16 %v5822, %v5821
      %v5865 = vpack.c.b16 %v5824, %v5823
      %v5866 = vpack.c.b16 %v5826, %v5825
      %v5867 = vpack.c.b16 %v5828, %v5827
      %v5868 = vpack.c.b16 %v5830, %v5829
      %v5869 = vpack.c.b16 %v5832, %v5831
      %v5870 = vpack.c.b16 %v5834, %v5833
      %v5908 = vsel %vm308, %v5543, 0
      %v5911 = vsel %vm308, %v5548, 0
      %v5914 = vsel %vm308, %v5553, 0
      %v5917 = vsel %vm308, %v5558, 0
      %v5920 = vsel %vm308, %v5563, 0
      %v5923 = vsel %vm308, %v5568, 0
      %v5926 = vsel %vm308, %v5573, 0
      %v5929 = vsel %vm308, %v5578, 0
      %v5932 = vsel %vm308, %v5583, 0
      %v5935 = vsel %vm308, %v5588, 0
      %v5938 = vsel %vm308, %v5593, 0
      %v5941 = vsel %vm308, %v5598, 0
      %v5944 = vsel %vm308, %v5603, 0
      %v5947 = vsel %vm308, %v5608, 0
      %v5950 = vsel %vm308, %v5613, 0
      %v5953 = vsel %vm308, %v5618, 0
      %5955 = vmatprep.subr.bf16.mxu0 0
      %5956 = vmatpush1.bf16.msra.mxu0 %v5835
      %5957 = vmatprep.subr.bf16.mxu0 0
      %5958 = vmatpush1.bf16.msra.mxu0 %v5836
      %5959 = vmatprep.subr.bf16.mxu0 0
      %5960 = vmatpush1.bf16.msra.mxu0 %v5837
      %5961 = vmatprep.subr.bf16.mxu0 0
      %5962 = vmatpush1.bf16.msra.mxu0 %v5838
      %5963 = vmatprep.subr.bf16.mxu0 0
      %5964 = vmatpush1.bf16.msra.mxu0 %v5839
      %5965 = vmatprep.subr.bf16.mxu0 0
      %5966 = vmatpush1.bf16.msra.mxu0 %v5840
      %5967 = vmatprep.subr.bf16.mxu0 0
      %5968 = vmatpush1.bf16.msra.mxu0 %v5841
      %5969 = vmatprep.subr.bf16.mxu0 0
      %5970 = vmatpush1.bf16.msra.mxu0 %v5842
      %5971 = vmatprep.subr.bf16.mxu0 0
      %5972 = vmatpush1.bf16.msra.mxu0 %v5843
      %5973 = vmatprep.subr.bf16.mxu0 0
      %5974 = vmatpush1.bf16.msra.mxu0 %v5844
      %5975 = vmatprep.subr.bf16.mxu0 0
      %5976 = vmatpush1.bf16.msra.mxu0 %v5845
      %5977 = vmatprep.subr.bf16.mxu0 0
      %5978 = vmatpush1.bf16.msra.mxu0 %v5846
      %5979 = vmatprep.subr.bf16.mxu0 0
      %5980 = vmatpush1.bf16.msra.mxu0 %v5847
      %5981 = vmatprep.subr.bf16.mxu0 0
      %5982 = vmatpush1.bf16.msra.mxu0 %v5848
      %5983 = vmatprep.subr.bf16.mxu0 0
      %5984 = vmatpush1.bf16.msra.mxu0 %v5849
      %5985 = vmatprep.subr.bf16.mxu0 0
      %5986 = vmatpush1.bf16.msra.mxu0 %v5850
      %5987 = vmatprep.mubr.bf16.mxu0 %v5540
      %5988 = vmatmul.mubr.bf16.gmra.mrb[0].mxu0 %v5539
      %v5989 = vpop.f32.mrb[0].mxu0
      %v5990 = vadd.f32 0.0, %v5989
      %v5991 = vpop.f32.mrb[0].mxu0
      %v5992 = vpop.f32.mrb[0].mxu0
      %v5993 = vadd.f32 0.0, %v5992
      %v5994 = vpop.f32.mrb[0].mxu0
      %5995 = vmatprep.mubr.bf16.mxu0 %v5545
      %5996 = vmatmul.mubr.bf16.gmra.mrb[0].mxu0 %v5544
      %v5997 = vpop.f32.mrb[0].mxu0
      %v5998 = vadd.f32 0.0, %v5997
      %v5999 = vpop.f32.mrb[0].mxu0
      %v6000 = vpop.f32.mrb[0].mxu0
      %v6001 = vadd.f32 0.0, %v6000
      %v6002 = vpop.f32.mrb[0].mxu0
      %6003 = vmatprep.mubr.bf16.mxu0 %v5550
      %6004 = vmatmul.mubr.bf16.gmra.mrb[0].mxu0 %v5549
      %v6005 = vpop.f32.mrb[0].mxu0
      %v6006 = vadd.f32 0.0, %v6005
      %v6007 = vpop.f32.mrb[0].mxu0
      %v6008 = vpop.f32.mrb[0].mxu0
      %v6009 = vadd.f32 0.0, %v6008
      %v6010 = vpop.f32.mrb[0].mxu0
      %6011 = vmatprep.mubr.bf16.mxu0 %v5555
      %6012 = vmatmul.mubr.bf16.gmra.mrb[0].mxu0 %v5554
      %v6013 = vpop.f32.mrb[0].mxu0
      %v6014 = vadd.f32 0.0, %v6013
      %v6015 = vpop.f32.mrb[0].mxu0
      %v6016 = vpop.f32.mrb[0].mxu0
      %v6017 = vadd.f32 0.0, %v6016
      %v6018 = vpop.f32.mrb[0].mxu0
      %6019 = vmatprep.mubr.bf16.mxu0 %v5560
      %6020 = vmatmul.mubr.bf16.gmra.mrb[0].mxu0 %v5559
      %v6021 = vpop.f32.mrb[0].mxu0
      %v6022 = vadd.f32 0.0, %v6021
      %v6023 = vpop.f32.mrb[0].mxu0
      %v6024 = vpop.f32.mrb[0].mxu0
      %v6025 = vadd.f32 0.0, %v6024
      %v6026 = vpop.f32.mrb[0].mxu0
      %6027 = vmatprep.mubr.bf16.mxu0 %v5565
      %6028 = vmatmul.mubr.bf16.gmra.mrb[0].mxu0 %v5564
      %v6029 = vpop.f32.mrb[0].mxu0
      %v6030 = vadd.f32 0.0, %v6029
      %v6031 = vpop.f32.mrb[0].mxu0
      %v6032 = vpop.f32.mrb[0].mxu0
      %v6033 = vadd.f32 0.0, %v6032
      %v6034 = vpop.f32.mrb[0].mxu0
      %6035 = vmatprep.mubr.bf16.mxu0 %v5570
      %6036 = vmatmul.mubr.bf16.gmra.mrb[0].mxu0 %v5569
      %v6037 = vpop.f32.mrb[0].mxu0
      %v6038 = vadd.f32 0.0, %v6037
      %v6039 = vpop.f32.mrb[0].mxu0
      %v6040 = vpop.f32.mrb[0].mxu0
      %v6041 = vadd.f32 0.0, %v6040
      %v6042 = vpop.f32.mrb[0].mxu0
      %6043 = vmatprep.mubr.bf16.mxu0 %v5575
      %6044 = vmatmul.mubr.bf16.gmra.mrb[0].mxu0 %v5574
      %v6045 = vpop.f32.mrb[0].mxu0
      %v6046 = vadd.f32 0.0, %v6045
      %v6047 = vpop.f32.mrb[0].mxu0
      %v6048 = vpop.f32.mrb[0].mxu0
      %v6049 = vadd.f32 0.0, %v6048
      %v6050 = vpop.f32.mrb[0].mxu0
      %6051 = vmatprep.mubr.bf16.mxu0 %v5580
      %6052 = vmatmul.mubr.bf16.gmra.mrb[0].mxu0 %v5579
      %v6053 = vpop.f32.mrb[0].mxu0
      %v6054 = vadd.f32 0.0, %v6053
      %v6055 = vpop.f32.mrb[0].mxu0
      %v6056 = vpop.f32.mrb[0].mxu0
      %v6057 = vadd.f32 0.0, %v6056
      %v6058 = vpop.f32.mrb[0].mxu0
      %6059 = vmatprep.mubr.bf16.mxu0 %v5585
      %6060 = vmatmul.mubr.bf16.gmra.mrb[0].mxu0 %v5584
      %v6061 = vpop.f32.mrb[0].mxu0
      %v6062 = vadd.f32 0.0, %v6061
      %v6063 = vpop.f32.mrb[0].mxu0
      %v6064 = vpop.f32.mrb[0].mxu0
      %v6065 = vadd.f32 0.0, %v6064
      %v6066 = vpop.f32.mrb[0].mxu0
      %6067 = vmatprep.mubr.bf16.mxu0 %v5590
      %6068 = vmatmul.mubr.bf16.gmra.mrb[0].mxu0 %v5589
      %v6069 = vpop.f32.mrb[0].mxu0
      %v6070 = vadd.f32 0.0, %v6069
      %v6071 = vpop.f32.mrb[0].mxu0
      %v6072 = vpop.f32.mrb[0].mxu0
      %v6073 = vadd.f32 0.0, %v6072
      %v6074 = vpop.f32.mrb[0].mxu0
      %6075 = vmatprep.mubr.bf16.mxu0 %v5595
      %6076 = vmatmul.mubr.bf16.gmra.mrb[0].mxu0 %v5594
      %v6077 = vpop.f32.mrb[0].mxu0
      %v6078 = vadd.f32 0.0, %v6077
      %v6079 = vpop.f32.mrb[0].mxu0
      %v6080 = vpop.f32.mrb[0].mxu0
      %v6081 = vadd.f32 0.0, %v6080
      %v6082 = vpop.f32.mrb[0].mxu0
      %6083 = vmatprep.mubr.bf16.mxu0 %v5600
      %6084 = vmatmul.mubr.bf16.gmra.mrb[0].mxu0 %v5599
      %v6085 = vpop.f32.mrb[0].mxu0
      %v6086 = vadd.f32 0.0, %v6085
      %v6087 = vpop.f32.mrb[0].mxu0
      %v6088 = vpop.f32.mrb[0].mxu0
      %v6089 = vadd.f32 0.0, %v6088
      %v6090 = vpop.f32.mrb[0].mxu0
      %6091 = vmatprep.mubr.bf16.mxu0 %v5605
      %6092 = vmatmul.mubr.bf16.gmra.mrb[0].mxu0 %v5604
      %v6093 = vpop.f32.mrb[0].mxu0
      %v6094 = vadd.f32 0.0, %v6093
      %v6095 = vpop.f32.mrb[0].mxu0
      %v6096 = vpop.f32.mrb[0].mxu0
      %v6097 = vadd.f32 0.0, %v6096
      %v6098 = vpop.f32.mrb[0].mxu0
      %6099 = vmatprep.mubr.bf16.mxu0 %v5610
      %6100 = vmatmul.mubr.bf16.gmra.mrb[0].mxu0 %v5609
      %v6101 = vpop.f32.mrb[0].mxu0
      %v6102 = vadd.f32 0.0, %v6101
      %v6103 = vpop.f32.mrb[0].mxu0
      %v6104 = vpop.f32.mrb[0].mxu0
      %v6105 = vadd.f32 0.0, %v6104
      %v6106 = vpop.f32.mrb[0].mxu0
      %6107 = vmatprep.mubr.bf16.mxu0 %v5615
      %6108 = vmatmul.mubr.bf16.gmra.mrb[0].mxu0 %v5614
      %v6109 = vpop.f32.mrb[0].mxu0
      %v6110 = vadd.f32 0.0, %v6109
      %v6111 = vpop.f32.mrb[0].mxu0
      %v6112 = vpop.f32.mrb[0].mxu0
      %v6113 = vadd.f32 0.0, %v6112
      %v6114 = vpop.f32.mrb[0].mxu0
      %6115 = vdwg.mxu0
      %6116 = vmatprep.subr.bf16.mxu0 0
      %6117 = vmatpush1.bf16.msra.mxu0 %v5851
      %6118 = vmatprep.subr.bf16.mxu0 0
      %6119 = vmatpush1.bf16.msra.mxu0 %v5852
      %6120 = vmatprep.subr.bf16.mxu0 0
      %6121 = vmatpush1.bf16.msra.mxu0 %v5853
      %6122 = vmatprep.subr.bf16.mxu0 0
      %6123 = vmatpush1.bf16.msra.mxu0 %v5854
      %6124 = vmatprep.subr.bf16.mxu0 0
      %6125 = vmatpush1.bf16.msra.mxu0 %v5855
      %6126 = vmatprep.subr.bf16.mxu0 0
      %6127 = vmatpush1.bf16.msra.mxu0 %v5856
      %6128 = vmatprep.subr.bf16.mxu0 0
      %6129 = vmatpush1.bf16.msra.mxu0 %v5857
      %6130 = vmatprep.subr.bf16.mxu0 0
      %6131 = vmatpush1.bf16.msra.mxu0 %v5858
      %6132 = vmatprep.subr.bf16.mxu0 0
      %6133 = vmatpush1.bf16.msra.mxu0 %v5859
      %6134 = vmatprep.subr.bf16.mxu0 0
      %6135 = vmatpush1.bf16.msra.mxu0 %v5860
      %6136 = vmatprep.subr.bf16.mxu0 0
      %6137 = vmatpush1.bf16.msra.mxu0 %v5861
      %6138 = vmatprep.subr.bf16.mxu0 0
      %6139 = vmatpush1.bf16.msra.mxu0 %v5862
      %6140 = vmatprep.subr.bf16.mxu0 0
      %6141 = vmatpush1.bf16.msra.mxu0 %v5863
      %6142 = vmatprep.subr.bf16.mxu0 0
      %6143 = vmatpush1.bf16.msra.mxu0 %v5864
      %6144 = vmatprep.subr.bf16.mxu0 0
      %6145 = vmatpush1.bf16.msra.mxu0 %v5865
      %6146 = vmatprep.subr.bf16.mxu0 0
      %6147 = vmatpush1.bf16.msra.mxu0 %v5866
      %6148 = vmatprep.mubr.bf16.mxu0 %v5542
      %6149 = vmatmul.mubr.bf16.gmra.mrb[0].mxu0 %v5541
      %v6150 = vpop.f32.mrb[0].mxu0
      %v6151 = vadd.f32 %v5990, %v6150
      %v6152 = vpop.f32.mrb[0].mxu0
      %v6153 = vpop.f32.mrb[0].mxu0
      %v6154 = vadd.f32 %v5993, %v6153
      %v6155 = vpop.f32.mrb[0].mxu0
      %6156 = vmatprep.mubr.bf16.mxu0 %v5547
      %6157 = vmatmul.mubr.bf16.gmra.mrb[0].mxu0 %v5546
      %v6158 = vpop.f32.mrb[0].mxu0
      %v6159 = vadd.f32 %v5998, %v6158
      %v6160 = vpop.f32.mrb[0].mxu0
      %v6161 = vpop.f32.mrb[0].mxu0
      %v6162 = vadd.f32 %v6001, %v6161
      %v6163 = vpop.f32.mrb[0].mxu0
      %6164 = vmatprep.mubr.bf16.mxu0 %v5552
      %6165 = vmatmul.mubr.bf16.gmra.mrb[0].mxu0 %v5551
      %v6166 = vpop.f32.mrb[0].mxu0
      %v6167 = vadd.f32 %v6006, %v6166
      %v6168 = vpop.f32.mrb[0].mxu0
      %v6169 = vpop.f32.mrb[0].mxu0
      %v6170 = vadd.f32 %v6009, %v6169
      %v6171 = vpop.f32.mrb[0].mxu0
      %6172 = vmatprep.mubr.bf16.mxu0 %v5557
      %6173 = vmatmul.mubr.bf16.gmra.mrb[0].mxu0 %v5556
      %v6174 = vpop.f32.mrb[0].mxu0
      %v6175 = vadd.f32 %v6014, %v6174
      %v6176 = vpop.f32.mrb[0].mxu0
      %v6177 = vpop.f32.mrb[0].mxu0
      %v6178 = vadd.f32 %v6017, %v6177
      %v6179 = vpop.f32.mrb[0].mxu0
      %6180 = vmatprep.mubr.bf16.mxu0 %v5562
      %6181 = vmatmul.mubr.bf16.gmra.mrb[0].mxu0 %v5561
      %v6182 = vpop.f32.mrb[0].mxu0
      %v6183 = vadd.f32 %v6022, %v6182
      %v6184 = vpop.f32.mrb[0].mxu0
      %v6185 = vpop.f32.mrb[0].mxu0
      %v6186 = vadd.f32 %v6025, %v6185
      %v6187 = vpop.f32.mrb[0].mxu0
      %6188 = vmatprep.mubr.bf16.mxu0 %v5567
      %6189 = vmatmul.mubr.bf16.gmra.mrb[0].mxu0 %v5566
      %v6190 = vpop.f32.mrb[0].mxu0
      %v6191 = vadd.f32 %v6030, %v6190
      %v6192 = vpop.f32.mrb[0].mxu0
      %v6193 = vpop.f32.mrb[0].mxu0
      %v6194 = vadd.f32 %v6033, %v6193
      %v6195 = vpop.f32.mrb[0].mxu0
      %6196 = vmatprep.mubr.bf16.mxu0 %v5572
      %6197 = vmatmul.mubr.bf16.gmra.mrb[0].mxu0 %v5571
      %v6198 = vpop.f32.mrb[0].mxu0
      %v6199 = vadd.f32 %v6038, %v6198
      %v6200 = vpop.f32.mrb[0].mxu0
      %v6201 = vpop.f32.mrb[0].mxu0
      %v6202 = vadd.f32 %v6041, %v6201
      %v6203 = vpop.f32.mrb[0].mxu0
      %6204 = vmatprep.mubr.bf16.mxu0 %v5577
      %6205 = vmatmul.mubr.bf16.gmra.mrb[0].mxu0 %v5576
      %v6206 = vpop.f32.mrb[0].mxu0
      %v6207 = vadd.f32 %v6046, %v6206
      %v6208 = vpop.f32.mrb[0].mxu0
      %v6209 = vpop.f32.mrb[0].mxu0
      %v6210 = vadd.f32 %v6049, %v6209
      %v6211 = vpop.f32.mrb[0].mxu0
      %6212 = vmatprep.mubr.bf16.mxu0 %v5582
      %6213 = vmatmul.mubr.bf16.gmra.mrb[0].mxu0 %v5581
      %v6214 = vpop.f32.mrb[0].mxu0
      %v6215 = vadd.f32 %v6054, %v6214
      %v6216 = vpop.f32.mrb[0].mxu0
      %v6217 = vpop.f32.mrb[0].mxu0
      %v6218 = vadd.f32 %v6057, %v6217
      %v6219 = vpop.f32.mrb[0].mxu0
      %6220 = vmatprep.mubr.bf16.mxu0 %v5587
      %6221 = vmatmul.mubr.bf16.gmra.mrb[0].mxu0 %v5586
      %v6222 = vpop.f32.mrb[0].mxu0
      %v6223 = vadd.f32 %v6062, %v6222
      %v6224 = vpop.f32.mrb[0].mxu0
      %v6225 = vpop.f32.mrb[0].mxu0
      %v6226 = vadd.f32 %v6065, %v6225
      %v6227 = vpop.f32.mrb[0].mxu0
      %6228 = vmatprep.mubr.bf16.mxu0 %v5592
      %6229 = vmatmul.mubr.bf16.gmra.mrb[0].mxu0 %v5591
      %v6230 = vpop.f32.mrb[0].mxu0
      %v6231 = vadd.f32 %v6070, %v6230
      %v6232 = vpop.f32.mrb[0].mxu0
      %v6233 = vpop.f32.mrb[0].mxu0
      %v6234 = vadd.f32 %v6073, %v6233
      %v6235 = vpop.f32.mrb[0].mxu0
      %6236 = vmatprep.mubr.bf16.mxu0 %v5597
      %6237 = vmatmul.mubr.bf16.gmra.mrb[0].mxu0 %v5596
      %v6238 = vpop.f32.mrb[0].mxu0
      %v6239 = vadd.f32 %v6078, %v6238
      %v6240 = vpop.f32.mrb[0].mxu0
      %v6241 = vpop.f32.mrb[0].mxu0
      %v6242 = vadd.f32 %v6081, %v6241
      %v6243 = vpop.f32.mrb[0].mxu0
      %6244 = vmatprep.mubr.bf16.mxu0 %v5602
      %6245 = vmatmul.mubr.bf16.gmra.mrb[0].mxu0 %v5601
      %v6246 = vpop.f32.mrb[0].mxu0
      %v6247 = vadd.f32 %v6086, %v6246
      %v6248 = vpop.f32.mrb[0].mxu0
      %v6249 = vpop.f32.mrb[0].mxu0
      %v6250 = vadd.f32 %v6089, %v6249
      %v6251 = vpop.f32.mrb[0].mxu0
      %6252 = vmatprep.mubr.bf16.mxu0 %v5607
      %6253 = vmatmul.mubr.bf16.gmra.mrb[0].mxu0 %v5606
      %v6254 = vpop.f32.mrb[0].mxu0
      %v6255 = vadd.f32 %v6094, %v6254
      %v6256 = vpop.f32.mrb[0].mxu0
      %v6257 = vpop.f32.mrb[0].mxu0
      %v6258 = vadd.f32 %v6097, %v6257
      %v6259 = vpop.f32.mrb[0].mxu0
      %6260 = vmatprep.mubr.bf16.mxu0 %v5612
      %6261 = vmatmul.mubr.bf16.gmra.mrb[0].mxu0 %v5611
      %v6262 = vpop.f32.mrb[0].mxu0
      %v6263 = vadd.f32 %v6102, %v6262
      %v6264 = vpop.f32.mrb[0].mxu0
      %v6265 = vpop.f32.mrb[0].mxu0
      %v6266 = vadd.f32 %v6105, %v6265
      %v6267 = vpop.f32.mrb[0].mxu0
      %6268 = vmatprep.mubr.bf16.mxu0 %v5617
      %6269 = vmatmul.mubr.bf16.gmra.mrb[0].mxu0 %v5616
      %v6270 = vpop.f32.mrb[0].mxu0
      %v6271 = vadd.f32 %v6110, %v6270
      %v6272 = vpop.f32.mrb[0].mxu0
      %v6273 = vpop.f32.mrb[0].mxu0
      %v6274 = vadd.f32 %v6113, %v6273
      %v6275 = vpop.f32.mrb[0].mxu0
      %6276 = vdwg.mxu0
      %6277 = vmatprep.subr.bf16.mxu0 0
      %6278 = vmatpush1.bf16.msra.mxu0 %v5867
      %6279 = vmatprep.subr.bf16.mxu0 0
      %6280 = vmatpush1.bf16.msra.mxu0 %v5868
      %6281 = vmatprep.subr.bf16.mxu0 0
      %6282 = vmatpush1.bf16.msra.mxu0 %v5869
      %6283 = vmatprep.subr.bf16.mxu0 0
      %6284 = vmatpush1.bf16.msra.mxu0 %v5870
      %6285 = vmatprep.subr.bf16.mxu0 0
      %6286 = vmatpush1.bf16.msra.mxu0 0
      %6287 = vmatprep.subr.bf16.mxu0 0
      %6288 = vmatpush1.bf16.msra.mxu0 0
      %6289 = vmatprep.subr.bf16.mxu0 0
      %6290 = vmatpush1.bf16.msra.mxu0 0
      %6291 = vmatprep.subr.bf16.mxu0 0
      %6292 = vmatpush1.bf16.msra.mxu0 0
      %6293 = vmatprep.subr.bf16.mxu0 0
      %6294 = vmatpush1.bf16.msra.mxu0 0
      %6295 = vmatprep.subr.bf16.mxu0 0
      %6296 = vmatpush1.bf16.msra.mxu0 0
      %6297 = vmatprep.subr.bf16.mxu0 0
      %6298 = vmatpush1.bf16.msra.mxu0 0
      %6299 = vmatprep.subr.bf16.mxu0 0
      %6300 = vmatpush1.bf16.msra.mxu0 0
      %6301 = vmatprep.subr.bf16.mxu0 0
      %6302 = vmatpush1.bf16.msra.mxu0 0
      %6303 = vmatprep.subr.bf16.mxu0 0
      %6304 = vmatpush1.bf16.msra.mxu0 0
      %6305 = vmatprep.subr.bf16.mxu0 0
      %6306 = vmatpush1.bf16.msra.mxu0 0
      %6307 = vmatprep.subr.bf16.mxu0 0
      %6308 = vmatpush1.bf16.msra.mxu0 0
      %6309 = vmatprep.mubr.bf16.mxu0 0
      %6310 = vmatmul.mubr.bf16.gmra.mrb[0].mxu0 %v5908
      %v6311 = vpop.f32.mrb[0].mxu0
      %v6312 = vadd.f32 %v6151, %v6311
      %v6313 = vpop.f32.mrb[0].mxu0
      %v6314 = vpop.f32.mrb[0].mxu0
      %v6315 = vadd.f32 %v6154, %v6314
      %v6316 = vpop.f32.mrb[0].mxu0
      %6317 = vmatprep.mubr.bf16.mxu0 0
      %6318 = vmatmul.mubr.bf16.gmra.mrb[0].mxu0 %v5911
      %v6319 = vpop.f32.mrb[0].mxu0
      %v6320 = vadd.f32 %v6159, %v6319
      %v6321 = vpop.f32.mrb[0].mxu0
      %v6322 = vpop.f32.mrb[0].mxu0
      %v6323 = vadd.f32 %v6162, %v6322
      %v6324 = vpop.f32.mrb[0].mxu0
      %6325 = vmatprep.mubr.bf16.mxu0 0
      %6326 = vmatmul.mubr.bf16.gmra.mrb[0].mxu0 %v5914
      %v6327 = vpop.f32.mrb[0].mxu0
      %v6328 = vadd.f32 %v6167, %v6327
      %v6329 = vpop.f32.mrb[0].mxu0
      %v6330 = vpop.f32.mrb[0].mxu0
      %v6331 = vadd.f32 %v6170, %v6330
      %v6332 = vpop.f32.mrb[0].mxu0
      %6333 = vmatprep.mubr.bf16.mxu0 0
      %6334 = vmatmul.mubr.bf16.gmra.mrb[0].mxu0 %v5917
      %v6335 = vpop.f32.mrb[0].mxu0
      %v6336 = vadd.f32 %v6175, %v6335
      %v6337 = vpop.f32.mrb[0].mxu0
      %v6338 = vpop.f32.mrb[0].mxu0
      %v6339 = vadd.f32 %v6178, %v6338
      %v6340 = vpop.f32.mrb[0].mxu0
      %6341 = vmatprep.mubr.bf16.mxu0 0
      %6342 = vmatmul.mubr.bf16.gmra.mrb[0].mxu0 %v5920
      %v6343 = vpop.f32.mrb[0].mxu0
      %v6344 = vadd.f32 %v6183, %v6343
      %v6345 = vpop.f32.mrb[0].mxu0
      %v6346 = vpop.f32.mrb[0].mxu0
      %v6347 = vadd.f32 %v6186, %v6346
      %v6348 = vpop.f32.mrb[0].mxu0
      %6349 = vmatprep.mubr.bf16.mxu0 0
      %6350 = vmatmul.mubr.bf16.gmra.mrb[0].mxu0 %v5923
      %v6351 = vpop.f32.mrb[0].mxu0
      %v6352 = vadd.f32 %v6191, %v6351
      %v6353 = vpop.f32.mrb[0].mxu0
      %v6354 = vpop.f32.mrb[0].mxu0
      %v6355 = vadd.f32 %v6194, %v6354
      %v6356 = vpop.f32.mrb[0].mxu0
      %6357 = vmatprep.mubr.bf16.mxu0 0
      %6358 = vmatmul.mubr.bf16.gmra.mrb[0].mxu0 %v5926
      %v6359 = vpop.f32.mrb[0].mxu0
      %v6360 = vadd.f32 %v6199, %v6359
      %v6361 = vpop.f32.mrb[0].mxu0
      %v6362 = vpop.f32.mrb[0].mxu0
      %v6363 = vadd.f32 %v6202, %v6362
      %v6364 = vpop.f32.mrb[0].mxu0
      %6365 = vmatprep.mubr.bf16.mxu0 0
      %6366 = vmatmul.mubr.bf16.gmra.mrb[0].mxu0 %v5929
      %v6367 = vpop.f32.mrb[0].mxu0
      %v6368 = vadd.f32 %v6207, %v6367
      %v6369 = vpop.f32.mrb[0].mxu0
      %v6370 = vpop.f32.mrb[0].mxu0
      %v6371 = vadd.f32 %v6210, %v6370
      %v6372 = vpop.f32.mrb[0].mxu0
      %6373 = vmatprep.mubr.bf16.mxu0 0
      %6374 = vmatmul.mubr.bf16.gmra.mrb[0].mxu0 %v5932
      %v6375 = vpop.f32.mrb[0].mxu0
      %v6376 = vadd.f32 %v6215, %v6375
      %v6377 = vpop.f32.mrb[0].mxu0
      %v6378 = vpop.f32.mrb[0].mxu0
      %v6379 = vadd.f32 %v6218, %v6378
      %v6380 = vpop.f32.mrb[0].mxu0
      %6381 = vmatprep.mubr.bf16.mxu0 0
      %6382 = vmatmul.mubr.bf16.gmra.mrb[0].mxu0 %v5935
      %v6383 = vpop.f32.mrb[0].mxu0
      %v6384 = vadd.f32 %v6223, %v6383
      %v6385 = vpop.f32.mrb[0].mxu0
      %v6386 = vpop.f32.mrb[0].mxu0
      %v6387 = vadd.f32 %v6226, %v6386
      %v6388 = vpop.f32.mrb[0].mxu0
      %6389 = vmatprep.mubr.bf16.mxu0 0
      %6390 = vmatmul.mubr.bf16.gmra.mrb[0].mxu0 %v5938
      %v6391 = vpop.f32.mrb[0].mxu0
      %v6392 = vadd.f32 %v6231, %v6391
      %v6393 = vpop.f32.mrb[0].mxu0
      %v6394 = vpop.f32.mrb[0].mxu0
      %v6395 = vadd.f32 %v6234, %v6394
      %v6396 = vpop.f32.mrb[0].mxu0
      %6397 = vmatprep.mubr.bf16.mxu0 0
      %6398 = vmatmul.mubr.bf16.gmra.mrb[0].mxu0 %v5941
      %v6399 = vpop.f32.mrb[0].mxu0
      %v6400 = vadd.f32 %v6239, %v6399
      %v6401 = vpop.f32.mrb[0].mxu0
      %v6402 = vpop.f32.mrb[0].mxu0
      %v6403 = vadd.f32 %v6242, %v6402
      %v6404 = vpop.f32.mrb[0].mxu0
      %6405 = vmatprep.mubr.bf16.mxu0 0
      %6406 = vmatmul.mubr.bf16.gmra.mrb[0].mxu0 %v5944
      %v6407 = vpop.f32.mrb[0].mxu0
      %v6408 = vadd.f32 %v6247, %v6407
      %v6409 = vpop.f32.mrb[0].mxu0
      %v6410 = vpop.f32.mrb[0].mxu0
      %v6411 = vadd.f32 %v6250, %v6410
      %v6412 = vpop.f32.mrb[0].mxu0
      %6413 = vmatprep.mubr.bf16.mxu0 0
      %6414 = vmatmul.mubr.bf16.gmra.mrb[0].mxu0 %v5947
      %v6415 = vpop.f32.mrb[0].mxu0
      %v6416 = vadd.f32 %v6255, %v6415
      %v6417 = vpop.f32.mrb[0].mxu0
      %v6418 = vpop.f32.mrb[0].mxu0
      %v6419 = vadd.f32 %v6258, %v6418
      %v6420 = vpop.f32.mrb[0].mxu0
      %6421 = vmatprep.mubr.bf16.mxu0 0
      %6422 = vmatmul.mubr.bf16.gmra.mrb[0].mxu0 %v5950
      %v6423 = vpop.f32.mrb[0].mxu0
      %v6424 = vadd.f32 %v6263, %v6423
      %v6425 = vpop.f32.mrb[0].mxu0
      %v6426 = vpop.f32.mrb[0].mxu0
      %v6427 = vadd.f32 %v6266, %v6426
      %v6428 = vpop.f32.mrb[0].mxu0
      %6429 = vmatprep.mubr.bf16.mxu0 0
      %6430 = vmatmul.mubr.bf16.gmra.mrb[0].mxu0 %v5953
      %v6431 = vpop.f32.mrb[0].mxu0
      %v6432 = vadd.f32 %v6271, %v6431
      %v6433 = vpop.f32.mrb[0].mxu0
      %v6434 = vpop.f32.mrb[0].mxu0
      %v6435 = vadd.f32 %v6274, %v6434
      %v6436 = vpop.f32.mrb[0].mxu0
      %6437 = vdwg.mxu0
      %v6438 = vmax.f32 %v6312, 0.0
      %v6439 = vmax.f32 %v6315, 0.0
      %v6440 = vmax.f32 %v6320, 0.0
      %v6441 = vmax.f32 %v6323, 0.0
      %v6442 = vmax.f32 %v6328, 0.0
      %v6443 = vmax.f32 %v6331, 0.0
      %v6444 = vmax.f32 %v6336, 0.0
      %v6445 = vmax.f32 %v6339, 0.0
      %v6446 = vmax.f32 %v6344, 0.0
      %v6447 = vmax.f32 %v6347, 0.0
      %v6448 = vmax.f32 %v6352, 0.0
      %v6449 = vmax.f32 %v6355, 0.0
      %v6450 = vmax.f32 %v6360, 0.0
      %v6451 = vmax.f32 %v6363, 0.0
      %v6452 = vmax.f32 %v6368, 0.0
      %v6453 = vmax.f32 %v6371, 0.0
      %v6454 = vmax.f32 %v6376, 0.0
      %v6455 = vmax.f32 %v6379, 0.0
      %v6456 = vmax.f32 %v6384, 0.0
      %v6457 = vmax.f32 %v6387, 0.0
      %v6458 = vmax.f32 %v6392, 0.0
      %v6459 = vmax.f32 %v6395, 0.0
      %v6460 = vmax.f32 %v6400, 0.0
      %v6461 = vmax.f32 %v6403, 0.0
      %v6462 = vmax.f32 %v6408, 0.0
      %v6463 = vmax.f32 %v6411, 0.0
      %v6464 = vmax.f32 %v6416, 0.0
      %v6465 = vmax.f32 %v6419, 0.0
      %v6466 = vmax.f32 %v6424, 0.0
      %v6467 = vmax.f32 %v6427, 0.0
      %v6468 = vmax.f32 %v6432, 0.0
      %v6469 = vmax.f32 %v6435, 0.0
      %v6470 = vpack.c.bf16 %v6439, %v6438
      %v6471 = vpack.c.bf16 %v6441, %v6440
      %v6472 = vpack.c.bf16 %v6443, %v6442
      %v6473 = vpack.c.bf16 %v6445, %v6444
      %v6474 = vpack.c.bf16 %v6447, %v6446
      %v6475 = vpack.c.bf16 %v6449, %v6448
      %v6476 = vpack.c.bf16 %v6451, %v6450
      %v6477 = vpack.c.bf16 %v6453, %v6452
      %v6478 = vpack.c.bf16 %v6455, %v6454
      %v6479 = vpack.c.bf16 %v6457, %v6456
      %v6480 = vpack.c.bf16 %v6459, %v6458
      %v6481 = vpack.c.bf16 %v6461, %v6460
      %v6482 = vpack.c.bf16 %v6463, %v6462
      %v6483 = vpack.c.bf16 %v6465, %v6464
      %v6484 = vpack.c.bf16 %v6467, %v6466
      %v6485 = vpack.c.bf16 %v6469, %v6468
      %v6486 = vld [vmem:[%s2] sm:$0xff]
      %v6487 = vld [vmem:[%s2 + $0x8] sm:$0xff]
      %v6488 = vld [vmem:[%s2 + $0x10] sm:$0xff]
      %v6489 = vld [vmem:[%s2 + $0x18] sm:$0xff]
      %v6490 = vld [vmem:[%s2 + $0x20] sm:$0xff]
      %v6496 = vunpack.c.l.b16 %v6486
      %v6497 = vunpack.c.h.b16 %v6486
      %v6498 = vunpack.c.l.b16 %v6487
      %v6499 = vunpack.c.h.b16 %v6487
      %v6500 = vunpack.c.l.b16 %v6488
      %v6501 = vunpack.c.h.b16 %v6488
      %v6502 = vunpack.c.l.b16 %v6489
      %v6503 = vunpack.c.h.b16 %v6489
      %v6504 = vunpack.c.l.b16 %v6490
      %v6505 = vunpack.c.h.b16 %v6490
      %v6506 = vpack.c.b16 %v6498, %v6496
      %v6507 = vpack.c.b16 %v6499, %v6497
      %v6508 = vpack.c.b16 %v6502, %v6500
      %v6509 = vpack.c.b16 %v6503, %v6501
      %v6510 = vpack.c.b16 %v6504, %v6504
      %v6511 = vpack.c.b16 %v6505, %v6505
      %6518 = vmatprep.subr.bf16.mxu0 0
      %6519 = vmatpush1.bf16.msra.mxu0 %v6470
      %6520 = vmatprep.subr.bf16.mxu0 0
      %6521 = vmatpush1.bf16.msra.mxu0 %v6471
      %6522 = vmatprep.subr.bf16.mxu0 0
      %6523 = vmatpush1.bf16.msra.mxu0 %v6472
      %6524 = vmatprep.subr.bf16.mxu0 0
      %6525 = vmatpush1.bf16.msra.mxu0 %v6473
      %6526 = vmatprep.subr.bf16.mxu0 0
      %6527 = vmatpush1.bf16.msra.mxu0 %v6474
      %6528 = vmatprep.subr.bf16.mxu0 0
      %6529 = vmatpush1.bf16.msra.mxu0 %v6475
      %6530 = vmatprep.subr.bf16.mxu0 0
      %6531 = vmatpush1.bf16.msra.mxu0 %v6476
      %6532 = vmatprep.subr.bf16.mxu0 0
      %6533 = vmatpush1.bf16.msra.mxu0 %v6477
      %6534 = vmatprep.subr.bf16.mxu0 0
      %6535 = vmatpush1.bf16.msra.mxu0 %v6478
      %6536 = vmatprep.subr.bf16.mxu0 0
      %6537 = vmatpush1.bf16.msra.mxu0 %v6479
      %6538 = vmatprep.subr.bf16.mxu0 0
      %6539 = vmatpush1.bf16.msra.mxu0 %v6480
      %6540 = vmatprep.subr.bf16.mxu0 0
      %6541 = vmatpush1.bf16.msra.mxu0 %v6481
      %6542 = vmatprep.subr.bf16.mxu0 0
      %6543 = vmatpush1.bf16.msra.mxu0 %v6482
      %6544 = vmatprep.subr.bf16.mxu0 0
      %6545 = vmatpush1.bf16.msra.mxu0 %v6483
      %6546 = vmatprep.subr.bf16.mxu0 0
      %6547 = vmatpush1.bf16.msra.mxu0 %v6484
      %6548 = vmatprep.subr.bf16.mxu0 0
      %6549 = vmatpush1.bf16.msra.mxu0 %v6485
      %6550 = vmatprep.mubr.bf16.mxu0 %v6507
      %6551 = vmatmul.mubr.bf16.gmra.mrb[0].mxu0 %v6506
      %v6552 = vpop.f32.mrb[0].mxu0
      %v6553 = vadd.f32 0.0, %v6552
      %v6554 = vpop.f32.mrb[0].mxu0
      %v6555 = vpop.f32.mrb[0].mxu0
      %v6556 = vadd.f32 0.0, %v6555
      %v6557 = vpop.f32.mrb[0].mxu0
      %6558 = vmatprep.mubr.bf16.mxu0 %v6509
      %6559 = vmatmul.mubr.bf16.gmra.mrb[0].mxu0 %v6508
      %v6560 = vpop.f32.mrb[0].mxu0
      %v6561 = vadd.f32 0.0, %v6560
      %v6562 = vpop.f32.mrb[0].mxu0
      %v6563 = vpop.f32.mrb[0].mxu0
      %v6564 = vadd.f32 0.0, %v6563
      %v6565 = vpop.f32.mrb[0].mxu0
      %6566 = vmatprep.mubr.bf16.mxu0 %v6511
      %6567 = vmatmul.mubr.bf16.gmra.mrb[0].mxu0 %v6510
      %v6568 = vpop.f32.mrb[0].mxu0
      %v6569 = vadd.f32 0.0, %v6568
      %v6570 = vpop.f32.mrb[0].mxu0
      %v6571 = vpop.f32.mrb[0].mxu0
      %v6572 = vpop.f32.mrb[0].mxu0
      %6573 = vdwg.mxu0
      %s6574 = scalar_lea.vmem %s177, 40
      %6575 = vst [vmem:[%s6574] sm:$0xff] %v6553
      %6576 = vst [vmem:[%s6574 + $0x8] sm:$0xff] %v6556
      %6577 = vst [vmem:[%s6574 + $0x10] sm:$0xff] %v6561
      %6578 = vst [vmem:[%s6574 + $0x18] sm:$0xff] %v6564
      %6579 = vst [vmem:[%s6574 + $0x20] sm:$0xff] %v6569
      %s6580 = smul.u32 2, %s14
      %p6581 = scmp.lt.s32.totalorder %s6580, 3
      %s6582 = scalar_select %p6581, %s6580, 3
      %s6583 = smul.addr %s6582, 5
      %s6584 = smul.addr %s6583, 8
      %s6585 = scalar_lea.vmem %s3, %s6584
      // Predicated region
      $region33: #{alexnet_features.1} parent=31 // pred_check
        %p6586 = pneg %p100
      $region34: #{alexnet_features.1} parent=31 // pred_check_branch
        %6588 = sbr.rel (%p6586) target = $region36
      $region35: #{alexnet_features.1} parent=31 // pred_region
        %s6589 = smul.u32 2, %s14
      $region36: #{alexnet_features.1} parent=31 // pred_fallthru
        _
    $region32: #{alexnet_features.1} parent=5 // pred_fallthru
      _
    %p6590 = scmp.le.s32.totalorder 2, %s9
    // Predicated region
    $region37: #{alexnet_features.1} parent=5 // pred_check
      %p6591 = pneg %p6590
    $region38: #{alexnet_features.1} parent=5 // pred_check_branch
      %6593 = sbr.rel (%p6591) target = $region40
    $region39: #{alexnet_features.1} parent=5 // pred_region
      %s6594 = ssub.s32 %s9, 2
      // Predicated region
      $region41: #{alexnet_features.1} parent=39 // pred_check
        %p6595 = pneg %p106
      $region42: #{alexnet_features.1} parent=39 // pred_check_branch
        %6597 = sbr.rel (%p6595) target = $region44
      $region43: #{alexnet_features.1} parent=39 // pred_region
        %s6598 = smul.u32 2, %s15
        %p6599 = scmp.lt.s32.totalorder %s6598, 3
        %s6600 = scalar_select %p6599, %s6598, 3
        %s6601 = smul.addr %s6600, 5
        %s6602 = smul.addr %s6601, 8
        %s6603 = scalar_lea.vmem %s3, %s6602
      $region44: #{alexnet_features.1} parent=39 // pred_fallthru
        _
    $region40: #{alexnet_features.1} parent=5 // pred_fallthru
      _
  $region6: #{alexnet_features.1} parent=0 // loop_footer
    %s13 = sadd.s32 1, %s9
  $region7: #{alexnet_features.1} parent=0 // loop_footer_branch
    %8 = sbr.rel target = $region3
  $region8: #{alexnet_features.1} parent=0 // loop_exit
    _

</llo_original>
